<compile_context>
chip_gen: v6e
topology: v6e:2x2x1
jax: 0.10.0
libtpu: 0.0.40
codegen_flags: <defaults>
</compile_context>

<pallas_src>
import functools

import jax
import jax.numpy as jnp
from jax.experimental import pallas as pl
from jax.experimental.pallas import tpu as pltpu
from jax.scipy.linalg import block_diag

BN_EPS = 1e-5        # torch.nn.BatchNorm2d default eps
NORM_EPS = 1e-12     # torch.nn.functional.normalize default eps

_HEAD_ORDER = ('3d', '3u', '2d', '2u', '1d', '1u')


def _round_up(x, m):
    return ((x + m - 1) // m) * m


# ---------------------------------------------------------------------------
# Fused Pallas kernel (one grid step per batch element)
# ---------------------------------------------------------------------------

def _fcn_fused_kernel(xcol_ref, bbw_ref, bbb_ref, clsb_ref, ah_ref,
                      w1_ref, b1_ref, w2_ref, b2_ref, g_ref,
                      cls_ref, proj_ref, fpad_sc, *, H, W):
    """Whole FCN forward for one batch element (eval-mode BN folded into weights).

    xcol_ref : (1, H*W, 9*Cin)       pre-im2col'ed padded input
    bbw_ref  : (9*Cin, Cfeat)        backbone conv3x3 weight (BN scale folded)
    bbb_ref  : (1, Cfeat)            folded BN bias
    clsb_ref : (Wf*Cfeat, Wpad)      1x1 classifier folded into W bilinear matrix
    ah_ref   : (Hout, Hf)            H-axis bilinear matrix
    w1_ref   : (3, 3, Cfeat, 6*inter) six projector conv3x3, concat on Cout
    b1_ref   : (1, 6*inter)
    w2_ref   : (6*inter, Npad)       block-diag six conv1x1, zero-padded to 128
    b2_ref   : (1, Npad)
    g_ref    : (Npad, Npad)          block-of-ones for per-head sum of squares
    cls_ref  : (1, Hout, Wpad)       bilinear-upsampled classifier logits
    proj_ref : (1, Hf*Wf, Npad)      L2-normalized projector outputs (lane dense)
    fpad_sc  : (Hf+2, Wf+2, Cfeat)   VMEM scratch: zero-padded pooled features
    """
    Hf, Wf = H // 2, W // 2
    cfeat = bbw_ref.shape[1]

    # ---- backbone: conv3x3 (pre-im2col, BN folded) + bias + ReLU ------------
    y = jnp.dot(xcol_ref[0], bbw_ref[...], preferred_element_type=jnp.float32)
    y = jnp.maximum(y + bbb_ref[...], 0.0)                        # (H*W, Cfeat)

    # ---- 2x2 average pool via layout-preserving reshapes + small sums -------
    y = y.reshape(H * Wf, 2, cfeat)
    y = jnp.sum(y, axis=1)                                        # pool over W
    y = y.reshape(Hf, 2, Wf, cfeat)
    pooled = 0.25 * (y[:, 0] + y[:, 1])                           # (Hf, Wf, C)

    # ---- zero-padded pooled map in VMEM (3x3 halo for the projector) --------
    fpad_sc[...] = jnp.zeros_like(fpad_sc)
    fpad_sc[1:Hf + 1, 1:Wf + 1, :] = pooled

    # ---- classifier 1x1 conv folded into W-bilinear, then H-bilinear --------
    t = jnp.dot(pooled.reshape(Hf, Wf * cfeat), clsb_ref[...],
                preferred_element_type=jnp.float32)               # (Hf, Wpad)
    cls_ref[0] = jnp.dot(ah_ref[...], t,
                         preferred_element_type=jnp.float32)      # (Hout, Wpad)

    # ---- six ProjectorHeads: conv3x3 -> conv1x1 -> L2 normalize -------------
    n1 = w1_ref.shape[3]
    acc = jnp.zeros((Hf * Wf, n1), jnp.float32)
    for dy in range(3):
        for dx in range(3):
            xs = fpad_sc[dy:dy + Hf, dx:dx + Wf, :].reshape(Hf * Wf, cfeat)
            acc += jnp.dot(xs, w1_ref[dy, dx],
                           preferred_element_type=jnp.float32)
    h1 = jnp.maximum(acc + b1_ref[...], 0.0)                      # (HW/4, 6*inter)
    h2 = jnp.maximum(
        jnp.dot(h1, w2_ref[...], preferred_element_type=jnp.float32)
        + b2_ref[...], 0.0)                                       # (HW/4, Npad)
    # F.normalize(p=2, dim=channel): x / max(||x||, eps) == x * rsqrt(max(||x||^2, eps^2))
    ssq = jnp.dot(h2 * h2, g_ref[...], preferred_element_type=jnp.float32)
    proj_ref[0] = h2 * jax.lax.rsqrt(jnp.maximum(ssq, NORM_EPS * NORM_EPS))


def fcn_fused_call(xcol, bbw, bbb, clsb, ah, w1, b1, w2, b2, g, *, H, W):
    N, HW, K = xcol.shape
    Hf, Wf = H // 2, W // 2
    cfeat = bbw.shape[1]
    n1 = w1.shape[3]
    npad = w2.shape[1]
    hout, wpad = ah.shape[0], clsb.shape[1]
    kern = functools.partial(_fcn_fused_kernel, H=H, W=W)
    return pl.pallas_call(
        kern,
        out_shape=(jax.ShapeDtypeStruct((N, hout, wpad), jnp.float32),
                   jax.ShapeDtypeStruct((N, Hf * Wf, npad), jnp.float32)),
        grid=(N,),
        in_specs=[
            pl.BlockSpec((1, HW, K), lambda n: (n, 0, 0)),
            pl.BlockSpec((K, cfeat), lambda n: (0, 0)),
            pl.BlockSpec((1, cfeat), lambda n: (0, 0)),
            pl.BlockSpec((Wf * cfeat, wpad), lambda n: (0, 0)),
            pl.BlockSpec((hout, Hf), lambda n: (0, 0)),
            pl.BlockSpec((3, 3, cfeat, n1), lambda n: (0, 0, 0, 0)),
            pl.BlockSpec((1, n1), lambda n: (0, 0)),
            pl.BlockSpec((n1, npad), lambda n: (0, 0)),
            pl.BlockSpec((1, npad), lambda n: (0, 0)),
            pl.BlockSpec((npad, npad), lambda n: (0, 0)),
        ],
        out_specs=(
            pl.BlockSpec((1, hout, wpad), lambda n: (n, 0, 0)),
            pl.BlockSpec((1, Hf * Wf, npad), lambda n: (n, 0, 0)),
        ),
        scratch_shapes=[pltpu.VMEM((Hf + 2, Wf + 2, cfeat), jnp.float32)],
        compiler_params=pltpu.CompilerParams(
            dimension_semantics=("parallel",)),   # 2x on v7x; no-op on v5e/v6e
    )(xcol, bbw, bbb, clsb, ah, w1, b1, w2, b2, g)


# ---------------------------------------------------------------------------
# Host-side constant matrices (built at trace time)
# ---------------------------------------------------------------------------

def _interp_matrix(out_size, in_size):
    """Row-stochastic (out_size, in_size) matrix reproducing PyTorch's
    F.interpolate(mode='bilinear', align_corners=False) along one axis."""
    o = jnp.arange(out_size, dtype=jnp.float32)
    src = (o + 0.5) * (in_size / out_size) - 0.5
    src = jnp.maximum(src, 0.0)                       # PyTorch clamps negatives
    i0 = jnp.minimum(jnp.floor(src).astype(jnp.int32), in_size - 1)
    i1 = jnp.minimum(i0 + 1, in_size - 1)
    w1 = src - i0.astype(jnp.float32)
    w0 = 1.0 - w1
    rows = jnp.arange(out_size)
    A = jnp.zeros((out_size, in_size), jnp.float32)
    A = A.at[rows, i0].add(w0)
    A = A.at[rows, i1].add(w1)
    return A


# ---------------------------------------------------------------------------
# Parameters (deterministic; eval-mode BatchNorm folded into conv weights)
# ---------------------------------------------------------------------------

def _bn_fold(key, c):
    k1, k2, k3, k4 = jax.random.split(key, 4)
    gamma = 1.0 + 0.1 * jax.random.normal(k1, (c,))
    beta = 0.2 + 0.1 * jax.random.normal(k2, (c,))
    mean = 0.1 * jax.random.normal(k3, (c,))
    var = jnp.abs(jax.random.normal(k4, (c,))) + 0.5
    scale = gamma / jnp.sqrt(var + BN_EPS)
    bias = beta - mean * scale
    return (scale.reshape(1, c).astype(jnp.float32),
            bias.reshape(1, c).astype(jnp.float32))


def _projector_head_params(key, in_channels, dim):
    inter = in_channels // 2
    k1, k2, k3, k4 = jax.random.split(key, 4)
    w1 = 0.1 * jax.random.normal(k1, (3, 3, in_channels, inter), jnp.float32)
    s1, b1 = _bn_fold(k2, inter)
    w2 = 0.1 * jax.random.normal(k3, (inter, dim), jnp.float32)
    s2, b2 = _bn_fold(k4, dim)
    return dict(w1=w1, s1=s1, b1=b1, w2=w2, s2=s2, b2=b2)


def make_fcn_params(key, in_channels=4, feat_channels=16, project_dim=8,
                    num_classes=1):
    keys = jax.random.split(key, 10)
    params = {}
    # synthetic backbone: Conv3x3(in->feat) + BN + ReLU
    params['bb_w'] = 0.1 * jax.random.normal(
        keys[0], (3, 3, in_channels, feat_channels), jnp.float32)
    params['bb_s'], params['bb_b'] = _bn_fold(keys[1], feat_channels)
    # synthetic classifier head: 1x1 conv feat -> num_classes (no BN/ReLU)
    params['cls_w'] = 0.1 * jax.random.normal(
        keys[2], (feat_channels, num_classes), jnp.float32)
    # ProjectorHeads (3d, 3u, 2d, 2u, 1d, 1u)
    for i, name in enumerate(_HEAD_ORDER):
        params[f'ph_{name}'] = _projector_head_params(
            keys[3 + i], feat_channels, project_dim)
    return params


def build_fused_params(params, Hin, Win):
    """Fold BN scales into conv weights, pre-flatten the backbone weight for
    im2col, fold the 1x1 classifier into the W bilinear matrix and pack the six
    projector heads into one wide conv3x3 + one (lane-padded) block-diag 1x1."""
    Hf, Wf = Hin // 2, Win // 2
    fused = {}

    bbw = params['bb_w'] * params['bb_s'][0]                      # BN fold
    cin, cfeat = bbw.shape[2], bbw.shape[3]
    fused['bb_w'] = bbw.reshape(9 * cin, cfeat).astype(jnp.float32)
    fused['bb_b'] = params['bb_b'].astype(jnp.float32)

    # classifier weight folded into the W-axis bilinear matrix; columns padded
    # to a 128-lane-dense output width (wrapper slices the padding off).
    wpad = _round_up(Win, 128)
    awt = _interp_matrix(Win, Wf).T                               # (Wf, Win)
    wcls = params['cls_w'][:, 0]                                  # num_classes == 1
    clsb = (awt[:, None, :] * wcls[None, :, None]).reshape(Wf * cfeat, Win)
    fused['clsB'] = jnp.pad(clsb, ((0, 0), (0, wpad - Win))).astype(jnp.float32)
    fused['Ah'] = _interp_matrix(Hin, Hf).astype(jnp.float32)     # (Hin, Hf)

    # six projector heads packed; final channel axis zero-padded to 128 lanes.
    w1_list, b1_list, w2_blocks, b2_list = [], [], [], []
    for name in _HEAD_ORDER:
        p = params[f'ph_{name}']
        w1_list.append(p['w1'] * p['s1'][0])        # (3,3,C,inter), BN folded
        b1_list.append(p['b1'][0])                  # (inter,)
        w2_blocks.append(p['w2'] * p['s2'][0])      # (inter, dim), BN folded
        b2_list.append(p['b2'][0])                  # (dim,)
    fused['w1cat'] = jnp.concatenate(w1_list, axis=-1).astype(jnp.float32)
    fused['b1cat'] = jnp.concatenate(b1_list)[None, :].astype(jnp.float32)

    dim = params['ph_3d']['w2'].shape[1]
    n2 = len(_HEAD_ORDER) * dim
    npad = _round_up(n2, 128)
    w2blk = block_diag(*w2_blocks).astype(jnp.float32)
    fused['w2blk'] = jnp.pad(w2blk, ((0, 0), (0, npad - n2)))
    fused['b2cat'] = jnp.pad(jnp.concatenate(b2_list)[None, :].astype(jnp.float32),
                             ((0, 0), (0, npad - n2)))
    idx = jnp.arange(n2) // dim
    g = (idx[:, None] == idx[None, :]).astype(jnp.float32)
    fused['gmat'] = jnp.pad(g, ((0, npad - n2), (0, npad - n2)))
    fused['dim'] = dim
    return fused


# ---------------------------------------------------------------------------
# FCN forward (training path: contrast != -1, L1/L2/L3 enabled, is_eval=False)
# ---------------------------------------------------------------------------

def fcn_forward(x_nchw, target_nchw, params):
    N, Cin, Hin, Win = x_nchw.shape
    assert Hin % 2 == 0 and Win % 2 == 0, "even spatial dims assumed (2x2 pool)"
    Hf, Wf = Hin // 2, Win // 2
    fused = build_fused_params(params, Hin, Win)
    dim = fused['dim']
    n2 = len(_HEAD_ORDER) * dim

    # NCHW -> NHWC, pad the 3x3 halo and pre-im2col (K = 9*Cin) in the wrapper.
    x = jnp.transpose(x_nchw, (0, 2, 3, 1)).astype(jnp.float32)
    xpad = jnp.pad(x, ((0, 0), (1, 1), (1, 1), (0, 0)))
    cols = [xpad[:, dy:dy + Hin, dx:dx + Win, :]
            for dy in range(3) for dx in range(3)]
    xcol = jnp.concatenate(cols, axis=-1).reshape(N, Hin * Win, 9 * Cin)

    # ---- single fused pallas_call: backbone + pool + classifier + 6 heads ----
    cls_pad, proj_pad = fcn_fused_call(
        xcol, fused['bb_w'], fused['bb_b'], fused['clsB'], fused['Ah'],
        fused['w1cat'], fused['b1cat'], fused['w2blk'], fused['b2cat'],
        fused['gmat'], H=Hin, W=Win)

    result = {'out': cls_pad[:, None, :, :Win]}                   # (N,1,Hin,Win)

    proj = proj_pad[:, :, :n2].reshape(N, Hf, Wf, n2)
    heads = {}
    for k, name in enumerate(_HEAD_ORDER):
        h = proj[..., k * dim:(k + 1) * dim]
        heads[name] = jnp.transpose(h, (0, 3, 1, 2))              # NHWC -> NCHW
    for lvl in ('3', '2', '1'):
        d, u = heads[f'{lvl}d'], heads[f'{lvl}u']
        result[f'L{lvl}'] = [d, u,
                             jax.lax.stop_gradient(d),
                             jax.lax.stop_gradient(u),
                             jax.lax.stop_gradient(target_nchw)]
    return result


# ---------------------------------------------------------------------------
# Pure-JAX (XLA) reference for value-level validation
# ---------------------------------------------------------------------------

def fcn_reference(x_nchw, target_nchw, params):
    hi = jax.lax.Precision.HIGHEST
    x = jnp.transpose(x_nchw, (0, 2, 3, 1)).astype(jnp.float32)

    def conv3x3(v, w):
        return jax.lax.conv_general_dilated(
            v, w, (1, 1), 'SAME',
            dimension_numbers=('NHWC', 'HWIO', 'NHWC'), precision=hi)

    y = jnp.maximum(conv3x3(x, params['bb_w']) * params['bb_s'][0]
                    + params['bb_b'][0], 0.0)
    N, H, W, C = y.shape
    f = y.reshape(N, H // 2, 2, W // 2, 2, C).mean(axis=(2, 4))   # 2x2 avg pool

    cls = jnp.einsum('nhwc,ck->nhwk', f, params['cls_w'], precision=hi)[..., 0]
    ah = _interp_matrix(H, H // 2)
    aw = _interp_matrix(W, W // 2)
    up = jnp.einsum('oh,nhw,pw->nop', ah, cls, aw, precision=hi)
    result = {'out': up[:, None]}

    def head(p):
        h = jnp.maximum(conv3x3(f, p['w1']) * p['s1'][0] + p['b1'][0], 0.0)
        h = jnp.einsum('nhwc,cd->nhwd', h, p['w2'], precision=hi)
        h = jnp.maximum(h * p['s2'][0] + p['b2'][0], 0.0)
        nrm = jnp.sqrt(jnp.sum(h * h, axis=-1, keepdims=True))
        h = h / jnp.maximum(nrm, NORM_EPS)
        return jnp.transpose(h, (0, 3, 1, 2))

    heads = {name: head(params[f'ph_{name}']) for name in _HEAD_ORDER}
    for lvl in ('3', '2', '1'):
        d, u = heads[f'{lvl}d'], heads[f'{lvl}u']
        result[f'L{lvl}'] = [d, u, d, u, target_nchw]
    return result

# TODO(synk): the registered memory-bank buffers (encode{1,2,3}_queue, *_ptr,
# code*_queue_label) are created in __init__ and never touched by forward(),
# so they are intentionally not materialized here.
# TODO(synk): bf16 MXU inputs (v6e/v7x suggestion) and pl.Buffered(1) on the
# constant-index weight blocks are left off at these toy, launch-bound sizes to
# keep f32 numerics checkable against the XLA reference below.


if __name__ == "__main__":
    key = jax.random.PRNGKey(0)
    kx, kt, kp = jax.random.split(key, 3)

    # small shapes: batch=2, in_channels=4, spatial=16x16, feat=16, project_dim=8
    x = jax.random.normal(kx, (2, 4, 16, 16), jnp.float32)
    target = jax.random.normal(kt, (2, 1, 16, 16), jnp.float32)
    params = make_fcn_params(kp, in_channels=4, feat_channels=16,
                             project_dim=8, num_classes=1)

    result = jax.jit(fcn_forward)(x, target, params)
    jax.block_until_ready(result)

    assert result['out'].shape == (2, 1, 16, 16)
    for lvl in ('3', '2', '1'):
        assert result[f'L{lvl}'][0].shape == (2, 8, 8, 8)
        assert result[f'L{lvl}'][1].shape == (2, 8, 8, 8)

    # value-level check of the fused Pallas kernel against the XLA reference
    ref = jax.jit(fcn_reference)(x, target, params)
    jax.block_until_ready(ref)

    def _check(a, b, name, tol=1e-3):
        err = float(jnp.max(jnp.abs(a - b)))
        assert err < tol, f"{name}: max abs err {err:.3e}"

    _check(result['out'], ref['out'], 'out')
    for lvl in ('3', '2', '1'):
        _check(result[f'L{lvl}'][0], ref[f'L{lvl}'][0], f'L{lvl}d')
        _check(result[f'L{lvl}'][1], ref[f'L{lvl}'][1], f'L{lvl}u')

    print("KERNEL_OK")
</pallas_src>

<mosaic_0001>
module attributes {stable_mosaic.version = 11 : i64} {
  func.func private @main(%arg0: i32) attributes {dimension_semantics = [#tpu.dimension_semantics<core_parallel>], iteration_bounds = array<i64: 2>, tpu.core_type = #tpu.core_type<sc_scalar_subcore>, window_params = []} {
    return
  }
}

module attributes {stable_mosaic.version = 11 : i64} {
  func.func private @main(%arg0: i32) attributes {dimension_semantics = [#tpu.dimension_semantics<core_parallel>], iteration_bounds = array<i64: 2>, tpu.core_type = #tpu.core_type<sc_scalar_subcore>, window_params = []} {
    return
  }
}

module attributes {stable_mosaic.version = 11 : i64} {
  func.func @_fcn_fused_kernel(%arg0: i32, %arg1: memref<1x256x36xf32, #tpu.memory_space<vmem>>, %arg2: memref<36x16xf32, #tpu.memory_space<vmem>>, %arg3: memref<1x16xf32, #tpu.memory_space<vmem>>, %arg4: memref<128x128xf32, #tpu.memory_space<vmem>>, %arg5: memref<16x8xf32, #tpu.memory_space<vmem>>, %arg6: memref<3x3x16x48xf32, #tpu.memory_space<vmem>>, %arg7: memref<1x48xf32, #tpu.memory_space<vmem>>, %arg8: memref<48x128xf32, #tpu.memory_space<vmem>>, %arg9: memref<1x128xf32, #tpu.memory_space<vmem>>, %arg10: memref<128x128xf32, #tpu.memory_space<vmem>>, %arg11: memref<1x16x128xf32, #tpu.memory_space<vmem>>, %arg12: memref<1x64x128xf32, #tpu.memory_space<vmem>>, %arg13: memref<10x10x16xf32, #tpu.memory_space<vmem>>) attributes {dimension_semantics = [#tpu.dimension_semantics<parallel>], iteration_bounds = array<i64: 2>, scalar_prefetch = 0 : i64, scratch_operands = 1 : i64, tpu.core_type = #tpu.core_type<tc>, window_params = [{transform_indices = @transform_0, window_bounds = array<i64: 1, 256, 36>}, {pipeline_mode = #tpu.pipeline_mode<synchronous>, transform_indices = @transform_1, window_bounds = array<i64: 36, 16>}, {pipeline_mode = #tpu.pipeline_mode<synchronous>, transform_indices = @transform_2, window_bounds = array<i64: 1, 16>}, {pipeline_mode = #tpu.pipeline_mode<synchronous>, transform_indices = @transform_3, window_bounds = array<i64: 128, 128>}, {pipeline_mode = #tpu.pipeline_mode<synchronous>, transform_indices = @transform_4, window_bounds = array<i64: 16, 8>}, {pipeline_mode = #tpu.pipeline_mode<synchronous>, transform_indices = @transform_5, window_bounds = array<i64: 3, 3, 16, 48>}, {pipeline_mode = #tpu.pipeline_mode<synchronous>, transform_indices = @transform_6, window_bounds = array<i64: 1, 48>}, {pipeline_mode = #tpu.pipeline_mode<synchronous>, transform_indices = @transform_7, window_bounds = array<i64: 48, 128>}, {pipeline_mode = #tpu.pipeline_mode<synchronous>, transform_indices = @transform_8, window_bounds = array<i64: 1, 128>}, {pipeline_mode = #tpu.pipeline_mode<synchronous>, transform_indices = @transform_9, window_bounds = array<i64: 128, 128>}, {transform_indices = @transform_10, window_bounds = array<i64: 1, 16, 128>}, {transform_indices = @transform_11, window_bounds = array<i64: 1, 64, 128>}]} {
    %c0 = arith.constant 0 : index
    %c0_0 = arith.constant 0 : index
    %c0_1 = arith.constant 0 : index
    %0 = vector.load %arg1[%c0, %c0_0, %c0_1] : memref<1x256x36xf32, #tpu.memory_space<vmem>>, vector<1x256x36xf32>
    %1 = vector.shape_cast %0 : vector<1x256x36xf32> to vector<256x36xf32>
    %c0_2 = arith.constant 0 : index
    %c0_3 = arith.constant 0 : index
    %2 = vector.load %arg2[%c0_2, %c0_3] : memref<36x16xf32, #tpu.memory_space<vmem>>, vector<36x16xf32>
    %cst = arith.constant dense<0.000000e+00> : vector<256x16xf32>
    %3 = tpu.matmul %1, %2, %cst {dimension_numbers = #tpu.dot_dimension_numbers<[1], [0], [0], [1], [0, 0, 1, 1], [], []>} : vector<256x36xf32>, vector<36x16xf32>, vector<256x16xf32> -> vector<256x16xf32>
    %c0_4 = arith.constant 0 : index
    %c0_5 = arith.constant 0 : index
    %4 = vector.load %arg3[%c0_4, %c0_5] : memref<1x16xf32, #tpu.memory_space<vmem>>, vector<1x16xf32>
    %5 = vector.broadcast %4 : vector<1x16xf32> to vector<256x16xf32>
    %6 = arith.addf %3, %5 : vector<256x16xf32>
    %cst_6 = arith.constant 0.000000e+00 : f32
    %7 = vector.broadcast %cst_6 : f32 to vector<256x16xf32>
    %8 = arith.maximumf %6, %7 : vector<256x16xf32>
    %9 = vector.shape_cast %8 : vector<256x16xf32> to vector<128x2x16xf32>
    %cst_7 = arith.constant dense<0.000000e+00> : vector<128x16xf32>
    %10 = vector.multi_reduction <add>, %9, %cst_7 [1] : vector<128x2x16xf32> to vector<128x16xf32>
    %11 = vector.shape_cast %10 : vector<128x16xf32> to vector<8x2x8x16xf32>
    %12 = vector.extract_strided_slice %11 {offsets = [0, 0, 0, 0], sizes = [8, 1, 8, 16], strides = [1, 1, 1, 1]} : vector<8x2x8x16xf32> to vector<8x1x8x16xf32>
    %13 = vector.shape_cast %12 : vector<8x1x8x16xf32> to vector<8x8x16xf32>
    %14 = vector.extract_strided_slice %11 {offsets = [0, 1, 0, 0], sizes = [8, 1, 8, 16], strides = [1, 1, 1, 1]} : vector<8x2x8x16xf32> to vector<8x1x8x16xf32>
    %15 = vector.shape_cast %14 : vector<8x1x8x16xf32> to vector<8x8x16xf32>
    %16 = arith.addf %13, %15 : vector<8x8x16xf32>
    %cst_8 = arith.constant 2.500000e-01 : f32
    %17 = vector.broadcast %cst_8 : f32 to vector<8x8x16xf32>
    %18 = arith.mulf %17, %16 : vector<8x8x16xf32>
    %cst_9 = arith.constant 0.000000e+00 : f32
    %19 = vector.broadcast %cst_9 : f32 to vector<10x10x16xf32>
    %c0_10 = arith.constant 0 : index
    %c0_11 = arith.constant 0 : index
    %c0_12 = arith.constant 0 : index
    %20 = vector.load %arg13[%c0_10, %c0_11, %c0_12] : memref<10x10x16xf32, #tpu.memory_space<vmem>>, vector<10x10x16xf32>
    tpu.vector_store %arg13[%c0_10, %c0_11, %c0_12], %19 {strides = array<i32>} : memref<10x10x16xf32, #tpu.memory_space<vmem>>, vector<10x10x16xf32>,
    %c1 = arith.constant 1 : index
    %c1_13 = arith.constant 1 : index
    %c0_14 = arith.constant 0 : index
    %21 = vector.load %arg13[%c1, %c1_13, %c0_14] : memref<10x10x16xf32, #tpu.memory_space<vmem>>, vector<8x8x16xf32>
    tpu.vector_store %arg13[%c1, %c1_13, %c0_14], %18 {strides = array<i32>} : memref<10x10x16xf32, #tpu.memory_space<vmem>>, vector<8x8x16xf32>,
    %22 = vector.shape_cast %18 : vector<8x8x16xf32> to vector<8x128xf32>
    %c0_15 = arith.constant 0 : index
    %c0_16 = arith.constant 0 : index
    %23 = vector.load %arg4[%c0_15, %c0_16] : memref<128x128xf32, #tpu.memory_space<vmem>>, vector<128x128xf32>
    %cst_17 = arith.constant dense<0.000000e+00> : vector<8x128xf32>
    %24 = tpu.matmul %22, %23, %cst_17 {dimension_numbers = #tpu.dot_dimension_numbers<[1], [0], [0], [1], [0, 0, 1, 1], [], []>} : vector<8x128xf32>, vector<128x128xf32>, vector<8x128xf32> -> vector<8x128xf32>
    %c0_18 = arith.constant 0 : index
    %c0_19 = arith.constant 0 : index
    %25 = vector.load %arg5[%c0_18, %c0_19] : memref<16x8xf32, #tpu.memory_space<vmem>>, vector<16x8xf32>
    %cst_20 = arith.constant dense<0.000000e+00> : vector<16x128xf32>
    %26 = tpu.matmul %25, %24, %cst_20 {dimension_numbers = #tpu.dot_dimension_numbers<[1], [0], [0], [1], [0, 0, 1, 1], [], []>} : vector<16x8xf32>, vector<8x128xf32>, vector<16x128xf32> -> vector<16x128xf32>
    %c0_21 = arith.constant 0 : index
    %c0_22 = arith.constant 0 : index
    %c0_23 = arith.constant 0 : index
    %27 = vector.load %arg11[%c0_21, %c0_22, %c0_23] : memref<1x16x128xf32, #tpu.memory_space<vmem>>, vector<1x16x128xf32>
    %28 = vector.shape_cast %27 : vector<1x16x128xf32> to vector<16x128xf32>
    %29 = vector.shape_cast %26 : vector<16x128xf32> to vector<1x16x128xf32>
    tpu.vector_store %arg11[%c0_21, %c0_22, %c0_23], %29 {strides = array<i32>} : memref<1x16x128xf32, #tpu.memory_space<vmem>>, vector<1x16x128xf32>,
    %cst_24 = arith.constant 0.000000e+00 : f32
    %30 = vector.broadcast %cst_24 : f32 to vector<64x48xf32>
    %c0_25 = arith.constant 0 : index
    %c0_26 = arith.constant 0 : index
    %c0_27 = arith.constant 0 : index
    %31 = vector.load %arg13[%c0_25, %c0_26, %c0_27] : memref<10x10x16xf32, #tpu.memory_space<vmem>>, vector<8x8x16xf32>
    %32 = vector.shape_cast %31 : vector<8x8x16xf32> to vector<64x16xf32>
    %c0_28 = arith.constant 0 : index
    %c0_29 = arith.constant 0 : index
    %c0_30 = arith.constant 0 : index
    %c0_31 = arith.constant 0 : index
    %33 = vector.load %arg6[%c0_28, %c0_29, %c0_30, %c0_31] : memref<3x3x16x48xf32, #tpu.memory_space<vmem>>, vector<1x1x16x48xf32>
    %34 = vector.shape_cast %33 : vector<1x1x16x48xf32> to vector<16x48xf32>
    %cst_32 = arith.constant dense<0.000000e+00> : vector<64x48xf32>
    %35 = tpu.matmul %32, %34, %cst_32 {dimension_numbers = #tpu.dot_dimension_numbers<[1], [0], [0], [1], [0, 0, 1, 1], [], []>} : vector<64x16xf32>, vector<16x48xf32>, vector<64x48xf32> -> vector<64x48xf32>
    %36 = arith.addf %30, %35 : vector<64x48xf32>
    %c0_33 = arith.constant 0 : index
    %c1_34 = arith.constant 1 : index
    %c0_35 = arith.constant 0 : index
    %37 = vector.load %arg13[%c0_33, %c1_34, %c0_35] : memref<10x10x16xf32, #tpu.memory_space<vmem>>, vector<8x8x16xf32>
    %38 = vector.shape_cast %37 : vector<8x8x16xf32> to vector<64x16xf32>
    %c0_36 = arith.constant 0 : index
    %c1_37 = arith.constant 1 : index
    %c0_38 = arith.constant 0 : index
    %c0_39 = arith.constant 0 : index
    %39 = vector.load %arg6[%c0_36, %c1_37, %c0_38, %c0_39] : memref<3x3x16x48xf32, #tpu.memory_space<vmem>>, vector<1x1x16x48xf32>
    %40 = vector.shape_cast %39 : vector<1x1x16x48xf32> to vector<16x48xf32>
    %cst_40 = arith.constant dense<0.000000e+00> : vector<64x48xf32>
    %41 = tpu.matmul %38, %40, %cst_40 {dimension_numbers = #tpu.dot_dimension_numbers<[1], [0], [0], [1], [0, 0, 1, 1], [], []>} : vector<64x16xf32>, vector<16x48xf32>, vector<64x48xf32> -> vector<64x48xf32>
    %42 = arith.addf %36, %41 : vector<64x48xf32>
    %c0_41 = arith.constant 0 : index
    %c2 = arith.constant 2 : index
    %c0_42 = arith.constant 0 : index
    %43 = vector.load %arg13[%c0_41, %c2, %c0_42] : memref<10x10x16xf32, #tpu.memory_space<vmem>>, vector<8x8x16xf32>
    %44 = vector.shape_cast %43 : vector<8x8x16xf32> to vector<64x16xf32>
    %c0_43 = arith.constant 0 : index
    %c2_44 = arith.constant 2 : index
    %c0_45 = arith.constant 0 : index
    %c0_46 = arith.constant 0 : index
    %45 = vector.load %arg6[%c0_43, %c2_44, %c0_45, %c0_46] : memref<3x3x16x48xf32, #tpu.memory_space<vmem>>, vector<1x1x16x48xf32>
    %46 = vector.shape_cast %45 : vector<1x1x16x48xf32> to vector<16x48xf32>
    %cst_47 = arith.constant dense<0.000000e+00> : vector<64x48xf32>
    %47 = tpu.matmul %44, %46, %cst_47 {dimension_numbers = #tpu.dot_dimension_numbers<[1], [0], [0], [1], [0, 0, 1, 1], [], []>} : vector<64x16xf32>, vector<16x48xf32>, vector<64x48xf32> -> vector<64x48xf32>
    %48 = arith.addf %42, %47 : vector<64x48xf32>
    %c1_48 = arith.constant 1 : index
    %c0_49 = arith.constant 0 : index
    %c0_50 = arith.constant 0 : index
    %49 = vector.load %arg13[%c1_48, %c0_49, %c0_50] : memref<10x10x16xf32, #tpu.memory_space<vmem>>, vector<8x8x16xf32>
    %50 = vector.shape_cast %49 : vector<8x8x16xf32> to vector<64x16xf32>
    %c1_51 = arith.constant 1 : index
    %c0_52 = arith.constant 0 : index
    %c0_53 = arith.constant 0 : index
    %c0_54 = arith.constant 0 : index
    %51 = vector.load %arg6[%c1_51, %c0_52, %c0_53, %c0_54] : memref<3x3x16x48xf32, #tpu.memory_space<vmem>>, vector<1x1x16x48xf32>
    %52 = vector.shape_cast %51 : vector<1x1x16x48xf32> to vector<16x48xf32>
    %cst_55 = arith.constant dense<0.000000e+00> : vector<64x48xf32>
    %53 = tpu.matmul %50, %52, %cst_55 {dimension_numbers = #tpu.dot_dimension_numbers<[1], [0], [0], [1], [0, 0, 1, 1], [], []>} : vector<64x16xf32>, vector<16x48xf32>, vector<64x48xf32> -> vector<64x48xf32>
    %54 = arith.addf %48, %53 : vector<64x48xf32>
    %c1_56 = arith.constant 1 : index
    %c1_57 = arith.constant 1 : index
    %c0_58 = arith.constant 0 : index
    %55 = vector.load %arg13[%c1_56, %c1_57, %c0_58] : memref<10x10x16xf32, #tpu.memory_space<vmem>>, vector<8x8x16xf32>
    %56 = vector.shape_cast %55 : vector<8x8x16xf32> to vector<64x16xf32>
    %c1_59 = arith.constant 1 : index
    %c1_60 = arith.constant 1 : index
    %c0_61 = arith.constant 0 : index
    %c0_62 = arith.constant 0 : index
    %57 = vector.load %arg6[%c1_59, %c1_60, %c0_61, %c0_62] : memref<3x3x16x48xf32, #tpu.memory_space<vmem>>, vector<1x1x16x48xf32>
    %58 = vector.shape_cast %57 : vector<1x1x16x48xf32> to vector<16x48xf32>
    %cst_63 = arith.constant dense<0.000000e+00> : vector<64x48xf32>
    %59 = tpu.matmul %56, %58, %cst_63 {dimension_numbers = #tpu.dot_dimension_numbers<[1], [0], [0], [1], [0, 0, 1, 1], [], []>} : vector<64x16xf32>, vector<16x48xf32>, vector<64x48xf32> -> vector<64x48xf32>
    %60 = arith.addf %54, %59 : vector<64x48xf32>
    %c1_64 = arith.constant 1 : index
    %c2_65 = arith.constant 2 : index
    %c0_66 = arith.constant 0 : index
    %61 = vector.load %arg13[%c1_64, %c2_65, %c0_66] : memref<10x10x16xf32, #tpu.memory_space<vmem>>, vector<8x8x16xf32>
    %62 = vector.shape_cast %61 : vector<8x8x16xf32> to vector<64x16xf32>
    %c1_67 = arith.constant 1 : index
    %c2_68 = arith.constant 2 : index
    %c0_69 = arith.constant 0 : index
    %c0_70 = arith.constant 0 : index
    %63 = vector.load %arg6[%c1_67, %c2_68, %c0_69, %c0_70] : memref<3x3x16x48xf32, #tpu.memory_space<vmem>>, vector<1x1x16x48xf32>
    %64 = vector.shape_cast %63 : vector<1x1x16x48xf32> to vector<16x48xf32>
    %cst_71 = arith.constant dense<0.000000e+00> : vector<64x48xf32>
    %65 = tpu.matmul %62, %64, %cst_71 {dimension_numbers = #tpu.dot_dimension_numbers<[1], [0], [0], [1], [0, 0, 1, 1], [], []>} : vector<64x16xf32>, vector<16x48xf32>, vector<64x48xf32> -> vector<64x48xf32>
    %66 = arith.addf %60, %65 : vector<64x48xf32>
    %c2_72 = arith.constant 2 : index
    %c0_73 = arith.constant 0 : index
    %c0_74 = arith.constant 0 : index
    %67 = vector.load %arg13[%c2_72, %c0_73, %c0_74] : memref<10x10x16xf32, #tpu.memory_space<vmem>>, vector<8x8x16xf32>
    %68 = vector.shape_cast %67 : vector<8x8x16xf32> to vector<64x16xf32>
    %c2_75 = arith.constant 2 : index
    %c0_76 = arith.constant 0 : index
    %c0_77 = arith.constant 0 : index
    %c0_78 = arith.constant 0 : index
    %69 = vector.load %arg6[%c2_75, %c0_76, %c0_77, %c0_78] : memref<3x3x16x48xf32, #tpu.memory_space<vmem>>, vector<1x1x16x48xf32>
    %70 = vector.shape_cast %69 : vector<1x1x16x48xf32> to vector<16x48xf32>
    %cst_79 = arith.constant dense<0.000000e+00> : vector<64x48xf32>
    %71 = tpu.matmul %68, %70, %cst_79 {dimension_numbers = #tpu.dot_dimension_numbers<[1], [0], [0], [1], [0, 0, 1, 1], [], []>} : vector<64x16xf32>, vector<16x48xf32>, vector<64x48xf32> -> vector<64x48xf32>
    %72 = arith.addf %66, %71 : vector<64x48xf32>
    %c2_80 = arith.constant 2 : index
    %c1_81 = arith.constant 1 : index
    %c0_82 = arith.constant 0 : index
    %73 = vector.load %arg13[%c2_80, %c1_81, %c0_82] : memref<10x10x16xf32, #tpu.memory_space<vmem>>, vector<8x8x16xf32>
    %74 = vector.shape_cast %73 : vector<8x8x16xf32> to vector<64x16xf32>
    %c2_83 = arith.constant 2 : index
    %c1_84 = arith.constant 1 : index
    %c0_85 = arith.constant 0 : index
    %c0_86 = arith.constant 0 : index
    %75 = vector.load %arg6[%c2_83, %c1_84, %c0_85, %c0_86] : memref<3x3x16x48xf32, #tpu.memory_space<vmem>>, vector<1x1x16x48xf32>
    %76 = vector.shape_cast %75 : vector<1x1x16x48xf32> to vector<16x48xf32>
    %cst_87 = arith.constant dense<0.000000e+00> : vector<64x48xf32>
    %77 = tpu.matmul %74, %76, %cst_87 {dimension_numbers = #tpu.dot_dimension_numbers<[1], [0], [0], [1], [0, 0, 1, 1], [], []>} : vector<64x16xf32>, vector<16x48xf32>, vector<64x48xf32> -> vector<64x48xf32>
    %78 = arith.addf %72, %77 : vector<64x48xf32>
    %c2_88 = arith.constant 2 : index
    %c2_89 = arith.constant 2 : index
    %c0_90 = arith.constant 0 : index
    %79 = vector.load %arg13[%c2_88, %c2_89, %c0_90] : memref<10x10x16xf32, #tpu.memory_space<vmem>>, vector<8x8x16xf32>
    %80 = vector.shape_cast %79 : vector<8x8x16xf32> to vector<64x16xf32>
    %c2_91 = arith.constant 2 : index
    %c2_92 = arith.constant 2 : index
    %c0_93 = arith.constant 0 : index
    %c0_94 = arith.constant 0 : index
    %81 = vector.load %arg6[%c2_91, %c2_92, %c0_93, %c0_94] : memref<3x3x16x48xf32, #tpu.memory_space<vmem>>, vector<1x1x16x48xf32>
    %82 = vector.shape_cast %81 : vector<1x1x16x48xf32> to vector<16x48xf32>
    %cst_95 = arith.constant dense<0.000000e+00> : vector<64x48xf32>
    %83 = tpu.matmul %80, %82, %cst_95 {dimension_numbers = #tpu.dot_dimension_numbers<[1], [0], [0], [1], [0, 0, 1, 1], [], []>} : vector<64x16xf32>, vector<16x48xf32>, vector<64x48xf32> -> vector<64x48xf32>
    %84 = arith.addf %78, %83 : vector<64x48xf32>
    %c0_96 = arith.constant 0 : index
    %c0_97 = arith.constant 0 : index
    %85 = vector.load %arg7[%c0_96, %c0_97] : memref<1x48xf32, #tpu.memory_space<vmem>>, vector<1x48xf32>
    %86 = vector.broadcast %85 : vector<1x48xf32> to vector<64x48xf32>
    %87 = arith.addf %84, %86 : vector<64x48xf32>
    %cst_98 = arith.constant 0.000000e+00 : f32
    %88 = vector.broadcast %cst_98 : f32 to vector<64x48xf32>
    %89 = arith.maximumf %87, %88 : vector<64x48xf32>
    %c0_99 = arith.constant 0 : index
    %c0_100 = arith.constant 0 : index
    %90 = vector.load %arg8[%c0_99, %c0_100] : memref<48x128xf32, #tpu.memory_space<vmem>>, vector<48x128xf32>
    %cst_101 = arith.constant dense<0.000000e+00> : vector<64x128xf32>
    %91 = tpu.matmul %89, %90, %cst_101 {dimension_numbers = #tpu.dot_dimension_numbers<[1], [0], [0], [1], [0, 0, 1, 1], [], []>} : vector<64x48xf32>, vector<48x128xf32>, vector<64x128xf32> -> vector<64x128xf32>
    %c0_102 = arith.constant 0 : index
    %c0_103 = arith.constant 0 : index
    %92 = vector.load %arg9[%c0_102, %c0_103] : memref<1x128xf32, #tpu.memory_space<vmem>>, vector<1x128xf32>
    %93 = vector.broadcast %92 : vector<1x128xf32> to vector<64x128xf32>
    %94 = arith.addf %91, %93 : vector<64x128xf32>
    %cst_104 = arith.constant 0.000000e+00 : f32
    %95 = vector.broadcast %cst_104 : f32 to vector<64x128xf32>
    %96 = arith.maximumf %94, %95 : vector<64x128xf32>
    %97 = arith.mulf %96, %96 : vector<64x128xf32>
    %c0_105 = arith.constant 0 : index
    %c0_106 = arith.constant 0 : index
    %98 = vector.load %arg10[%c0_105, %c0_106] : memref<128x128xf32, #tpu.memory_space<vmem>>, vector<128x128xf32>
    %cst_107 = arith.constant dense<0.000000e+00> : vector<64x128xf32>
    %99 = tpu.matmul %97, %98, %cst_107 {dimension_numbers = #tpu.dot_dimension_numbers<[1], [0], [0], [1], [0, 0, 1, 1], [], []>} : vector<64x128xf32>, vector<128x128xf32>, vector<64x128xf32> -> vector<64x128xf32>
    %cst_108 = arith.constant 1.000000e-24 : f32
    %100 = vector.broadcast %cst_108 : f32 to vector<64x128xf32>
    %101 = arith.maximumf %99, %100 : vector<64x128xf32>
    %102 = math.rsqrt %101 : vector<64x128xf32>
    %103 = arith.mulf %96, %102 : vector<64x128xf32>
    %c0_109 = arith.constant 0 : index
    %c0_110 = arith.constant 0 : index
    %c0_111 = arith.constant 0 : index
    %104 = vector.load %arg12[%c0_109, %c0_110, %c0_111] : memref<1x64x128xf32, #tpu.memory_space<vmem>>, vector<1x64x128xf32>
    %105 = vector.shape_cast %104 : vector<1x64x128xf32> to vector<64x128xf32>
    %106 = vector.shape_cast %103 : vector<64x128xf32> to vector<1x64x128xf32>
    tpu.vector_store %arg12[%c0_109, %c0_110, %c0_111], %106 {strides = array<i32>} : memref<1x64x128xf32, #tpu.memory_space<vmem>>, vector<1x64x128xf32>,
    return
  }
  func.func @transform_0(%arg0: i32) -> (i32, i32, i32) {
    %c0_i32 = arith.constant 0 : i32
    %c0_i32_0 = arith.constant 0 : i32
    %c0_i32_1 = arith.constant 0 : i32
    return %arg0, %c0_i32, %c0_i32_0 : i32, i32, i32
  }
  func.func @transform_1(%arg0: i32) -> (i32, i32) {
    %c0_i32 = arith.constant 0 : i32
    %c0_i32_0 = arith.constant 0 : i32
    %c0_i32_1 = arith.constant 0 : i32
    return %c0_i32, %c0_i32_0 : i32, i32
  }
  func.func @transform_2(%arg0: i32) -> (i32, i32) {
    %c0_i32 = arith.constant 0 : i32
    %c0_i32_0 = arith.constant 0 : i32
    %c0_i32_1 = arith.constant 0 : i32
    return %c0_i32, %c0_i32_0 : i32, i32
  }
  func.func @transform_3(%arg0: i32) -> (i32, i32) {
    %c0_i32 = arith.constant 0 : i32
    %c0_i32_0 = arith.constant 0 : i32
    %c0_i32_1 = arith.constant 0 : i32
    return %c0_i32, %c0_i32_0 : i32, i32
  }
  func.func @transform_4(%arg0: i32) -> (i32, i32) {
    %c0_i32 = arith.constant 0 : i32
    %c0_i32_0 = arith.constant 0 : i32
    %c0_i32_1 = arith.constant 0 : i32
    return %c0_i32, %c0_i32_0 : i32, i32
  }
  func.func @transform_5(%arg0: i32) -> (i32, i32, i32, i32) {
    %c0_i32 = arith.constant 0 : i32
    %c0_i32_0 = arith.constant 0 : i32
    %c0_i32_1 = arith.constant 0 : i32
    %c0_i32_2 = arith.constant 0 : i32
    %c0_i32_3 = arith.constant 0 : i32
    return %c0_i32, %c0_i32_0, %c0_i32_1, %c0_i32_2 : i32, i32, i32, i32
  }
  func.func @transform_6(%arg0: i32) -> (i32, i32) {
    %c0_i32 = arith.constant 0 : i32
    %c0_i32_0 = arith.constant 0 : i32
    %c0_i32_1 = arith.constant 0 : i32
    return %c0_i32, %c0_i32_0 : i32, i32
  }
  func.func @transform_7(%arg0: i32) -> (i32, i32) {
    %c0_i32 = arith.constant 0 : i32
    %c0_i32_0 = arith.constant 0 : i32
    %c0_i32_1 = arith.constant 0 : i32
    return %c0_i32, %c0_i32_0 : i32, i32
  }
  func.func @transform_8(%arg0: i32) -> (i32, i32) {
    %c0_i32 = arith.constant 0 : i32
    %c0_i32_0 = arith.constant 0 : i32
    %c0_i32_1 = arith.constant 0 : i32
    return %c0_i32, %c0_i32_0 : i32, i32
  }
  func.func @transform_9(%arg0: i32) -> (i32, i32) {
    %c0_i32 = arith.constant 0 : i32
    %c0_i32_0 = arith.constant 0 : i32
    %c0_i32_1 = arith.constant 0 : i32
    return %c0_i32, %c0_i32_0 : i32, i32
  }
  func.func @transform_10(%arg0: i32) -> (i32, i32, i32) {
    %c0_i32 = arith.constant 0 : i32
    %c0_i32_0 = arith.constant 0 : i32
    %c0_i32_1 = arith.constant 0 : i32
    return %arg0, %c0_i32, %c0_i32_0 : i32, i32, i32
  }
  func.func @transform_11(%arg0: i32) -> (i32, i32, i32) {
    %c0_i32 = arith.constant 0 : i32
    %c0_i32_0 = arith.constant 0 : i32
    %c0_i32_1 = arith.constant 0 : i32
    return %arg0, %c0_i32, %c0_i32_0 : i32, i32, i32
  }
}

</mosaic_0001>

<llo_original>
// kernel: fcn_forward.1
$region0: #{fcn_forward.1}
  #allocation0 [shape = 'u32[]', space=smem, size = 0x4, offset = 0x4, fixed_abs, tag = 'smem constant byte address 0x4 - core index']
  #allocation1 [shape = 'u32[144,128]{1,0:T(1,128)}', space=vmem, size = 0x12000, scoped, tag = 'internal scratch']
  #allocation2 [shape = 'f32[10,10,16]{2,1,0:T(8,128)}', space=vmem, size = 0x14000, scoped, tag = 'scratch operand']
  %s0 = inlined_call_operand.vmem [shape: f32[2,256,36], index: 0, kind: input, shape index: {}]
  %s1 = inlined_call_operand.vmem [shape: f32[36,16], index: 1, kind: input, shape index: {}]
  %s2 = inlined_call_operand.vmem [shape: f32[1,16], index: 2, kind: input, shape index: {}]
  %s3 = inlined_call_operand.vmem [shape: f32[128,128], index: 3, kind: input, shape index: {}]
  %s4 = inlined_call_operand.vmem [shape: f32[16,8], index: 4, kind: input, shape index: {}]
  %s5 = inlined_call_operand.vmem [shape: f32[3,3,16,48], index: 5, kind: input, shape index: {}]
  %s6 = inlined_call_operand.vmem [shape: f32[1,48], index: 6, kind: input, shape index: {}]
  %s7 = inlined_call_operand.vmem [shape: f32[48,128], index: 7, kind: input, shape index: {}]
  %s8 = inlined_call_operand.vmem [shape: f32[1,128], index: 8, kind: input, shape index: {}]
  %s9 = inlined_call_operand.vmem [shape: f32[128,128], index: 9, kind: input, shape index: {}]
  %s10 = inlined_call_operand.vmem [shape: f32[2,16,128], index: 10, kind: output, shape index: {0}]
  %s11 = inlined_call_operand.vmem [shape: f32[2,64,128], index: 11, kind: output, shape index: {1}]
  %12 = xla_tuple %s10, %s11
  %s13 = sld [smem:[#allocation0]]
  $region81: #{fcn_forward.1} parent=0
    _
  %s15 = ssub.s32 1, %s13
  %s16 = scalar_select 0, %s15, %s13
  loop: start=0, step=1, limit=4
  $region2: #{fcn_forward.1} parent=0 // loop_pre_header
    _
  $region3: #{fcn_forward.1} parent=0 // loop_header
    %s18 = sphi 0, %s22
    %p19 = scmp.ge.s32.totalorder %s18, 4
    %s28 = sphi 0, %s30
    %s31 = sphi 0, %s28
    %s32 = sphi 0, %s31
    %s48 = sphi 0, %s32
    %s52 = sphi 0, %s52
    %s54 = sphi 0, %s52
    %s55 = sphi 0, %s54
    %s69 = sphi 0, %s55
    %s73 = sphi 0, %s73
    %s75 = sphi 0, %s73
    %s76 = sphi 0, %s75
    %s90 = sphi 0, %s76
    %s94 = sphi 0, %s94
    %s96 = sphi 0, %s94
    %s97 = sphi 0, %s96
    %s111 = sphi 0, %s97
    %s115 = sphi 0, %s115
    %s117 = sphi 0, %s115
    %s118 = sphi 0, %s117
    %s132 = sphi 0, %s118
    %s136 = sphi 0, %s136
    %s138 = sphi 0, %s136
    %s139 = sphi 0, %s138
    %s153 = sphi 0, %s139
    %s157 = sphi 0, %s157
    %s159 = sphi 0, %s157
    %s160 = sphi 0, %s159
    %s174 = sphi 0, %s160
    %s178 = sphi 0, %s178
    %s180 = sphi 0, %s178
    %s181 = sphi 0, %s180
    %s195 = sphi 0, %s181
    %s199 = sphi 0, %s199
    %s201 = sphi 0, %s199
    %s202 = sphi 0, %s201
    %s216 = sphi 0, %s202
    %s220 = sphi 0, %s220
    %s222 = sphi 0, %s220
    %s223 = sphi 0, %s222
    %s237 = sphi 0, %s223
    %s243 = sphi 0, %s245
    %s246 = sphi 0, %s243
    %s247 = sphi 0, %s246
    %s263 = sphi 0, %s247
    %s269 = sphi 0, %s271
    %s272 = sphi 0, %s269
    %s273 = sphi 0, %s272
    %s289 = sphi 0, %s273
  $region4: #{fcn_forward.1} parent=0 // loop_header_branch
    %21 = sbr.rel (%p19) target = $region8
  $region5: #{fcn_forward.1} parent=0 // loop_body
    %s23 = ssub.s32 %s18, 1
    %s24 = ssub.s32 %s18, 2
    %s25 = sadd.s32 %s18, 1
    %s26 = ssub.s32 %s18, %s25
    %p27 = scmp.eq.s32.totalorder %s26, 0
    %s29 = sadd.s32 %s28, 1
    %s30 = scalar_select %p27, %s28, %s29
    %p33 = pneg %p27
    %p34 = scmp.eq.s32.totalorder %s18, 1
    %p35 = por %p33, %p34
    %p36 = scmp.ne.s32.totalorder %s28, %s31
    %p37 = scmp.eq.s32.totalorder %s18, 0
    %p38 = por %p36, %p37
    %p39 = scmp.ne.s32.totalorder %s28, %s31
    %p40 = scmp.eq.s32.totalorder %s23, 1
    %p41 = por %p39, %p40
    %p42 = scmp.ne.s32.totalorder %s31, %s32
    %p43 = scmp.eq.s32.totalorder %s23, 0
    %p44 = por %p42, %p43
    %p45 = scmp.ne.s32.totalorder %s31, %s32
    %p46 = scmp.eq.s32.totalorder %s24, 1
    %p47 = por %p45, %p46
    %p49 = scmp.ne.s32.totalorder %s32, %s48
    %p50 = scmp.eq.s32.totalorder %s24, 0
    %p51 = por %p49, %p50
    %s53 = sadd.s32 %s52, 1
    %p56 = scmp.eq.s32.totalorder %s18, 1
    %p57 = scmp.ne.s32.totalorder %s52, %s54
    %p58 = scmp.eq.s32.totalorder %s18, 0
    %p59 = por %p57, %p58
    %p60 = scmp.ne.s32.totalorder %s52, %s54
    %p61 = scmp.eq.s32.totalorder %s23, 1
    %p62 = por %p60, %p61
    %p63 = scmp.ne.s32.totalorder %s54, %s55
    %p64 = scmp.eq.s32.totalorder %s23, 0
    %p65 = por %p63, %p64
    %p66 = scmp.ne.s32.totalorder %s54, %s55
    %p67 = scmp.eq.s32.totalorder %s24, 1
    %p68 = por %p66, %p67
    %p70 = scmp.ne.s32.totalorder %s55, %s69
    %p71 = scmp.eq.s32.totalorder %s24, 0
    %p72 = por %p70, %p71
    %s74 = sadd.s32 %s73, 1
    %p77 = scmp.eq.s32.totalorder %s18, 1
    %p78 = scmp.ne.s32.totalorder %s73, %s75
    %p79 = scmp.eq.s32.totalorder %s18, 0
    %p80 = por %p78, %p79
    %p81 = scmp.ne.s32.totalorder %s73, %s75
    %p82 = scmp.eq.s32.totalorder %s23, 1
    %p83 = por %p81, %p82
    %p84 = scmp.ne.s32.totalorder %s75, %s76
    %p85 = scmp.eq.s32.totalorder %s23, 0
    %p86 = por %p84, %p85
    %p87 = scmp.ne.s32.totalorder %s75, %s76
    %p88 = scmp.eq.s32.totalorder %s24, 1
    %p89 = por %p87, %p88
    %p91 = scmp.ne.s32.totalorder %s76, %s90
    %p92 = scmp.eq.s32.totalorder %s24, 0
    %p93 = por %p91, %p92
    %s95 = sadd.s32 %s94, 1
    %p98 = scmp.eq.s32.totalorder %s18, 1
    %p99 = scmp.ne.s32.totalorder %s94, %s96
    %p100 = scmp.eq.s32.totalorder %s18, 0
    %p101 = por %p99, %p100
    %p102 = scmp.ne.s32.totalorder %s94, %s96
    %p103 = scmp.eq.s32.totalorder %s23, 1
    %p104 = por %p102, %p103
    %p105 = scmp.ne.s32.totalorder %s96, %s97
    %p106 = scmp.eq.s32.totalorder %s23, 0
    %p107 = por %p105, %p106
    %p108 = scmp.ne.s32.totalorder %s96, %s97
    %p109 = scmp.eq.s32.totalorder %s24, 1
    %p110 = por %p108, %p109
    %p112 = scmp.ne.s32.totalorder %s97, %s111
    %p113 = scmp.eq.s32.totalorder %s24, 0
    %p114 = por %p112, %p113
    %s116 = sadd.s32 %s115, 1
    %p119 = scmp.eq.s32.totalorder %s18, 1
    %p120 = scmp.ne.s32.totalorder %s115, %s117
    %p121 = scmp.eq.s32.totalorder %s18, 0
    %p122 = por %p120, %p121
    %p123 = scmp.ne.s32.totalorder %s115, %s117
    %p124 = scmp.eq.s32.totalorder %s23, 1
    %p125 = por %p123, %p124
    %p126 = scmp.ne.s32.totalorder %s117, %s118
    %p127 = scmp.eq.s32.totalorder %s23, 0
    %p128 = por %p126, %p127
    %p129 = scmp.ne.s32.totalorder %s117, %s118
    %p130 = scmp.eq.s32.totalorder %s24, 1
    %p131 = por %p129, %p130
    %p133 = scmp.ne.s32.totalorder %s118, %s132
    %p134 = scmp.eq.s32.totalorder %s24, 0
    %p135 = por %p133, %p134
    %s137 = sadd.s32 %s136, 1
    %p140 = scmp.eq.s32.totalorder %s18, 1
    %p141 = scmp.ne.s32.totalorder %s136, %s138
    %p142 = scmp.eq.s32.totalorder %s18, 0
    %p143 = por %p141, %p142
    %p144 = scmp.ne.s32.totalorder %s136, %s138
    %p145 = scmp.eq.s32.totalorder %s23, 1
    %p146 = por %p144, %p145
    %p147 = scmp.ne.s32.totalorder %s138, %s139
    %p148 = scmp.eq.s32.totalorder %s23, 0
    %p149 = por %p147, %p148
    %p150 = scmp.ne.s32.totalorder %s138, %s139
    %p151 = scmp.eq.s32.totalorder %s24, 1
    %p152 = por %p150, %p151
    %p154 = scmp.ne.s32.totalorder %s139, %s153
    %p155 = scmp.eq.s32.totalorder %s24, 0
    %p156 = por %p154, %p155
    %s158 = sadd.s32 %s157, 1
    %p161 = scmp.eq.s32.totalorder %s18, 1
    %p162 = scmp.ne.s32.totalorder %s157, %s159
    %p163 = scmp.eq.s32.totalorder %s18, 0
    %p164 = por %p162, %p163
    %p165 = scmp.ne.s32.totalorder %s157, %s159
    %p166 = scmp.eq.s32.totalorder %s23, 1
    %p167 = por %p165, %p166
    %p168 = scmp.ne.s32.totalorder %s159, %s160
    %p169 = scmp.eq.s32.totalorder %s23, 0
    %p170 = por %p168, %p169
    %p171 = scmp.ne.s32.totalorder %s159, %s160
    %p172 = scmp.eq.s32.totalorder %s24, 1
    %p173 = por %p171, %p172
    %p175 = scmp.ne.s32.totalorder %s160, %s174
    %p176 = scmp.eq.s32.totalorder %s24, 0
    %p177 = por %p175, %p176
    %s179 = sadd.s32 %s178, 1
    %p182 = scmp.eq.s32.totalorder %s18, 1
    %p183 = scmp.ne.s32.totalorder %s178, %s180
    %p184 = scmp.eq.s32.totalorder %s18, 0
    %p185 = por %p183, %p184
    %p186 = scmp.ne.s32.totalorder %s178, %s180
    %p187 = scmp.eq.s32.totalorder %s23, 1
    %p188 = por %p186, %p187
    %p189 = scmp.ne.s32.totalorder %s180, %s181
    %p190 = scmp.eq.s32.totalorder %s23, 0
    %p191 = por %p189, %p190
    %p192 = scmp.ne.s32.totalorder %s180, %s181
    %p193 = scmp.eq.s32.totalorder %s24, 1
    %p194 = por %p192, %p193
    %p196 = scmp.ne.s32.totalorder %s181, %s195
    %p197 = scmp.eq.s32.totalorder %s24, 0
    %p198 = por %p196, %p197
    %s200 = sadd.s32 %s199, 1
    %p203 = scmp.eq.s32.totalorder %s18, 1
    %p204 = scmp.ne.s32.totalorder %s199, %s201
    %p205 = scmp.eq.s32.totalorder %s18, 0
    %p206 = por %p204, %p205
    %p207 = scmp.ne.s32.totalorder %s199, %s201
    %p208 = scmp.eq.s32.totalorder %s23, 1
    %p209 = por %p207, %p208
    %p210 = scmp.ne.s32.totalorder %s201, %s202
    %p211 = scmp.eq.s32.totalorder %s23, 0
    %p212 = por %p210, %p211
    %p213 = scmp.ne.s32.totalorder %s201, %s202
    %p214 = scmp.eq.s32.totalorder %s24, 1
    %p215 = por %p213, %p214
    %p217 = scmp.ne.s32.totalorder %s202, %s216
    %p218 = scmp.eq.s32.totalorder %s24, 0
    %p219 = por %p217, %p218
    %s221 = sadd.s32 %s220, 1
    %p224 = scmp.eq.s32.totalorder %s18, 1
    %p225 = scmp.ne.s32.totalorder %s220, %s222
    %p226 = scmp.eq.s32.totalorder %s18, 0
    %p227 = por %p225, %p226
    %p228 = scmp.ne.s32.totalorder %s220, %s222
    %p229 = scmp.eq.s32.totalorder %s23, 1
    %p230 = por %p228, %p229
    %p231 = scmp.ne.s32.totalorder %s222, %s223
    %p232 = scmp.eq.s32.totalorder %s23, 0
    %p233 = por %p231, %p232
    %p234 = scmp.ne.s32.totalorder %s222, %s223
    %p235 = scmp.eq.s32.totalorder %s24, 1
    %p236 = por %p234, %p235
    %p238 = scmp.ne.s32.totalorder %s223, %s237
    %p239 = scmp.eq.s32.totalorder %s24, 0
    %p240 = por %p238, %p239
    %s241 = ssub.s32 %s18, %s25
    %p242 = scmp.eq.s32.totalorder %s241, 0
    %s244 = sadd.s32 %s243, 1
    %s245 = scalar_select %p242, %s243, %s244
    %p248 = pneg %p242
    %p249 = scmp.eq.s32.totalorder %s18, 1
    %p250 = por %p248, %p249
    %p251 = scmp.ne.s32.totalorder %s243, %s246
    %p252 = scmp.eq.s32.totalorder %s18, 0
    %p253 = por %p251, %p252
    %p254 = scmp.ne.s32.totalorder %s243, %s246
    %p255 = scmp.eq.s32.totalorder %s23, 1
    %p256 = por %p254, %p255
    %p257 = scmp.ne.s32.totalorder %s246, %s247
    %p258 = scmp.eq.s32.totalorder %s23, 0
    %p259 = por %p257, %p258
    %p260 = scmp.ne.s32.totalorder %s246, %s247
    %p261 = scmp.eq.s32.totalorder %s24, 1
    %p262 = por %p260, %p261
    %p264 = scmp.ne.s32.totalorder %s247, %s263
    %p265 = scmp.eq.s32.totalorder %s24, 0
    %p266 = por %p264, %p265
    %s267 = ssub.s32 %s18, %s25
    %p268 = scmp.eq.s32.totalorder %s267, 0
    %s270 = sadd.s32 %s269, 1
    %s271 = scalar_select %p268, %s269, %s270
    %p274 = pneg %p268
    %p275 = scmp.eq.s32.totalorder %s18, 1
    %p276 = por %p274, %p275
    %p277 = scmp.ne.s32.totalorder %s269, %s272
    %p278 = scmp.eq.s32.totalorder %s18, 0
    %p279 = por %p277, %p278
    %p280 = scmp.ne.s32.totalorder %s269, %s272
    %p281 = scmp.eq.s32.totalorder %s23, 1
    %p282 = por %p280, %p281
    %p283 = scmp.ne.s32.totalorder %s272, %s273
    %p284 = scmp.eq.s32.totalorder %s23, 0
    %p285 = por %p283, %p284
    %p286 = scmp.ne.s32.totalorder %s272, %s273
    %p287 = scmp.eq.s32.totalorder %s24, 1
    %p288 = por %p286, %p287
    %p290 = scmp.ne.s32.totalorder %s273, %s289
    %p291 = scmp.eq.s32.totalorder %s24, 0
    %p292 = por %p290, %p291
    %p293 = scmp.le.s32.totalorder 1, %s18
    %p294 = scmp.lt.s32.totalorder %s18, 3
    %p295 = pnand %p293, %p294
    %p296 = pneg %p295
    // Predicated region
    $region9: #{fcn_forward.1} parent=5 // pred_check
      _
    $region10: #{fcn_forward.1} parent=5 // pred_check_branch
      %298 = sbr.rel (%p295) target = $region12
    $region11: #{fcn_forward.1} parent=5 // pred_region
      %s299 = ssub.s32 %s18, 1
      // Predicated region
      $region13: #{fcn_forward.1} parent=11 // pred_check
        %p300 = pneg %p65
      $region14: #{fcn_forward.1} parent=11 // pred_check_branch
        %302 = sbr.rel (%p300) target = $region16
      $region15: #{fcn_forward.1} parent=11 // pred_region
        _
      $region16: #{fcn_forward.1} parent=11 // pred_fallthru
        _
      // Predicated region
      $region17: #{fcn_forward.1} parent=11 // pred_check
        %p303 = pneg %p86
      $region18: #{fcn_forward.1} parent=11 // pred_check_branch
        %305 = sbr.rel (%p303) target = $region20
      $region19: #{fcn_forward.1} parent=11 // pred_region
        _
      $region20: #{fcn_forward.1} parent=11 // pred_fallthru
        _
      // Predicated region
      $region21: #{fcn_forward.1} parent=11 // pred_check
        %p306 = pneg %p107
      $region22: #{fcn_forward.1} parent=11 // pred_check_branch
        %308 = sbr.rel (%p306) target = $region24
      $region23: #{fcn_forward.1} parent=11 // pred_region
        _
      $region24: #{fcn_forward.1} parent=11 // pred_fallthru
        _
      // Predicated region
      $region25: #{fcn_forward.1} parent=11 // pred_check
        %p309 = pneg %p128
      $region26: #{fcn_forward.1} parent=11 // pred_check_branch
        %311 = sbr.rel (%p309) target = $region28
      $region27: #{fcn_forward.1} parent=11 // pred_region
        _
      $region28: #{fcn_forward.1} parent=11 // pred_fallthru
        _
      // Predicated region
      $region29: #{fcn_forward.1} parent=11 // pred_check
        %p312 = pneg %p149
      $region30: #{fcn_forward.1} parent=11 // pred_check_branch
        %314 = sbr.rel (%p312) target = $region32
      $region31: #{fcn_forward.1} parent=11 // pred_region
        _
      $region32: #{fcn_forward.1} parent=11 // pred_fallthru
        _
      // Predicated region
      $region33: #{fcn_forward.1} parent=11 // pred_check
        %p315 = pneg %p170
      $region34: #{fcn_forward.1} parent=11 // pred_check_branch
        %317 = sbr.rel (%p315) target = $region36
      $region35: #{fcn_forward.1} parent=11 // pred_region
        _
      $region36: #{fcn_forward.1} parent=11 // pred_fallthru
        _
      // Predicated region
      $region37: #{fcn_forward.1} parent=11 // pred_check
        %p318 = pneg %p191
      $region38: #{fcn_forward.1} parent=11 // pred_check_branch
        %320 = sbr.rel (%p318) target = $region40
      $region39: #{fcn_forward.1} parent=11 // pred_region
        _
      $region40: #{fcn_forward.1} parent=11 // pred_fallthru
        _
      // Predicated region
      $region41: #{fcn_forward.1} parent=11 // pred_check
        %p321 = pneg %p212
      $region42: #{fcn_forward.1} parent=11 // pred_check_branch
        %323 = sbr.rel (%p321) target = $region44
      $region43: #{fcn_forward.1} parent=11 // pred_region
        _
      $region44: #{fcn_forward.1} parent=11 // pred_fallthru
        _
      // Predicated region
      $region45: #{fcn_forward.1} parent=11 // pred_check
        %p324 = pneg %p233
      $region46: #{fcn_forward.1} parent=11 // pred_check_branch
        %326 = sbr.rel (%p324) target = $region48
      $region47: #{fcn_forward.1} parent=11 // pred_region
        _
      $region48: #{fcn_forward.1} parent=11 // pred_fallthru
        _
    $region12: #{fcn_forward.1} parent=5 // pred_fallthru
      _
    %p327 = scmp.lt.s32.totalorder %s18, 2
    // Predicated region
    $region49: #{fcn_forward.1} parent=5 // pred_check
      %p328 = pneg %p327
    $region50: #{fcn_forward.1} parent=5 // pred_check_branch
      %330 = sbr.rel (%p328) target = $region52
    $region51: #{fcn_forward.1} parent=5 // pred_region
      // Predicated region
      $region53: #{fcn_forward.1} parent=51 // pred_check
        %p331 = pneg %p38
      $region54: #{fcn_forward.1} parent=51 // pred_check_branch
        %333 = sbr.rel (%p331) target = $region56
      $region55: #{fcn_forward.1} parent=51 // pred_region
        %p334 = scmp.lt.s32.totalorder %s18, 1
        %s335 = scalar_select %p334, %s18, 1
        %s336 = smul.addr %s335, 32
        %s337 = smul.addr %s336, 8
        %s338 = scalar_lea.vmem %s0, %s337
      $region56: #{fcn_forward.1} parent=51 // pred_fallthru
        _
    $region52: #{fcn_forward.1} parent=5 // pred_fallthru
      _
    %p339 = scmp.le.s32.totalorder 1, %s18
    %p340 = scmp.lt.s32.totalorder %s18, 3
    %p341 = pnand %p339, %p340
    %p342 = pneg %p341
    // Predicated region
    $region57: #{fcn_forward.1} parent=5 // pred_check
      _
    $region58: #{fcn_forward.1} parent=5 // pred_check_branch
      %344 = sbr.rel (%p341) target = $region60
    $region59: #{fcn_forward.1} parent=5 // pred_region
      %s345 = ssub.s32 %s18, 1
      %p346 = scmp.lt.s32.totalorder %s23, 1
      %s347 = scalar_select %p346, %s23, 1
      %s348 = smul.addr %s347, 32
      %s349 = smul.addr %s348, 8
      %s350 = scalar_lea.vmem %s0, %s349
      %p351 = pneg %p44
      %p352 = pneg %p41
      %p353 = pneg %p65
      %p354 = pneg %p62
      %p355 = pneg %p86
      %p356 = pneg %p83
      %p357 = pneg %p107
      %p358 = pneg %p104
      %p359 = pneg %p128
      %p360 = pneg %p125
      %p361 = pneg %p149
      %p362 = pneg %p146
      %p363 = pneg %p170
      %p364 = pneg %p167
      %p365 = pneg %p191
      %p366 = pneg %p188
      %p367 = pneg %p212
      %p368 = pneg %p209
      %p369 = pneg %p233
      %p370 = pneg %p230
      %p371 = pneg %p259
      %p372 = pneg %p256
      %p373 = scmp.lt.s32.totalorder %s23, 1
      %s374 = scalar_select %p373, %s23, 1
      %s375 = smul.addr %s374, 2
      %s376 = smul.addr %s375, 8
      %s377 = scalar_lea.vmem %s10, %s376
      %p378 = pneg %p285
      %p379 = pneg %p282
      %p380 = scmp.lt.s32.totalorder %s23, 1
      %s381 = scalar_select %p380, %s23, 1
      %s382 = smul.addr %s381, 8
      %s383 = smul.addr %s382, 8
      %s384 = scalar_lea.vmem %s11, %s383
      %p385 = scmp.lt.s32.totalorder %s23, 1
      %s386 = scalar_select %p385, %s23, 1
      %s387 = smul.addr %s386, 32
      %s388 = smul.addr %s387, 8
      %s389 = scalar_lea.vmem %s0, %s388
      %p390 = scmp.lt.s32.totalorder %s23, 1
      %s391 = scalar_select %p390, %s23, 1
      %s392 = smul.addr %s391, 2
      %s393 = smul.addr %s392, 8
      %s394 = scalar_lea.vmem %s10, %s393
      %p395 = scmp.lt.s32.totalorder %s23, 1
      %s396 = scalar_select %p395, %s23, 1
      %s397 = smul.addr %s396, 8
      %s398 = smul.addr %s397, 8
      %s399 = scalar_lea.vmem %s11, %s398
      %v400 = vld [vmem:[%s389] sm:$0xff]
      %v401 = vld [vmem:[%s389 + $0x8] sm:$0xff]
      %v402 = vld [vmem:[%s389 + $0x10] sm:$0xff]
      %v403 = vld [vmem:[%s389 + $0x18] sm:$0xff]
      %v404 = vld [vmem:[%s389 + $0x20] sm:$0xff]
      %v405 = vld [vmem:[%s389 + $0x28] sm:$0xff]
      %v406 = vld [vmem:[%s389 + $0x30] sm:$0xff]
      %v407 = vld [vmem:[%s389 + $0x38] sm:$0xff]
      %v408 = vld [vmem:[%s389 + $0x40] sm:$0xff]
      %v409 = vld [vmem:[%s389 + $0x48] sm:$0xff]
      %v410 = vld [vmem:[%s389 + $0x50] sm:$0xff]
      %v411 = vld [vmem:[%s389 + $0x58] sm:$0xff]
      %v412 = vld [vmem:[%s389 + $0x60] sm:$0xff]
      %v413 = vld [vmem:[%s389 + $0x68] sm:$0xff]
      %v414 = vld [vmem:[%s389 + $0x70] sm:$0xff]
      %v415 = vld [vmem:[%s389 + $0x78] sm:$0xff]
      %v416 = vld [vmem:[%s389 + $0x80] sm:$0xff]
      %v417 = vld [vmem:[%s389 + $0x88] sm:$0xff]
      %v418 = vld [vmem:[%s389 + $0x90] sm:$0xff]
      %v419 = vld [vmem:[%s389 + $0x98] sm:$0xff]
      %v420 = vld [vmem:[%s389 + $0xa0] sm:$0xff]
      %v421 = vld [vmem:[%s389 + $0xa8] sm:$0xff]
      %v422 = vld [vmem:[%s389 + $0xb0] sm:$0xff]
      %v423 = vld [vmem:[%s389 + $0xb8] sm:$0xff]
      %v424 = vld [vmem:[%s389 + $0xc0] sm:$0xff]
      %v425 = vld [vmem:[%s389 + $0xc8] sm:$0xff]
      %v426 = vld [vmem:[%s389 + $0xd0] sm:$0xff]
      %v427 = vld [vmem:[%s389 + $0xd8] sm:$0xff]
      %v428 = vld [vmem:[%s389 + $0xe0] sm:$0xff]
      %v429 = vld [vmem:[%s389 + $0xe8] sm:$0xff]
      %v430 = vld [vmem:[%s389 + $0xf0] sm:$0xff]
      %v431 = vld [vmem:[%s389 + $0xf8] sm:$0xff]
      %v432 = vld [vmem:[%s1] sm:$0xff]
      %v433 = vld [vmem:[%s1 + $0x8] sm:$0xff]
      %v434 = vld [vmem:[%s1 + $0x10] sm:$0xff]
      %v435 = vld [vmem:[%s1 + $0x18] sm:$0xff]
      %v436 = vld [vmem:[%s1 + $0x20] sm:$0xf]
      %v437 = vld [vmem:[%s2] sm:$0x1]
      %v439 = vlaneseq
      %v440 = vshrl.u32 %v439, 7
      %v441 = vsub.s32 0, %v440
      %v442 = vrot.slane %v437, %v441
      %vm444 = vcmask 293888
      %v446 = vsel %vm444, %v400, 0
      %v449 = vsel %vm444, %v401, 0
      %v452 = vsel %vm444, %v402, 0
      %v455 = vsel %vm444, %v403, 0
      %v458 = vsel %vm444, %v404, 0
      %v461 = vsel %vm444, %v405, 0
      %v464 = vsel %vm444, %v406, 0
      %v467 = vsel %vm444, %v407, 0
      %v470 = vsel %vm444, %v408, 0
      %v473 = vsel %vm444, %v409, 0
      %v476 = vsel %vm444, %v410, 0
      %v479 = vsel %vm444, %v411, 0
      %v482 = vsel %vm444, %v412, 0
      %v485 = vsel %vm444, %v413, 0
      %v488 = vsel %vm444, %v414, 0
      %v491 = vsel %vm444, %v415, 0
      %v494 = vsel %vm444, %v416, 0
      %v497 = vsel %vm444, %v417, 0
      %v500 = vsel %vm444, %v418, 0
      %v503 = vsel %vm444, %v419, 0
      %v506 = vsel %vm444, %v420, 0
      %v509 = vsel %vm444, %v421, 0
      %v512 = vsel %vm444, %v422, 0
      %v515 = vsel %vm444, %v423, 0
      %v518 = vsel %vm444, %v424, 0
      %v521 = vsel %vm444, %v425, 0
      %v524 = vsel %vm444, %v426, 0
      %v527 = vsel %vm444, %v427, 0
      %v530 = vsel %vm444, %v428, 0
      %v533 = vsel %vm444, %v429, 0
      %v536 = vsel %vm444, %v430, 0
      %v539 = vsel %vm444, %v431, 0
      %vm541 = vcmask 1043456
      %v543 = vsel %vm541, %v436, 0
      %545 = vmatprep.subr.mxu0 0.0
      %546 = vmatpush1.msra.mxu0 0.0
      %547 = vmatprep.subr.mxu0 0.0
      %548 = vmatpush1.msra.mxu0 0.0
      %549 = vmatprep.subr.mxu0 0.0
      %550 = vmatpush1.msra.mxu0 0.0
      %551 = vmatprep.subr.mxu0 0.0
      %552 = vmatpush1.msra.mxu0 0.0
      %553 = vmatprep.subr.mxu0 0.0
      %554 = vmatpush1.msra.mxu0 0.0
      %555 = vmatprep.subr.mxu0 0.0
      %556 = vmatpush1.msra.mxu0 0.0
      %557 = vmatprep.subr.mxu0 0.0
      %558 = vmatpush1.msra.mxu0 0.0
      %559 = vmatprep.subr.mxu0 0.0
      %560 = vmatpush1.msra.mxu0 0.0
      %561 = vmatprep.subr.mxu0 0.0
      %562 = vmatpush1.msra.mxu0 0.0
      %563 = vmatprep.subr.mxu0 0.0
      %564 = vmatpush1.msra.mxu0 0.0
      %565 = vmatprep.subr.mxu0 0.0
      %566 = vmatpush1.msra.mxu0 0.0
      %567 = vmatprep.subr.mxu0 0.0
      %568 = vmatpush1.msra.mxu0 %v543
      %569 = vmatprep.subr.mxu0 0.0
      %570 = vmatpush1.msra.mxu0 %v435
      %571 = vmatprep.subr.mxu0 0.0
      %572 = vmatpush1.msra.mxu0 %v434
      %573 = vmatprep.subr.mxu0 0.0
      %574 = vmatpush1.msra.mxu0 %v433
      %575 = vmatprep.subr.mxu0 0.0
      %576 = vmatpush1.msra.mxu0 %v432
      %577 = vmatprep.subr.mxu0 0.0
      %578 = vmatpush2.msra.mxu0 0.0
      %579 = vmatprep.subr.mxu0 0.0
      %580 = vmatpush2.msra.mxu0 0.0
      %581 = vmatprep.subr.mxu0 0.0
      %582 = vmatpush2.msra.mxu0 0.0
      %583 = vmatprep.subr.mxu0 0.0
      %584 = vmatpush2.msra.mxu0 0.0
      %585 = vmatprep.subr.mxu0 0.0
      %586 = vmatpush2.msra.mxu0 0.0
      %587 = vmatprep.subr.mxu0 0.0
      %588 = vmatpush2.msra.mxu0 0.0
      %589 = vmatprep.subr.mxu0 0.0
      %590 = vmatpush2.msra.mxu0 0.0
      %591 = vmatprep.subr.mxu0 0.0
      %592 = vmatpush2.msra.mxu0 0.0
      %593 = vmatprep.subr.mxu0 0.0
      %594 = vmatpush2.msra.mxu0 0.0
      %595 = vmatprep.subr.mxu0 0.0
      %596 = vmatpush2.msra.mxu0 0.0
      %597 = vmatprep.subr.mxu0 0.0
      %598 = vmatpush2.msra.mxu0 0.0
      %599 = vmatprep.subr.mxu0 0.0
      %600 = vmatpush2.msra.mxu0 0.0
      %601 = vmatprep.subr.mxu0 0.0
      %602 = vmatpush2.msra.mxu0 0.0
      %603 = vmatprep.subr.mxu0 0.0
      %604 = vmatpush2.msra.mxu0 0.0
      %605 = vmatprep.subr.mxu0 0.0
      %606 = vmatpush2.msra.mxu0 0.0
      %607 = vmatprep.subr.mxu0 0.0
      %608 = vmatpush2.msra.mxu0 0.0
      %609 = vmatprep.mubr.f32.mxu0 0.0
      %610 = vmatmul.mubr.f32.gmra.mxu0 %v446
      %v611 = vpop.f32.mrf.mxu0
      %v612 = vadd.f32 %v442, %v611
      %v613 = vpop.f32.mrf.mxu0
      %614 = vmatprep.mubr.f32.mxu0 0.0
      %615 = vmatmul.mubr.f32.gmra.mxu0 %v449
      %v616 = vpop.f32.mrf.mxu0
      %v617 = vadd.f32 %v442, %v616
      %v618 = vpop.f32.mrf.mxu0
      %619 = vmatprep.mubr.f32.mxu0 0.0
      %620 = vmatmul.mubr.f32.gmra.mxu0 %v452
      %v621 = vpop.f32.mrf.mxu0
      %v622 = vadd.f32 %v442, %v621
      %v623 = vpop.f32.mrf.mxu0
      %624 = vmatprep.mubr.f32.mxu0 0.0
      %625 = vmatmul.mubr.f32.gmra.mxu0 %v455
      %v626 = vpop.f32.mrf.mxu0
      %v627 = vadd.f32 %v442, %v626
      %v628 = vpop.f32.mrf.mxu0
      %629 = vmatprep.mubr.f32.mxu0 0.0
      %630 = vmatmul.mubr.f32.gmra.mxu0 %v458
      %v631 = vpop.f32.mrf.mxu0
      %v632 = vadd.f32 %v442, %v631
      %v633 = vpop.f32.mrf.mxu0
      %634 = vmatprep.mubr.f32.mxu0 0.0
      %635 = vmatmul.mubr.f32.gmra.mxu0 %v461
      %v636 = vpop.f32.mrf.mxu0
      %v637 = vadd.f32 %v442, %v636
      %v638 = vpop.f32.mrf.mxu0
      %639 = vmatprep.mubr.f32.mxu0 0.0
      %640 = vmatmul.mubr.f32.gmra.mxu0 %v464
      %v641 = vpop.f32.mrf.mxu0
      %v642 = vadd.f32 %v442, %v641
      %v643 = vpop.f32.mrf.mxu0
      %644 = vmatprep.mubr.f32.mxu0 0.0
      %645 = vmatmul.mubr.f32.gmra.mxu0 %v467
      %v646 = vpop.f32.mrf.mxu0
      %v647 = vadd.f32 %v442, %v646
      %v648 = vpop.f32.mrf.mxu0
      %649 = vmatprep.mubr.f32.mxu0 0.0
      %650 = vmatmul.mubr.f32.gmra.mxu0 %v470
      %v651 = vpop.f32.mrf.mxu0
      %v652 = vadd.f32 %v442, %v651
      %v653 = vpop.f32.mrf.mxu0
      %654 = vmatprep.mubr.f32.mxu0 0.0
      %655 = vmatmul.mubr.f32.gmra.mxu0 %v473
      %v656 = vpop.f32.mrf.mxu0
      %v657 = vadd.f32 %v442, %v656
      %v658 = vpop.f32.mrf.mxu0
      %659 = vmatprep.mubr.f32.mxu0 0.0
      %660 = vmatmul.mubr.f32.gmra.mxu0 %v476
      %v661 = vpop.f32.mrf.mxu0
      %v662 = vadd.f32 %v442, %v661
      %v663 = vpop.f32.mrf.mxu0
      %664 = vmatprep.mubr.f32.mxu0 0.0
      %665 = vmatmul.mubr.f32.gmra.mxu0 %v479
      %v666 = vpop.f32.mrf.mxu0
      %v667 = vadd.f32 %v442, %v666
      %v668 = vpop.f32.mrf.mxu0
      %669 = vmatprep.mubr.f32.mxu0 0.0
      %670 = vmatmul.mubr.f32.gmra.mxu0 %v482
      %v671 = vpop.f32.mrf.mxu0
      %v672 = vadd.f32 %v442, %v671
      %v673 = vpop.f32.mrf.mxu0
      %674 = vmatprep.mubr.f32.mxu0 0.0
      %675 = vmatmul.mubr.f32.gmra.mxu0 %v485
      %v676 = vpop.f32.mrf.mxu0
      %v677 = vadd.f32 %v442, %v676
      %v678 = vpop.f32.mrf.mxu0
      %679 = vmatprep.mubr.f32.mxu0 0.0
      %680 = vmatmul.mubr.f32.gmra.mxu0 %v488
      %v681 = vpop.f32.mrf.mxu0
      %v682 = vadd.f32 %v442, %v681
      %v683 = vpop.f32.mrf.mxu0
      %684 = vmatprep.mubr.f32.mxu0 0.0
      %685 = vmatmul.mubr.f32.gmra.mxu0 %v491
      %v686 = vpop.f32.mrf.mxu0
      %v687 = vadd.f32 %v442, %v686
      %v688 = vpop.f32.mrf.mxu0
      %689 = vmatprep.mubr.f32.mxu0 0.0
      %690 = vmatmul.mubr.f32.gmra.mxu0 %v494
      %v691 = vpop.f32.mrf.mxu0
      %v692 = vadd.f32 %v442, %v691
      %v693 = vpop.f32.mrf.mxu0
      %694 = vmatprep.mubr.f32.mxu0 0.0
      %695 = vmatmul.mubr.f32.gmra.mxu0 %v497
      %v696 = vpop.f32.mrf.mxu0
      %v697 = vadd.f32 %v442, %v696
      %v698 = vpop.f32.mrf.mxu0
      %699 = vmatprep.mubr.f32.mxu0 0.0
      %700 = vmatmul.mubr.f32.gmra.mxu0 %v500
      %v701 = vpop.f32.mrf.mxu0
      %v702 = vadd.f32 %v442, %v701
      %v703 = vpop.f32.mrf.mxu0
      %704 = vmatprep.mubr.f32.mxu0 0.0
      %705 = vmatmul.mubr.f32.gmra.mxu0 %v503
      %v706 = vpop.f32.mrf.mxu0
      %v707 = vadd.f32 %v442, %v706
      %v708 = vpop.f32.mrf.mxu0
      %709 = vmatprep.mubr.f32.mxu0 0.0
      %710 = vmatmul.mubr.f32.gmra.mxu0 %v506
      %v711 = vpop.f32.mrf.mxu0
      %v712 = vadd.f32 %v442, %v711
      %v713 = vpop.f32.mrf.mxu0
      %714 = vmatprep.mubr.f32.mxu0 0.0
      %715 = vmatmul.mubr.f32.gmra.mxu0 %v509
      %v716 = vpop.f32.mrf.mxu0
      %v717 = vadd.f32 %v442, %v716
      %v718 = vpop.f32.mrf.mxu0
      %719 = vmatprep.mubr.f32.mxu0 0.0
      %720 = vmatmul.mubr.f32.gmra.mxu0 %v512
      %v721 = vpop.f32.mrf.mxu0
      %v722 = vadd.f32 %v442, %v721
      %v723 = vpop.f32.mrf.mxu0
      %724 = vmatprep.mubr.f32.mxu0 0.0
      %725 = vmatmul.mubr.f32.gmra.mxu0 %v515
      %v726 = vpop.f32.mrf.mxu0
      %v727 = vadd.f32 %v442, %v726
      %v728 = vpop.f32.mrf.mxu0
      %729 = vmatprep.mubr.f32.mxu0 0.0
      %730 = vmatmul.mubr.f32.gmra.mxu0 %v518
      %v731 = vpop.f32.mrf.mxu0
      %v732 = vadd.f32 %v442, %v731
      %v733 = vpop.f32.mrf.mxu0
      %734 = vmatprep.mubr.f32.mxu0 0.0
      %735 = vmatmul.mubr.f32.gmra.mxu0 %v521
      %v736 = vpop.f32.mrf.mxu0
      %v737 = vadd.f32 %v442, %v736
      %v738 = vpop.f32.mrf.mxu0
      %739 = vmatprep.mubr.f32.mxu0 0.0
      %740 = vmatmul.mubr.f32.gmra.mxu0 %v524
      %v741 = vpop.f32.mrf.mxu0
      %v742 = vadd.f32 %v442, %v741
      %v743 = vpop.f32.mrf.mxu0
      %744 = vmatprep.mubr.f32.mxu0 0.0
      %745 = vmatmul.mubr.f32.gmra.mxu0 %v527
      %v746 = vpop.f32.mrf.mxu0
      %v747 = vadd.f32 %v442, %v746
      %v748 = vpop.f32.mrf.mxu0
      %749 = vmatprep.mubr.f32.mxu0 0.0
      %750 = vmatmul.mubr.f32.gmra.mxu0 %v530
      %v751 = vpop.f32.mrf.mxu0
      %v752 = vadd.f32 %v442, %v751
      %v753 = vpop.f32.mrf.mxu0
      %754 = vmatprep.mubr.f32.mxu0 0.0
      %755 = vmatmul.mubr.f32.gmra.mxu0 %v533
      %v756 = vpop.f32.mrf.mxu0
      %v757 = vadd.f32 %v442, %v756
      %v758 = vpop.f32.mrf.mxu0
      %759 = vmatprep.mubr.f32.mxu0 0.0
      %760 = vmatmul.mubr.f32.gmra.mxu0 %v536
      %v761 = vpop.f32.mrf.mxu0
      %v762 = vadd.f32 %v442, %v761
      %v763 = vpop.f32.mrf.mxu0
      %764 = vmatprep.mubr.f32.mxu0 0.0
      %765 = vmatmul.mubr.f32.gmra.mxu0 %v539
      %v766 = vpop.f32.mrf.mxu0
      %v767 = vadd.f32 %v442, %v766
      %v768 = vpop.f32.mrf.mxu0
      %769 = vdwg.mxu0
      %v770 = vmax.f32 %v612, 0.0
      %v771 = vmax.f32 %v617, 0.0
      %v772 = vmax.f32 %v622, 0.0
      %v773 = vmax.f32 %v627, 0.0
      %v774 = vmax.f32 %v632, 0.0
      %v775 = vmax.f32 %v637, 0.0
      %v776 = vmax.f32 %v642, 0.0
      %v777 = vmax.f32 %v647, 0.0
      %v778 = vmax.f32 %v652, 0.0
      %v779 = vmax.f32 %v657, 0.0
      %v780 = vmax.f32 %v662, 0.0
      %v781 = vmax.f32 %v667, 0.0
      %v782 = vmax.f32 %v672, 0.0
      %v783 = vmax.f32 %v677, 0.0
      %v784 = vmax.f32 %v682, 0.0
      %v785 = vmax.f32 %v687, 0.0
      %v786 = vmax.f32 %v692, 0.0
      %v787 = vmax.f32 %v697, 0.0
      %v788 = vmax.f32 %v702, 0.0
      %v789 = vmax.f32 %v707, 0.0
      %v790 = vmax.f32 %v712, 0.0
      %v791 = vmax.f32 %v717, 0.0
      %v792 = vmax.f32 %v722, 0.0
      %v793 = vmax.f32 %v727, 0.0
      %v794 = vmax.f32 %v732, 0.0
      %v795 = vmax.f32 %v737, 0.0
      %v796 = vmax.f32 %v742, 0.0
      %v797 = vmax.f32 %v747, 0.0
      %v798 = vmax.f32 %v752, 0.0
      %v799 = vmax.f32 %v757, 0.0
      %v800 = vmax.f32 %v762, 0.0
      %v801 = vmax.f32 %v767, 0.0
      %v834 = vcombine.high %v770, %v770
      %v836 = vunpack.c.l.s4 1983009808
      %v837 = vunpack.c.0.s8 %v836
      %v838 = vlaneseq
      %v839 = vshrl.u32 %v838, 7
      %v840 = vsub.s32 %v837, %v839
      %v841 = vrot.slane %v770, %v840
      %v843 = vunpack.c.l.s4 1983009808
      %v844 = vunpack.c.0.s8 %v843
      %v845 = vlaneseq
      %v846 = vshrl.u32 %v845, 7
      %v847 = vsub.s32 %v844, %v846
      %v848 = vrot.slane %v834, %v847
      %v849 = vcombine.high %v841, %v841
      %v850 = vcombine.high %v848, %v848
      %v851 = vcombine.high %v771, %v771
      %v853 = vunpack.c.l.s4 1983009808
      %v854 = vunpack.c.0.s8 %v853
      %v855 = vlaneseq
      %v856 = vshrl.u32 %v855, 7
      %v857 = vsub.s32 %v854, %v856
      %v858 = vrot.slane %v771, %v857
      %v860 = vunpack.c.l.s4 1983009808
      %v861 = vunpack.c.0.s8 %v860
      %v862 = vlaneseq
      %v863 = vshrl.u32 %v862, 7
      %v864 = vsub.s32 %v861, %v863
      %v865 = vrot.slane %v851, %v864
      %v866 = vcombine.high %v858, %v858
      %v867 = vcombine.high %v865, %v865
      %v868 = vcombine.high %v772, %v772
      %v870 = vunpack.c.l.s4 1983009808
      %v871 = vunpack.c.0.s8 %v870
      %v872 = vlaneseq
      %v873 = vshrl.u32 %v872, 7
      %v874 = vsub.s32 %v871, %v873
      %v875 = vrot.slane %v772, %v874
      %v877 = vunpack.c.l.s4 1983009808
      %v878 = vunpack.c.0.s8 %v877
      %v879 = vlaneseq
      %v880 = vshrl.u32 %v879, 7
      %v881 = vsub.s32 %v878, %v880
      %v882 = vrot.slane %v868, %v881
      %v883 = vcombine.high %v875, %v875
      %v884 = vcombine.high %v882, %v882
      %v885 = vcombine.high %v773, %v773
      %v887 = vunpack.c.l.s4 1983009808
      %v888 = vunpack.c.0.s8 %v887
      %v889 = vlaneseq
      %v890 = vshrl.u32 %v889, 7
      %v891 = vsub.s32 %v888, %v890
      %v892 = vrot.slane %v773, %v891
      %v894 = vunpack.c.l.s4 1983009808
      %v895 = vunpack.c.0.s8 %v894
      %v896 = vlaneseq
      %v897 = vshrl.u32 %v896, 7
      %v898 = vsub.s32 %v895, %v897
      %v899 = vrot.slane %v885, %v898
      %v900 = vcombine.high %v892, %v892
      %v901 = vcombine.high %v899, %v899
      %v902 = vcombine.high %v774, %v774
      %v904 = vunpack.c.l.s4 1983009808
      %v905 = vunpack.c.0.s8 %v904
      %v906 = vlaneseq
      %v907 = vshrl.u32 %v906, 7
      %v908 = vsub.s32 %v905, %v907
      %v909 = vrot.slane %v774, %v908
      %v911 = vunpack.c.l.s4 1983009808
      %v912 = vunpack.c.0.s8 %v911
      %v913 = vlaneseq
      %v914 = vshrl.u32 %v913, 7
      %v915 = vsub.s32 %v912, %v914
      %v916 = vrot.slane %v902, %v915
      %v917 = vcombine.high %v909, %v909
      %v918 = vcombine.high %v916, %v916
      %v919 = vcombine.high %v775, %v775
      %v921 = vunpack.c.l.s4 1983009808
      %v922 = vunpack.c.0.s8 %v921
      %v923 = vlaneseq
      %v924 = vshrl.u32 %v923, 7
      %v925 = vsub.s32 %v922, %v924
      %v926 = vrot.slane %v775, %v925
      %v928 = vunpack.c.l.s4 1983009808
      %v929 = vunpack.c.0.s8 %v928
      %v930 = vlaneseq
      %v931 = vshrl.u32 %v930, 7
      %v932 = vsub.s32 %v929, %v931
      %v933 = vrot.slane %v919, %v932
      %v934 = vcombine.high %v926, %v926
      %v935 = vcombine.high %v933, %v933
      %v936 = vcombine.high %v776, %v776
      %v938 = vunpack.c.l.s4 1983009808
      %v939 = vunpack.c.0.s8 %v938
      %v940 = vlaneseq
      %v941 = vshrl.u32 %v940, 7
      %v942 = vsub.s32 %v939, %v941
      %v943 = vrot.slane %v776, %v942
      %v945 = vunpack.c.l.s4 1983009808
      %v946 = vunpack.c.0.s8 %v945
      %v947 = vlaneseq
      %v948 = vshrl.u32 %v947, 7
      %v949 = vsub.s32 %v946, %v948
      %v950 = vrot.slane %v936, %v949
      %v951 = vcombine.high %v943, %v943
      %v952 = vcombine.high %v950, %v950
      %v953 = vcombine.high %v777, %v777
      %v955 = vunpack.c.l.s4 1983009808
      %v956 = vunpack.c.0.s8 %v955
      %v957 = vlaneseq
      %v958 = vshrl.u32 %v957, 7
      %v959 = vsub.s32 %v956, %v958
      %v960 = vrot.slane %v777, %v959
      %v962 = vunpack.c.l.s4 1983009808
      %v963 = vunpack.c.0.s8 %v962
      %v964 = vlaneseq
      %v965 = vshrl.u32 %v964, 7
      %v966 = vsub.s32 %v963, %v965
      %v967 = vrot.slane %v953, %v966
      %v968 = vcombine.high %v960, %v960
      %v969 = vcombine.high %v967, %v967
      %v970 = vcombine.high %v778, %v778
      %v972 = vunpack.c.l.s4 1983009808
      %v973 = vunpack.c.0.s8 %v972
      %v974 = vlaneseq
      %v975 = vshrl.u32 %v974, 7
      %v976 = vsub.s32 %v973, %v975
      %v977 = vrot.slane %v778, %v976
      %v979 = vunpack.c.l.s4 1983009808
      %v980 = vunpack.c.0.s8 %v979
      %v981 = vlaneseq
      %v982 = vshrl.u32 %v981, 7
      %v983 = vsub.s32 %v980, %v982
      %v984 = vrot.slane %v970, %v983
      %v985 = vcombine.high %v977, %v977
      %v986 = vcombine.high %v984, %v984
      %v987 = vcombine.high %v779, %v779
      %v989 = vunpack.c.l.s4 1983009808
      %v990 = vunpack.c.0.s8 %v989
      %v991 = vlaneseq
      %v992 = vshrl.u32 %v991, 7
      %v993 = vsub.s32 %v990, %v992
      %v994 = vrot.slane %v779, %v993
      %v996 = vunpack.c.l.s4 1983009808
      %v997 = vunpack.c.0.s8 %v996
      %v998 = vlaneseq
      %v999 = vshrl.u32 %v998, 7
      %v1000 = vsub.s32 %v997, %v999
      %v1001 = vrot.slane %v987, %v1000
      %v1002 = vcombine.high %v994, %v994
      %v1003 = vcombine.high %v1001, %v1001
      %v1004 = vcombine.high %v780, %v780
      %v1006 = vunpack.c.l.s4 1983009808
      %v1007 = vunpack.c.0.s8 %v1006
      %v1008 = vlaneseq
      %v1009 = vshrl.u32 %v1008, 7
      %v1010 = vsub.s32 %v1007, %v1009
      %v1011 = vrot.slane %v780, %v1010
      %v1013 = vunpack.c.l.s4 1983009808
      %v1014 = vunpack.c.0.s8 %v1013
      %v1015 = vlaneseq
      %v1016 = vshrl.u32 %v1015, 7
      %v1017 = vsub.s32 %v1014, %v1016
      %v1018 = vrot.slane %v1004, %v1017
      %v1019 = vcombine.high %v1011, %v1011
      %v1020 = vcombine.high %v1018, %v1018
      %v1021 = vcombine.high %v781, %v781
      %v1023 = vunpack.c.l.s4 1983009808
      %v1024 = vunpack.c.0.s8 %v1023
      %v1025 = vlaneseq
      %v1026 = vshrl.u32 %v1025, 7
      %v1027 = vsub.s32 %v1024, %v1026
      %v1028 = vrot.slane %v781, %v1027
      %v1030 = vunpack.c.l.s4 1983009808
      %v1031 = vunpack.c.0.s8 %v1030
      %v1032 = vlaneseq
      %v1033 = vshrl.u32 %v1032, 7
      %v1034 = vsub.s32 %v1031, %v1033
      %v1035 = vrot.slane %v1021, %v1034
      %v1036 = vcombine.high %v1028, %v1028
      %v1037 = vcombine.high %v1035, %v1035
      %v1038 = vcombine.high %v782, %v782
      %v1040 = vunpack.c.l.s4 1983009808
      %v1041 = vunpack.c.0.s8 %v1040
      %v1042 = vlaneseq
      %v1043 = vshrl.u32 %v1042, 7
      %v1044 = vsub.s32 %v1041, %v1043
      %v1045 = vrot.slane %v782, %v1044
      %v1047 = vunpack.c.l.s4 1983009808
      %v1048 = vunpack.c.0.s8 %v1047
      %v1049 = vlaneseq
      %v1050 = vshrl.u32 %v1049, 7
      %v1051 = vsub.s32 %v1048, %v1050
      %v1052 = vrot.slane %v1038, %v1051
      %v1053 = vcombine.high %v1045, %v1045
      %v1054 = vcombine.high %v1052, %v1052
      %v1055 = vcombine.high %v783, %v783
      %v1057 = vunpack.c.l.s4 1983009808
      %v1058 = vunpack.c.0.s8 %v1057
      %v1059 = vlaneseq
      %v1060 = vshrl.u32 %v1059, 7
      %v1061 = vsub.s32 %v1058, %v1060
      %v1062 = vrot.slane %v783, %v1061
      %v1064 = vunpack.c.l.s4 1983009808
      %v1065 = vunpack.c.0.s8 %v1064
      %v1066 = vlaneseq
      %v1067 = vshrl.u32 %v1066, 7
      %v1068 = vsub.s32 %v1065, %v1067
      %v1069 = vrot.slane %v1055, %v1068
      %v1070 = vcombine.high %v1062, %v1062
      %v1071 = vcombine.high %v1069, %v1069
      %v1072 = vcombine.high %v784, %v784
      %v1074 = vunpack.c.l.s4 1983009808
      %v1075 = vunpack.c.0.s8 %v1074
      %v1076 = vlaneseq
      %v1077 = vshrl.u32 %v1076, 7
      %v1078 = vsub.s32 %v1075, %v1077
      %v1079 = vrot.slane %v784, %v1078
      %v1081 = vunpack.c.l.s4 1983009808
      %v1082 = vunpack.c.0.s8 %v1081
      %v1083 = vlaneseq
      %v1084 = vshrl.u32 %v1083, 7
      %v1085 = vsub.s32 %v1082, %v1084
      %v1086 = vrot.slane %v1072, %v1085
      %v1087 = vcombine.high %v1079, %v1079
      %v1088 = vcombine.high %v1086, %v1086
      %v1089 = vcombine.high %v785, %v785
      %v1091 = vunpack.c.l.s4 1983009808
      %v1092 = vunpack.c.0.s8 %v1091
      %v1093 = vlaneseq
      %v1094 = vshrl.u32 %v1093, 7
      %v1095 = vsub.s32 %v1092, %v1094
      %v1096 = vrot.slane %v785, %v1095
      %v1098 = vunpack.c.l.s4 1983009808
      %v1099 = vunpack.c.0.s8 %v1098
      %v1100 = vlaneseq
      %v1101 = vshrl.u32 %v1100, 7
      %v1102 = vsub.s32 %v1099, %v1101
      %v1103 = vrot.slane %v1089, %v1102
      %v1104 = vcombine.high %v1096, %v1096
      %v1105 = vcombine.high %v1103, %v1103
      %v1106 = vcombine.high %v786, %v786
      %v1108 = vunpack.c.l.s4 1983009808
      %v1109 = vunpack.c.0.s8 %v1108
      %v1110 = vlaneseq
      %v1111 = vshrl.u32 %v1110, 7
      %v1112 = vsub.s32 %v1109, %v1111
      %v1113 = vrot.slane %v786, %v1112
      %v1115 = vunpack.c.l.s4 1983009808
      %v1116 = vunpack.c.0.s8 %v1115
      %v1117 = vlaneseq
      %v1118 = vshrl.u32 %v1117, 7
      %v1119 = vsub.s32 %v1116, %v1118
      %v1120 = vrot.slane %v1106, %v1119
      %v1121 = vcombine.high %v1113, %v1113
      %v1122 = vcombine.high %v1120, %v1120
      %v1123 = vcombine.high %v787, %v787
      %v1125 = vunpack.c.l.s4 1983009808
      %v1126 = vunpack.c.0.s8 %v1125
      %v1127 = vlaneseq
      %v1128 = vshrl.u32 %v1127, 7
      %v1129 = vsub.s32 %v1126, %v1128
      %v1130 = vrot.slane %v787, %v1129
      %v1132 = vunpack.c.l.s4 1983009808
      %v1133 = vunpack.c.0.s8 %v1132
      %v1134 = vlaneseq
      %v1135 = vshrl.u32 %v1134, 7
      %v1136 = vsub.s32 %v1133, %v1135
      %v1137 = vrot.slane %v1123, %v1136
      %v1138 = vcombine.high %v1130, %v1130
      %v1139 = vcombine.high %v1137, %v1137
      %v1140 = vcombine.high %v788, %v788
      %v1142 = vunpack.c.l.s4 1983009808
      %v1143 = vunpack.c.0.s8 %v1142
      %v1144 = vlaneseq
      %v1145 = vshrl.u32 %v1144, 7
      %v1146 = vsub.s32 %v1143, %v1145
      %v1147 = vrot.slane %v788, %v1146
      %v1149 = vunpack.c.l.s4 1983009808
      %v1150 = vunpack.c.0.s8 %v1149
      %v1151 = vlaneseq
      %v1152 = vshrl.u32 %v1151, 7
      %v1153 = vsub.s32 %v1150, %v1152
      %v1154 = vrot.slane %v1140, %v1153
      %v1155 = vcombine.high %v1147, %v1147
      %v1156 = vcombine.high %v1154, %v1154
      %v1157 = vcombine.high %v789, %v789
      %v1159 = vunpack.c.l.s4 1983009808
      %v1160 = vunpack.c.0.s8 %v1159
      %v1161 = vlaneseq
      %v1162 = vshrl.u32 %v1161, 7
      %v1163 = vsub.s32 %v1160, %v1162
      %v1164 = vrot.slane %v789, %v1163
      %v1166 = vunpack.c.l.s4 1983009808
      %v1167 = vunpack.c.0.s8 %v1166
      %v1168 = vlaneseq
      %v1169 = vshrl.u32 %v1168, 7
      %v1170 = vsub.s32 %v1167, %v1169
      %v1171 = vrot.slane %v1157, %v1170
      %v1172 = vcombine.high %v1164, %v1164
      %v1173 = vcombine.high %v1171, %v1171
      %v1174 = vcombine.high %v790, %v790
      %v1176 = vunpack.c.l.s4 1983009808
      %v1177 = vunpack.c.0.s8 %v1176
      %v1178 = vlaneseq
      %v1179 = vshrl.u32 %v1178, 7
      %v1180 = vsub.s32 %v1177, %v1179
      %v1181 = vrot.slane %v790, %v1180
      %v1183 = vunpack.c.l.s4 1983009808
      %v1184 = vunpack.c.0.s8 %v1183
      %v1185 = vlaneseq
      %v1186 = vshrl.u32 %v1185, 7
      %v1187 = vsub.s32 %v1184, %v1186
      %v1188 = vrot.slane %v1174, %v1187
      %v1189 = vcombine.high %v1181, %v1181
      %v1190 = vcombine.high %v1188, %v1188
      %v1191 = vcombine.high %v791, %v791
      %v1193 = vunpack.c.l.s4 1983009808
      %v1194 = vunpack.c.0.s8 %v1193
      %v1195 = vlaneseq
      %v1196 = vshrl.u32 %v1195, 7
      %v1197 = vsub.s32 %v1194, %v1196
      %v1198 = vrot.slane %v791, %v1197
      %v1200 = vunpack.c.l.s4 1983009808
      %v1201 = vunpack.c.0.s8 %v1200
      %v1202 = vlaneseq
      %v1203 = vshrl.u32 %v1202, 7
      %v1204 = vsub.s32 %v1201, %v1203
      %v1205 = vrot.slane %v1191, %v1204
      %v1206 = vcombine.high %v1198, %v1198
      %v1207 = vcombine.high %v1205, %v1205
      %v1208 = vcombine.high %v792, %v792
      %v1210 = vunpack.c.l.s4 1983009808
      %v1211 = vunpack.c.0.s8 %v1210
      %v1212 = vlaneseq
      %v1213 = vshrl.u32 %v1212, 7
      %v1214 = vsub.s32 %v1211, %v1213
      %v1215 = vrot.slane %v792, %v1214
      %v1217 = vunpack.c.l.s4 1983009808
      %v1218 = vunpack.c.0.s8 %v1217
      %v1219 = vlaneseq
      %v1220 = vshrl.u32 %v1219, 7
      %v1221 = vsub.s32 %v1218, %v1220
      %v1222 = vrot.slane %v1208, %v1221
      %v1223 = vcombine.high %v1215, %v1215
      %v1224 = vcombine.high %v1222, %v1222
      %v1225 = vcombine.high %v793, %v793
      %v1227 = vunpack.c.l.s4 1983009808
      %v1228 = vunpack.c.0.s8 %v1227
      %v1229 = vlaneseq
      %v1230 = vshrl.u32 %v1229, 7
      %v1231 = vsub.s32 %v1228, %v1230
      %v1232 = vrot.slane %v793, %v1231
      %v1234 = vunpack.c.l.s4 1983009808
      %v1235 = vunpack.c.0.s8 %v1234
      %v1236 = vlaneseq
      %v1237 = vshrl.u32 %v1236, 7
      %v1238 = vsub.s32 %v1235, %v1237
      %v1239 = vrot.slane %v1225, %v1238
      %v1240 = vcombine.high %v1232, %v1232
      %v1241 = vcombine.high %v1239, %v1239
      %v1242 = vcombine.high %v794, %v794
      %v1244 = vunpack.c.l.s4 1983009808
      %v1245 = vunpack.c.0.s8 %v1244
      %v1246 = vlaneseq
      %v1247 = vshrl.u32 %v1246, 7
      %v1248 = vsub.s32 %v1245, %v1247
      %v1249 = vrot.slane %v794, %v1248
      %v1251 = vunpack.c.l.s4 1983009808
      %v1252 = vunpack.c.0.s8 %v1251
      %v1253 = vlaneseq
      %v1254 = vshrl.u32 %v1253, 7
      %v1255 = vsub.s32 %v1252, %v1254
      %v1256 = vrot.slane %v1242, %v1255
      %v1257 = vcombine.high %v1249, %v1249
      %v1258 = vcombine.high %v1256, %v1256
      %v1259 = vcombine.high %v795, %v795
      %v1261 = vunpack.c.l.s4 1983009808
      %v1262 = vunpack.c.0.s8 %v1261
      %v1263 = vlaneseq
      %v1264 = vshrl.u32 %v1263, 7
      %v1265 = vsub.s32 %v1262, %v1264
      %v1266 = vrot.slane %v795, %v1265
      %v1268 = vunpack.c.l.s4 1983009808
      %v1269 = vunpack.c.0.s8 %v1268
      %v1270 = vlaneseq
      %v1271 = vshrl.u32 %v1270, 7
      %v1272 = vsub.s32 %v1269, %v1271
      %v1273 = vrot.slane %v1259, %v1272
      %v1274 = vcombine.high %v1266, %v1266
      %v1275 = vcombine.high %v1273, %v1273
      %v1276 = vcombine.high %v796, %v796
      %v1278 = vunpack.c.l.s4 1983009808
      %v1279 = vunpack.c.0.s8 %v1278
      %v1280 = vlaneseq
      %v1281 = vshrl.u32 %v1280, 7
      %v1282 = vsub.s32 %v1279, %v1281
      %v1283 = vrot.slane %v796, %v1282
      %v1285 = vunpack.c.l.s4 1983009808
      %v1286 = vunpack.c.0.s8 %v1285
      %v1287 = vlaneseq
      %v1288 = vshrl.u32 %v1287, 7
      %v1289 = vsub.s32 %v1286, %v1288
      %v1290 = vrot.slane %v1276, %v1289
      %v1291 = vcombine.high %v1283, %v1283
      %v1292 = vcombine.high %v1290, %v1290
      %v1293 = vcombine.high %v797, %v797
      %v1295 = vunpack.c.l.s4 1983009808
      %v1296 = vunpack.c.0.s8 %v1295
      %v1297 = vlaneseq
      %v1298 = vshrl.u32 %v1297, 7
      %v1299 = vsub.s32 %v1296, %v1298
      %v1300 = vrot.slane %v797, %v1299
      %v1302 = vunpack.c.l.s4 1983009808
      %v1303 = vunpack.c.0.s8 %v1302
      %v1304 = vlaneseq
      %v1305 = vshrl.u32 %v1304, 7
      %v1306 = vsub.s32 %v1303, %v1305
      %v1307 = vrot.slane %v1293, %v1306
      %v1308 = vcombine.high %v1300, %v1300
      %v1309 = vcombine.high %v1307, %v1307
      %v1310 = vcombine.high %v798, %v798
      %v1312 = vunpack.c.l.s4 1983009808
      %v1313 = vunpack.c.0.s8 %v1312
      %v1314 = vlaneseq
      %v1315 = vshrl.u32 %v1314, 7
      %v1316 = vsub.s32 %v1313, %v1315
      %v1317 = vrot.slane %v798, %v1316
      %v1319 = vunpack.c.l.s4 1983009808
      %v1320 = vunpack.c.0.s8 %v1319
      %v1321 = vlaneseq
      %v1322 = vshrl.u32 %v1321, 7
      %v1323 = vsub.s32 %v1320, %v1322
      %v1324 = vrot.slane %v1310, %v1323
      %v1325 = vcombine.high %v1317, %v1317
      %v1326 = vcombine.high %v1324, %v1324
      %v1327 = vcombine.high %v799, %v799
      %v1329 = vunpack.c.l.s4 1983009808
      %v1330 = vunpack.c.0.s8 %v1329
      %v1331 = vlaneseq
      %v1332 = vshrl.u32 %v1331, 7
      %v1333 = vsub.s32 %v1330, %v1332
      %v1334 = vrot.slane %v799, %v1333
      %v1336 = vunpack.c.l.s4 1983009808
      %v1337 = vunpack.c.0.s8 %v1336
      %v1338 = vlaneseq
      %v1339 = vshrl.u32 %v1338, 7
      %v1340 = vsub.s32 %v1337, %v1339
      %v1341 = vrot.slane %v1327, %v1340
      %v1342 = vcombine.high %v1334, %v1334
      %v1343 = vcombine.high %v1341, %v1341
      %v1344 = vcombine.high %v800, %v800
      %v1346 = vunpack.c.l.s4 1983009808
      %v1347 = vunpack.c.0.s8 %v1346
      %v1348 = vlaneseq
      %v1349 = vshrl.u32 %v1348, 7
      %v1350 = vsub.s32 %v1347, %v1349
      %v1351 = vrot.slane %v800, %v1350
      %v1353 = vunpack.c.l.s4 1983009808
      %v1354 = vunpack.c.0.s8 %v1353
      %v1355 = vlaneseq
      %v1356 = vshrl.u32 %v1355, 7
      %v1357 = vsub.s32 %v1354, %v1356
      %v1358 = vrot.slane %v1344, %v1357
      %v1359 = vcombine.high %v1351, %v1351
      %v1360 = vcombine.high %v1358, %v1358
      %v1361 = vcombine.high %v801, %v801
      %v1363 = vunpack.c.l.s4 1983009808
      %v1364 = vunpack.c.0.s8 %v1363
      %v1365 = vlaneseq
      %v1366 = vshrl.u32 %v1365, 7
      %v1367 = vsub.s32 %v1364, %v1366
      %v1368 = vrot.slane %v801, %v1367
      %v1370 = vunpack.c.l.s4 1983009808
      %v1371 = vunpack.c.0.s8 %v1370
      %v1372 = vlaneseq
      %v1373 = vshrl.u32 %v1372, 7
      %v1374 = vsub.s32 %v1371, %v1373
      %v1375 = vrot.slane %v1361, %v1374
      %v1376 = vcombine.high %v1368, %v1368
      %v1377 = vcombine.high %v1375, %v1375
      %vm1506 = vcmask 123904
      %v1507 = vsel %vm1506, %v841, 0.0
      %v1508 = vrot.slane %v1507, 4
      %v1509 = vadd.f32 %v1507, %v1508
      %v1510 = vrot.slane %v1509, 2
      %v1511 = vadd.f32 %v1509, %v1510
      %v1512 = vrot.slane %v1511, 1
      %v1513 = vadd.f32 %v1511, %v1512
      %v1514 = vsel %vm1506, %v849, 0.0
      %v1515 = vrot.slane %v1514, 4
      %v1516 = vadd.f32 %v1514, %v1515
      %v1517 = vrot.slane %v1516, 2
      %v1518 = vadd.f32 %v1516, %v1517
      %v1519 = vrot.slane %v1518, 1
      %v1520 = vadd.f32 %v1518, %v1519
      %v1521 = vsel %vm1506, %v848, 0.0
      %v1522 = vrot.slane %v1521, 4
      %v1523 = vadd.f32 %v1521, %v1522
      %v1524 = vrot.slane %v1523, 2
      %v1525 = vadd.f32 %v1523, %v1524
      %v1526 = vrot.slane %v1525, 1
      %v1527 = vadd.f32 %v1525, %v1526
      %v1528 = vsel %vm1506, %v850, 0.0
      %v1529 = vrot.slane %v1528, 4
      %v1530 = vadd.f32 %v1528, %v1529
      %v1531 = vrot.slane %v1530, 2
      %v1532 = vadd.f32 %v1530, %v1531
      %v1533 = vrot.slane %v1532, 1
      %v1534 = vadd.f32 %v1532, %v1533
      %v1535 = vsel %vm1506, %v858, 0.0
      %v1536 = vrot.slane %v1535, 4
      %v1537 = vadd.f32 %v1535, %v1536
      %v1538 = vrot.slane %v1537, 2
      %v1539 = vadd.f32 %v1537, %v1538
      %v1540 = vrot.slane %v1539, 1
      %v1541 = vadd.f32 %v1539, %v1540
      %v1542 = vsel %vm1506, %v866, 0.0
      %v1543 = vrot.slane %v1542, 4
      %v1544 = vadd.f32 %v1542, %v1543
      %v1545 = vrot.slane %v1544, 2
      %v1546 = vadd.f32 %v1544, %v1545
      %v1547 = vrot.slane %v1546, 1
      %v1548 = vadd.f32 %v1546, %v1547
      %v1549 = vsel %vm1506, %v865, 0.0
      %v1550 = vrot.slane %v1549, 4
      %v1551 = vadd.f32 %v1549, %v1550
      %v1552 = vrot.slane %v1551, 2
      %v1553 = vadd.f32 %v1551, %v1552
      %v1554 = vrot.slane %v1553, 1
      %v1555 = vadd.f32 %v1553, %v1554
      %v1556 = vsel %vm1506, %v867, 0.0
      %v1557 = vrot.slane %v1556, 4
      %v1558 = vadd.f32 %v1556, %v1557
      %v1559 = vrot.slane %v1558, 2
      %v1560 = vadd.f32 %v1558, %v1559
      %v1561 = vrot.slane %v1560, 1
      %v1562 = vadd.f32 %v1560, %v1561
      %v1563 = vsel %vm1506, %v875, 0.0
      %v1564 = vrot.slane %v1563, 4
      %v1565 = vadd.f32 %v1563, %v1564
      %v1566 = vrot.slane %v1565, 2
      %v1567 = vadd.f32 %v1565, %v1566
      %v1568 = vrot.slane %v1567, 1
      %v1569 = vadd.f32 %v1567, %v1568
      %v1570 = vsel %vm1506, %v883, 0.0
      %v1571 = vrot.slane %v1570, 4
      %v1572 = vadd.f32 %v1570, %v1571
      %v1573 = vrot.slane %v1572, 2
      %v1574 = vadd.f32 %v1572, %v1573
      %v1575 = vrot.slane %v1574, 1
      %v1576 = vadd.f32 %v1574, %v1575
      %v1577 = vsel %vm1506, %v882, 0.0
      %v1578 = vrot.slane %v1577, 4
      %v1579 = vadd.f32 %v1577, %v1578
      %v1580 = vrot.slane %v1579, 2
      %v1581 = vadd.f32 %v1579, %v1580
      %v1582 = vrot.slane %v1581, 1
      %v1583 = vadd.f32 %v1581, %v1582
      %v1584 = vsel %vm1506, %v884, 0.0
      %v1585 = vrot.slane %v1584, 4
      %v1586 = vadd.f32 %v1584, %v1585
      %v1587 = vrot.slane %v1586, 2
      %v1588 = vadd.f32 %v1586, %v1587
      %v1589 = vrot.slane %v1588, 1
      %v1590 = vadd.f32 %v1588, %v1589
      %v1591 = vsel %vm1506, %v892, 0.0
      %v1592 = vrot.slane %v1591, 4
      %v1593 = vadd.f32 %v1591, %v1592
      %v1594 = vrot.slane %v1593, 2
      %v1595 = vadd.f32 %v1593, %v1594
      %v1596 = vrot.slane %v1595, 1
      %v1597 = vadd.f32 %v1595, %v1596
      %v1598 = vsel %vm1506, %v900, 0.0
      %v1599 = vrot.slane %v1598, 4
      %v1600 = vadd.f32 %v1598, %v1599
      %v1601 = vrot.slane %v1600, 2
      %v1602 = vadd.f32 %v1600, %v1601
      %v1603 = vrot.slane %v1602, 1
      %v1604 = vadd.f32 %v1602, %v1603
      %v1605 = vsel %vm1506, %v899, 0.0
      %v1606 = vrot.slane %v1605, 4
      %v1607 = vadd.f32 %v1605, %v1606
      %v1608 = vrot.slane %v1607, 2
      %v1609 = vadd.f32 %v1607, %v1608
      %v1610 = vrot.slane %v1609, 1
      %v1611 = vadd.f32 %v1609, %v1610
      %v1612 = vsel %vm1506, %v901, 0.0
      %v1613 = vrot.slane %v1612, 4
      %v1614 = vadd.f32 %v1612, %v1613
      %v1615 = vrot.slane %v1614, 2
      %v1616 = vadd.f32 %v1614, %v1615
      %v1617 = vrot.slane %v1616, 1
      %v1618 = vadd.f32 %v1616, %v1617
      %v1619 = vsel %vm1506, %v909, 0.0
      %v1620 = vrot.slane %v1619, 4
      %v1621 = vadd.f32 %v1619, %v1620
      %v1622 = vrot.slane %v1621, 2
      %v1623 = vadd.f32 %v1621, %v1622
      %v1624 = vrot.slane %v1623, 1
      %v1625 = vadd.f32 %v1623, %v1624
      %v1626 = vsel %vm1506, %v917, 0.0
      %v1627 = vrot.slane %v1626, 4
      %v1628 = vadd.f32 %v1626, %v1627
      %v1629 = vrot.slane %v1628, 2
      %v1630 = vadd.f32 %v1628, %v1629
      %v1631 = vrot.slane %v1630, 1
      %v1632 = vadd.f32 %v1630, %v1631
      %v1633 = vsel %vm1506, %v916, 0.0
      %v1634 = vrot.slane %v1633, 4
      %v1635 = vadd.f32 %v1633, %v1634
      %v1636 = vrot.slane %v1635, 2
      %v1637 = vadd.f32 %v1635, %v1636
      %v1638 = vrot.slane %v1637, 1
      %v1639 = vadd.f32 %v1637, %v1638
      %v1640 = vsel %vm1506, %v918, 0.0
      %v1641 = vrot.slane %v1640, 4
      %v1642 = vadd.f32 %v1640, %v1641
      %v1643 = vrot.slane %v1642, 2
      %v1644 = vadd.f32 %v1642, %v1643
      %v1645 = vrot.slane %v1644, 1
      %v1646 = vadd.f32 %v1644, %v1645
      %v1647 = vsel %vm1506, %v926, 0.0
      %v1648 = vrot.slane %v1647, 4
      %v1649 = vadd.f32 %v1647, %v1648
      %v1650 = vrot.slane %v1649, 2
      %v1651 = vadd.f32 %v1649, %v1650
      %v1652 = vrot.slane %v1651, 1
      %v1653 = vadd.f32 %v1651, %v1652
      %v1654 = vsel %vm1506, %v934, 0.0
      %v1655 = vrot.slane %v1654, 4
      %v1656 = vadd.f32 %v1654, %v1655
      %v1657 = vrot.slane %v1656, 2
      %v1658 = vadd.f32 %v1656, %v1657
      %v1659 = vrot.slane %v1658, 1
      %v1660 = vadd.f32 %v1658, %v1659
      %v1661 = vsel %vm1506, %v933, 0.0
      %v1662 = vrot.slane %v1661, 4
      %v1663 = vadd.f32 %v1661, %v1662
      %v1664 = vrot.slane %v1663, 2
      %v1665 = vadd.f32 %v1663, %v1664
      %v1666 = vrot.slane %v1665, 1
      %v1667 = vadd.f32 %v1665, %v1666
      %v1668 = vsel %vm1506, %v935, 0.0
      %v1669 = vrot.slane %v1668, 4
      %v1670 = vadd.f32 %v1668, %v1669
      %v1671 = vrot.slane %v1670, 2
      %v1672 = vadd.f32 %v1670, %v1671
      %v1673 = vrot.slane %v1672, 1
      %v1674 = vadd.f32 %v1672, %v1673
      %v1675 = vsel %vm1506, %v943, 0.0
      %v1676 = vrot.slane %v1675, 4
      %v1677 = vadd.f32 %v1675, %v1676
      %v1678 = vrot.slane %v1677, 2
      %v1679 = vadd.f32 %v1677, %v1678
      %v1680 = vrot.slane %v1679, 1
      %v1681 = vadd.f32 %v1679, %v1680
      %v1682 = vsel %vm1506, %v951, 0.0
      %v1683 = vrot.slane %v1682, 4
      %v1684 = vadd.f32 %v1682, %v1683
      %v1685 = vrot.slane %v1684, 2
      %v1686 = vadd.f32 %v1684, %v1685
      %v1687 = vrot.slane %v1686, 1
      %v1688 = vadd.f32 %v1686, %v1687
      %v1689 = vsel %vm1506, %v950, 0.0
      %v1690 = vrot.slane %v1689, 4
      %v1691 = vadd.f32 %v1689, %v1690
      %v1692 = vrot.slane %v1691, 2
      %v1693 = vadd.f32 %v1691, %v1692
      %v1694 = vrot.slane %v1693, 1
      %v1695 = vadd.f32 %v1693, %v1694
      %v1696 = vsel %vm1506, %v952, 0.0
      %v1697 = vrot.slane %v1696, 4
      %v1698 = vadd.f32 %v1696, %v1697
      %v1699 = vrot.slane %v1698, 2
      %v1700 = vadd.f32 %v1698, %v1699
      %v1701 = vrot.slane %v1700, 1
      %v1702 = vadd.f32 %v1700, %v1701
      %v1703 = vsel %vm1506, %v960, 0.0
      %v1704 = vrot.slane %v1703, 4
      %v1705 = vadd.f32 %v1703, %v1704
      %v1706 = vrot.slane %v1705, 2
      %v1707 = vadd.f32 %v1705, %v1706
      %v1708 = vrot.slane %v1707, 1
      %v1709 = vadd.f32 %v1707, %v1708
      %v1710 = vsel %vm1506, %v968, 0.0
      %v1711 = vrot.slane %v1710, 4
      %v1712 = vadd.f32 %v1710, %v1711
      %v1713 = vrot.slane %v1712, 2
      %v1714 = vadd.f32 %v1712, %v1713
      %v1715 = vrot.slane %v1714, 1
      %v1716 = vadd.f32 %v1714, %v1715
      %v1717 = vsel %vm1506, %v967, 0.0
      %v1718 = vrot.slane %v1717, 4
      %v1719 = vadd.f32 %v1717, %v1718
      %v1720 = vrot.slane %v1719, 2
      %v1721 = vadd.f32 %v1719, %v1720
      %v1722 = vrot.slane %v1721, 1
      %v1723 = vadd.f32 %v1721, %v1722
      %v1724 = vsel %vm1506, %v969, 0.0
      %v1725 = vrot.slane %v1724, 4
      %v1726 = vadd.f32 %v1724, %v1725
      %v1727 = vrot.slane %v1726, 2
      %v1728 = vadd.f32 %v1726, %v1727
      %v1729 = vrot.slane %v1728, 1
      %v1730 = vadd.f32 %v1728, %v1729
      %v1731 = vsel %vm1506, %v977, 0.0
      %v1732 = vrot.slane %v1731, 4
      %v1733 = vadd.f32 %v1731, %v1732
      %v1734 = vrot.slane %v1733, 2
      %v1735 = vadd.f32 %v1733, %v1734
      %v1736 = vrot.slane %v1735, 1
      %v1737 = vadd.f32 %v1735, %v1736
      %v1738 = vsel %vm1506, %v985, 0.0
      %v1739 = vrot.slane %v1738, 4
      %v1740 = vadd.f32 %v1738, %v1739
      %v1741 = vrot.slane %v1740, 2
      %v1742 = vadd.f32 %v1740, %v1741
      %v1743 = vrot.slane %v1742, 1
      %v1744 = vadd.f32 %v1742, %v1743
      %v1745 = vsel %vm1506, %v984, 0.0
      %v1746 = vrot.slane %v1745, 4
      %v1747 = vadd.f32 %v1745, %v1746
      %v1748 = vrot.slane %v1747, 2
      %v1749 = vadd.f32 %v1747, %v1748
      %v1750 = vrot.slane %v1749, 1
      %v1751 = vadd.f32 %v1749, %v1750
      %v1752 = vsel %vm1506, %v986, 0.0
      %v1753 = vrot.slane %v1752, 4
      %v1754 = vadd.f32 %v1752, %v1753
      %v1755 = vrot.slane %v1754, 2
      %v1756 = vadd.f32 %v1754, %v1755
      %v1757 = vrot.slane %v1756, 1
      %v1758 = vadd.f32 %v1756, %v1757
      %v1759 = vsel %vm1506, %v994, 0.0
      %v1760 = vrot.slane %v1759, 4
      %v1761 = vadd.f32 %v1759, %v1760
      %v1762 = vrot.slane %v1761, 2
      %v1763 = vadd.f32 %v1761, %v1762
      %v1764 = vrot.slane %v1763, 1
      %v1765 = vadd.f32 %v1763, %v1764
      %v1766 = vsel %vm1506, %v1002, 0.0
      %v1767 = vrot.slane %v1766, 4
      %v1768 = vadd.f32 %v1766, %v1767
      %v1769 = vrot.slane %v1768, 2
      %v1770 = vadd.f32 %v1768, %v1769
      %v1771 = vrot.slane %v1770, 1
      %v1772 = vadd.f32 %v1770, %v1771
      %v1773 = vsel %vm1506, %v1001, 0.0
      %v1774 = vrot.slane %v1773, 4
      %v1775 = vadd.f32 %v1773, %v1774
      %v1776 = vrot.slane %v1775, 2
      %v1777 = vadd.f32 %v1775, %v1776
      %v1778 = vrot.slane %v1777, 1
      %v1779 = vadd.f32 %v1777, %v1778
      %v1780 = vsel %vm1506, %v1003, 0.0
      %v1781 = vrot.slane %v1780, 4
      %v1782 = vadd.f32 %v1780, %v1781
      %v1783 = vrot.slane %v1782, 2
      %v1784 = vadd.f32 %v1782, %v1783
      %v1785 = vrot.slane %v1784, 1
      %v1786 = vadd.f32 %v1784, %v1785
      %v1787 = vsel %vm1506, %v1011, 0.0
      %v1788 = vrot.slane %v1787, 4
      %v1789 = vadd.f32 %v1787, %v1788
      %v1790 = vrot.slane %v1789, 2
      %v1791 = vadd.f32 %v1789, %v1790
      %v1792 = vrot.slane %v1791, 1
      %v1793 = vadd.f32 %v1791, %v1792
      %v1794 = vsel %vm1506, %v1019, 0.0
      %v1795 = vrot.slane %v1794, 4
      %v1796 = vadd.f32 %v1794, %v1795
      %v1797 = vrot.slane %v1796, 2
      %v1798 = vadd.f32 %v1796, %v1797
      %v1799 = vrot.slane %v1798, 1
      %v1800 = vadd.f32 %v1798, %v1799
      %v1801 = vsel %vm1506, %v1018, 0.0
      %v1802 = vrot.slane %v1801, 4
      %v1803 = vadd.f32 %v1801, %v1802
      %v1804 = vrot.slane %v1803, 2
      %v1805 = vadd.f32 %v1803, %v1804
      %v1806 = vrot.slane %v1805, 1
      %v1807 = vadd.f32 %v1805, %v1806
      %v1808 = vsel %vm1506, %v1020, 0.0
      %v1809 = vrot.slane %v1808, 4
      %v1810 = vadd.f32 %v1808, %v1809
      %v1811 = vrot.slane %v1810, 2
      %v1812 = vadd.f32 %v1810, %v1811
      %v1813 = vrot.slane %v1812, 1
      %v1814 = vadd.f32 %v1812, %v1813
      %v1815 = vsel %vm1506, %v1028, 0.0
      %v1816 = vrot.slane %v1815, 4
      %v1817 = vadd.f32 %v1815, %v1816
      %v1818 = vrot.slane %v1817, 2
      %v1819 = vadd.f32 %v1817, %v1818
      %v1820 = vrot.slane %v1819, 1
      %v1821 = vadd.f32 %v1819, %v1820
      %v1822 = vsel %vm1506, %v1036, 0.0
      %v1823 = vrot.slane %v1822, 4
      %v1824 = vadd.f32 %v1822, %v1823
      %v1825 = vrot.slane %v1824, 2
      %v1826 = vadd.f32 %v1824, %v1825
      %v1827 = vrot.slane %v1826, 1
      %v1828 = vadd.f32 %v1826, %v1827
      %v1829 = vsel %vm1506, %v1035, 0.0
      %v1830 = vrot.slane %v1829, 4
      %v1831 = vadd.f32 %v1829, %v1830
      %v1832 = vrot.slane %v1831, 2
      %v1833 = vadd.f32 %v1831, %v1832
      %v1834 = vrot.slane %v1833, 1
      %v1835 = vadd.f32 %v1833, %v1834
      %v1836 = vsel %vm1506, %v1037, 0.0
      %v1837 = vrot.slane %v1836, 4
      %v1838 = vadd.f32 %v1836, %v1837
      %v1839 = vrot.slane %v1838, 2
      %v1840 = vadd.f32 %v1838, %v1839
      %v1841 = vrot.slane %v1840, 1
      %v1842 = vadd.f32 %v1840, %v1841
      %v1843 = vsel %vm1506, %v1045, 0.0
      %v1844 = vrot.slane %v1843, 4
      %v1845 = vadd.f32 %v1843, %v1844
      %v1846 = vrot.slane %v1845, 2
      %v1847 = vadd.f32 %v1845, %v1846
      %v1848 = vrot.slane %v1847, 1
      %v1849 = vadd.f32 %v1847, %v1848
      %v1850 = vsel %vm1506, %v1053, 0.0
      %v1851 = vrot.slane %v1850, 4
      %v1852 = vadd.f32 %v1850, %v1851
      %v1853 = vrot.slane %v1852, 2
      %v1854 = vadd.f32 %v1852, %v1853
      %v1855 = vrot.slane %v1854, 1
      %v1856 = vadd.f32 %v1854, %v1855
      %v1857 = vsel %vm1506, %v1052, 0.0
      %v1858 = vrot.slane %v1857, 4
      %v1859 = vadd.f32 %v1857, %v1858
      %v1860 = vrot.slane %v1859, 2
      %v1861 = vadd.f32 %v1859, %v1860
      %v1862 = vrot.slane %v1861, 1
      %v1863 = vadd.f32 %v1861, %v1862
      %v1864 = vsel %vm1506, %v1054, 0.0
      %v1865 = vrot.slane %v1864, 4
      %v1866 = vadd.f32 %v1864, %v1865
      %v1867 = vrot.slane %v1866, 2
      %v1868 = vadd.f32 %v1866, %v1867
      %v1869 = vrot.slane %v1868, 1
      %v1870 = vadd.f32 %v1868, %v1869
      %v1871 = vsel %vm1506, %v1062, 0.0
      %v1872 = vrot.slane %v1871, 4
      %v1873 = vadd.f32 %v1871, %v1872
      %v1874 = vrot.slane %v1873, 2
      %v1875 = vadd.f32 %v1873, %v1874
      %v1876 = vrot.slane %v1875, 1
      %v1877 = vadd.f32 %v1875, %v1876
      %v1878 = vsel %vm1506, %v1070, 0.0
      %v1879 = vrot.slane %v1878, 4
      %v1880 = vadd.f32 %v1878, %v1879
      %v1881 = vrot.slane %v1880, 2
      %v1882 = vadd.f32 %v1880, %v1881
      %v1883 = vrot.slane %v1882, 1
      %v1884 = vadd.f32 %v1882, %v1883
      %v1885 = vsel %vm1506, %v1069, 0.0
      %v1886 = vrot.slane %v1885, 4
      %v1887 = vadd.f32 %v1885, %v1886
      %v1888 = vrot.slane %v1887, 2
      %v1889 = vadd.f32 %v1887, %v1888
      %v1890 = vrot.slane %v1889, 1
      %v1891 = vadd.f32 %v1889, %v1890
      %v1892 = vsel %vm1506, %v1071, 0.0
      %v1893 = vrot.slane %v1892, 4
      %v1894 = vadd.f32 %v1892, %v1893
      %v1895 = vrot.slane %v1894, 2
      %v1896 = vadd.f32 %v1894, %v1895
      %v1897 = vrot.slane %v1896, 1
      %v1898 = vadd.f32 %v1896, %v1897
      %v1899 = vsel %vm1506, %v1079, 0.0
      %v1900 = vrot.slane %v1899, 4
      %v1901 = vadd.f32 %v1899, %v1900
      %v1902 = vrot.slane %v1901, 2
      %v1903 = vadd.f32 %v1901, %v1902
      %v1904 = vrot.slane %v1903, 1
      %v1905 = vadd.f32 %v1903, %v1904
      %v1906 = vsel %vm1506, %v1087, 0.0
      %v1907 = vrot.slane %v1906, 4
      %v1908 = vadd.f32 %v1906, %v1907
      %v1909 = vrot.slane %v1908, 2
      %v1910 = vadd.f32 %v1908, %v1909
      %v1911 = vrot.slane %v1910, 1
      %v1912 = vadd.f32 %v1910, %v1911
      %v1913 = vsel %vm1506, %v1086, 0.0
      %v1914 = vrot.slane %v1913, 4
      %v1915 = vadd.f32 %v1913, %v1914
      %v1916 = vrot.slane %v1915, 2
      %v1917 = vadd.f32 %v1915, %v1916
      %v1918 = vrot.slane %v1917, 1
      %v1919 = vadd.f32 %v1917, %v1918
      %v1920 = vsel %vm1506, %v1088, 0.0
      %v1921 = vrot.slane %v1920, 4
      %v1922 = vadd.f32 %v1920, %v1921
      %v1923 = vrot.slane %v1922, 2
      %v1924 = vadd.f32 %v1922, %v1923
      %v1925 = vrot.slane %v1924, 1
      %v1926 = vadd.f32 %v1924, %v1925
      %v1927 = vsel %vm1506, %v1096, 0.0
      %v1928 = vrot.slane %v1927, 4
      %v1929 = vadd.f32 %v1927, %v1928
      %v1930 = vrot.slane %v1929, 2
      %v1931 = vadd.f32 %v1929, %v1930
      %v1932 = vrot.slane %v1931, 1
      %v1933 = vadd.f32 %v1931, %v1932
      %v1934 = vsel %vm1506, %v1104, 0.0
      %v1935 = vrot.slane %v1934, 4
      %v1936 = vadd.f32 %v1934, %v1935
      %v1937 = vrot.slane %v1936, 2
      %v1938 = vadd.f32 %v1936, %v1937
      %v1939 = vrot.slane %v1938, 1
      %v1940 = vadd.f32 %v1938, %v1939
      %v1941 = vsel %vm1506, %v1103, 0.0
      %v1942 = vrot.slane %v1941, 4
      %v1943 = vadd.f32 %v1941, %v1942
      %v1944 = vrot.slane %v1943, 2
      %v1945 = vadd.f32 %v1943, %v1944
      %v1946 = vrot.slane %v1945, 1
      %v1947 = vadd.f32 %v1945, %v1946
      %v1948 = vsel %vm1506, %v1105, 0.0
      %v1949 = vrot.slane %v1948, 4
      %v1950 = vadd.f32 %v1948, %v1949
      %v1951 = vrot.slane %v1950, 2
      %v1952 = vadd.f32 %v1950, %v1951
      %v1953 = vrot.slane %v1952, 1
      %v1954 = vadd.f32 %v1952, %v1953
      %v1955 = vsel %vm1506, %v1113, 0.0
      %v1956 = vrot.slane %v1955, 4
      %v1957 = vadd.f32 %v1955, %v1956
      %v1958 = vrot.slane %v1957, 2
      %v1959 = vadd.f32 %v1957, %v1958
      %v1960 = vrot.slane %v1959, 1
      %v1961 = vadd.f32 %v1959, %v1960
      %v1962 = vsel %vm1506, %v1121, 0.0
      %v1963 = vrot.slane %v1962, 4
      %v1964 = vadd.f32 %v1962, %v1963
      %v1965 = vrot.slane %v1964, 2
      %v1966 = vadd.f32 %v1964, %v1965
      %v1967 = vrot.slane %v1966, 1
      %v1968 = vadd.f32 %v1966, %v1967
      %v1969 = vsel %vm1506, %v1120, 0.0
      %v1970 = vrot.slane %v1969, 4
      %v1971 = vadd.f32 %v1969, %v1970
      %v1972 = vrot.slane %v1971, 2
      %v1973 = vadd.f32 %v1971, %v1972
      %v1974 = vrot.slane %v1973, 1
      %v1975 = vadd.f32 %v1973, %v1974
      %v1976 = vsel %vm1506, %v1122, 0.0
      %v1977 = vrot.slane %v1976, 4
      %v1978 = vadd.f32 %v1976, %v1977
      %v1979 = vrot.slane %v1978, 2
      %v1980 = vadd.f32 %v1978, %v1979
      %v1981 = vrot.slane %v1980, 1
      %v1982 = vadd.f32 %v1980, %v1981
      %v1983 = vsel %vm1506, %v1130, 0.0
      %v1984 = vrot.slane %v1983, 4
      %v1985 = vadd.f32 %v1983, %v1984
      %v1986 = vrot.slane %v1985, 2
      %v1987 = vadd.f32 %v1985, %v1986
      %v1988 = vrot.slane %v1987, 1
      %v1989 = vadd.f32 %v1987, %v1988
      %v1990 = vsel %vm1506, %v1138, 0.0
      %v1991 = vrot.slane %v1990, 4
      %v1992 = vadd.f32 %v1990, %v1991
      %v1993 = vrot.slane %v1992, 2
      %v1994 = vadd.f32 %v1992, %v1993
      %v1995 = vrot.slane %v1994, 1
      %v1996 = vadd.f32 %v1994, %v1995
      %v1997 = vsel %vm1506, %v1137, 0.0
      %v1998 = vrot.slane %v1997, 4
      %v1999 = vadd.f32 %v1997, %v1998
      %v2000 = vrot.slane %v1999, 2
      %v2001 = vadd.f32 %v1999, %v2000
      %v2002 = vrot.slane %v2001, 1
      %v2003 = vadd.f32 %v2001, %v2002
      %v2004 = vsel %vm1506, %v1139, 0.0
      %v2005 = vrot.slane %v2004, 4
      %v2006 = vadd.f32 %v2004, %v2005
      %v2007 = vrot.slane %v2006, 2
      %v2008 = vadd.f32 %v2006, %v2007
      %v2009 = vrot.slane %v2008, 1
      %v2010 = vadd.f32 %v2008, %v2009
      %v2011 = vsel %vm1506, %v1147, 0.0
      %v2012 = vrot.slane %v2011, 4
      %v2013 = vadd.f32 %v2011, %v2012
      %v2014 = vrot.slane %v2013, 2
      %v2015 = vadd.f32 %v2013, %v2014
      %v2016 = vrot.slane %v2015, 1
      %v2017 = vadd.f32 %v2015, %v2016
      %v2018 = vsel %vm1506, %v1155, 0.0
      %v2019 = vrot.slane %v2018, 4
      %v2020 = vadd.f32 %v2018, %v2019
      %v2021 = vrot.slane %v2020, 2
      %v2022 = vadd.f32 %v2020, %v2021
      %v2023 = vrot.slane %v2022, 1
      %v2024 = vadd.f32 %v2022, %v2023
      %v2025 = vsel %vm1506, %v1154, 0.0
      %v2026 = vrot.slane %v2025, 4
      %v2027 = vadd.f32 %v2025, %v2026
      %v2028 = vrot.slane %v2027, 2
      %v2029 = vadd.f32 %v2027, %v2028
      %v2030 = vrot.slane %v2029, 1
      %v2031 = vadd.f32 %v2029, %v2030
      %v2032 = vsel %vm1506, %v1156, 0.0
      %v2033 = vrot.slane %v2032, 4
      %v2034 = vadd.f32 %v2032, %v2033
      %v2035 = vrot.slane %v2034, 2
      %v2036 = vadd.f32 %v2034, %v2035
      %v2037 = vrot.slane %v2036, 1
      %v2038 = vadd.f32 %v2036, %v2037
      %v2039 = vsel %vm1506, %v1164, 0.0
      %v2040 = vrot.slane %v2039, 4
      %v2041 = vadd.f32 %v2039, %v2040
      %v2042 = vrot.slane %v2041, 2
      %v2043 = vadd.f32 %v2041, %v2042
      %v2044 = vrot.slane %v2043, 1
      %v2045 = vadd.f32 %v2043, %v2044
      %v2046 = vsel %vm1506, %v1172, 0.0
      %v2047 = vrot.slane %v2046, 4
      %v2048 = vadd.f32 %v2046, %v2047
      %v2049 = vrot.slane %v2048, 2
      %v2050 = vadd.f32 %v2048, %v2049
      %v2051 = vrot.slane %v2050, 1
      %v2052 = vadd.f32 %v2050, %v2051
      %v2053 = vsel %vm1506, %v1171, 0.0
      %v2054 = vrot.slane %v2053, 4
      %v2055 = vadd.f32 %v2053, %v2054
      %v2056 = vrot.slane %v2055, 2
      %v2057 = vadd.f32 %v2055, %v2056
      %v2058 = vrot.slane %v2057, 1
      %v2059 = vadd.f32 %v2057, %v2058
      %v2060 = vsel %vm1506, %v1173, 0.0
      %v2061 = vrot.slane %v2060, 4
      %v2062 = vadd.f32 %v2060, %v2061
      %v2063 = vrot.slane %v2062, 2
      %v2064 = vadd.f32 %v2062, %v2063
      %v2065 = vrot.slane %v2064, 1
      %v2066 = vadd.f32 %v2064, %v2065
      %v2067 = vsel %vm1506, %v1181, 0.0
      %v2068 = vrot.slane %v2067, 4
      %v2069 = vadd.f32 %v2067, %v2068
      %v2070 = vrot.slane %v2069, 2
      %v2071 = vadd.f32 %v2069, %v2070
      %v2072 = vrot.slane %v2071, 1
      %v2073 = vadd.f32 %v2071, %v2072
      %v2074 = vsel %vm1506, %v1189, 0.0
      %v2075 = vrot.slane %v2074, 4
      %v2076 = vadd.f32 %v2074, %v2075
      %v2077 = vrot.slane %v2076, 2
      %v2078 = vadd.f32 %v2076, %v2077
      %v2079 = vrot.slane %v2078, 1
      %v2080 = vadd.f32 %v2078, %v2079
      %v2081 = vsel %vm1506, %v1188, 0.0
      %v2082 = vrot.slane %v2081, 4
      %v2083 = vadd.f32 %v2081, %v2082
      %v2084 = vrot.slane %v2083, 2
      %v2085 = vadd.f32 %v2083, %v2084
      %v2086 = vrot.slane %v2085, 1
      %v2087 = vadd.f32 %v2085, %v2086
      %v2088 = vsel %vm1506, %v1190, 0.0
      %v2089 = vrot.slane %v2088, 4
      %v2090 = vadd.f32 %v2088, %v2089
      %v2091 = vrot.slane %v2090, 2
      %v2092 = vadd.f32 %v2090, %v2091
      %v2093 = vrot.slane %v2092, 1
      %v2094 = vadd.f32 %v2092, %v2093
      %v2095 = vsel %vm1506, %v1198, 0.0
      %v2096 = vrot.slane %v2095, 4
      %v2097 = vadd.f32 %v2095, %v2096
      %v2098 = vrot.slane %v2097, 2
      %v2099 = vadd.f32 %v2097, %v2098
      %v2100 = vrot.slane %v2099, 1
      %v2101 = vadd.f32 %v2099, %v2100
      %v2102 = vsel %vm1506, %v1206, 0.0
      %v2103 = vrot.slane %v2102, 4
      %v2104 = vadd.f32 %v2102, %v2103
      %v2105 = vrot.slane %v2104, 2
      %v2106 = vadd.f32 %v2104, %v2105
      %v2107 = vrot.slane %v2106, 1
      %v2108 = vadd.f32 %v2106, %v2107
      %v2109 = vsel %vm1506, %v1205, 0.0
      %v2110 = vrot.slane %v2109, 4
      %v2111 = vadd.f32 %v2109, %v2110
      %v2112 = vrot.slane %v2111, 2
      %v2113 = vadd.f32 %v2111, %v2112
      %v2114 = vrot.slane %v2113, 1
      %v2115 = vadd.f32 %v2113, %v2114
      %v2116 = vsel %vm1506, %v1207, 0.0
      %v2117 = vrot.slane %v2116, 4
      %v2118 = vadd.f32 %v2116, %v2117
      %v2119 = vrot.slane %v2118, 2
      %v2120 = vadd.f32 %v2118, %v2119
      %v2121 = vrot.slane %v2120, 1
      %v2122 = vadd.f32 %v2120, %v2121
      %v2123 = vsel %vm1506, %v1215, 0.0
      %v2124 = vrot.slane %v2123, 4
      %v2125 = vadd.f32 %v2123, %v2124
      %v2126 = vrot.slane %v2125, 2
      %v2127 = vadd.f32 %v2125, %v2126
      %v2128 = vrot.slane %v2127, 1
      %v2129 = vadd.f32 %v2127, %v2128
      %v2130 = vsel %vm1506, %v1223, 0.0
      %v2131 = vrot.slane %v2130, 4
      %v2132 = vadd.f32 %v2130, %v2131
      %v2133 = vrot.slane %v2132, 2
      %v2134 = vadd.f32 %v2132, %v2133
      %v2135 = vrot.slane %v2134, 1
      %v2136 = vadd.f32 %v2134, %v2135
      %v2137 = vsel %vm1506, %v1222, 0.0
      %v2138 = vrot.slane %v2137, 4
      %v2139 = vadd.f32 %v2137, %v2138
      %v2140 = vrot.slane %v2139, 2
      %v2141 = vadd.f32 %v2139, %v2140
      %v2142 = vrot.slane %v2141, 1
      %v2143 = vadd.f32 %v2141, %v2142
      %v2144 = vsel %vm1506, %v1224, 0.0
      %v2145 = vrot.slane %v2144, 4
      %v2146 = vadd.f32 %v2144, %v2145
      %v2147 = vrot.slane %v2146, 2
      %v2148 = vadd.f32 %v2146, %v2147
      %v2149 = vrot.slane %v2148, 1
      %v2150 = vadd.f32 %v2148, %v2149
      %v2151 = vsel %vm1506, %v1232, 0.0
      %v2152 = vrot.slane %v2151, 4
      %v2153 = vadd.f32 %v2151, %v2152
      %v2154 = vrot.slane %v2153, 2
      %v2155 = vadd.f32 %v2153, %v2154
      %v2156 = vrot.slane %v2155, 1
      %v2157 = vadd.f32 %v2155, %v2156
      %v2158 = vsel %vm1506, %v1240, 0.0
      %v2159 = vrot.slane %v2158, 4
      %v2160 = vadd.f32 %v2158, %v2159
      %v2161 = vrot.slane %v2160, 2
      %v2162 = vadd.f32 %v2160, %v2161
      %v2163 = vrot.slane %v2162, 1
      %v2164 = vadd.f32 %v2162, %v2163
      %v2165 = vsel %vm1506, %v1239, 0.0
      %v2166 = vrot.slane %v2165, 4
      %v2167 = vadd.f32 %v2165, %v2166
      %v2168 = vrot.slane %v2167, 2
      %v2169 = vadd.f32 %v2167, %v2168
      %v2170 = vrot.slane %v2169, 1
      %v2171 = vadd.f32 %v2169, %v2170
      %v2172 = vsel %vm1506, %v1241, 0.0
      %v2173 = vrot.slane %v2172, 4
      %v2174 = vadd.f32 %v2172, %v2173
      %v2175 = vrot.slane %v2174, 2
      %v2176 = vadd.f32 %v2174, %v2175
      %v2177 = vrot.slane %v2176, 1
      %v2178 = vadd.f32 %v2176, %v2177
      %v2179 = vsel %vm1506, %v1249, 0.0
      %v2180 = vrot.slane %v2179, 4
      %v2181 = vadd.f32 %v2179, %v2180
      %v2182 = vrot.slane %v2181, 2
      %v2183 = vadd.f32 %v2181, %v2182
      %v2184 = vrot.slane %v2183, 1
      %v2185 = vadd.f32 %v2183, %v2184
      %v2186 = vsel %vm1506, %v1257, 0.0
      %v2187 = vrot.slane %v2186, 4
      %v2188 = vadd.f32 %v2186, %v2187
      %v2189 = vrot.slane %v2188, 2
      %v2190 = vadd.f32 %v2188, %v2189
      %v2191 = vrot.slane %v2190, 1
      %v2192 = vadd.f32 %v2190, %v2191
      %v2193 = vsel %vm1506, %v1256, 0.0
      %v2194 = vrot.slane %v2193, 4
      %v2195 = vadd.f32 %v2193, %v2194
      %v2196 = vrot.slane %v2195, 2
      %v2197 = vadd.f32 %v2195, %v2196
      %v2198 = vrot.slane %v2197, 1
      %v2199 = vadd.f32 %v2197, %v2198
      %v2200 = vsel %vm1506, %v1258, 0.0
      %v2201 = vrot.slane %v2200, 4
      %v2202 = vadd.f32 %v2200, %v2201
      %v2203 = vrot.slane %v2202, 2
      %v2204 = vadd.f32 %v2202, %v2203
      %v2205 = vrot.slane %v2204, 1
      %v2206 = vadd.f32 %v2204, %v2205
      %v2207 = vsel %vm1506, %v1266, 0.0
      %v2208 = vrot.slane %v2207, 4
      %v2209 = vadd.f32 %v2207, %v2208
      %v2210 = vrot.slane %v2209, 2
      %v2211 = vadd.f32 %v2209, %v2210
      %v2212 = vrot.slane %v2211, 1
      %v2213 = vadd.f32 %v2211, %v2212
      %v2214 = vsel %vm1506, %v1274, 0.0
      %v2215 = vrot.slane %v2214, 4
      %v2216 = vadd.f32 %v2214, %v2215
      %v2217 = vrot.slane %v2216, 2
      %v2218 = vadd.f32 %v2216, %v2217
      %v2219 = vrot.slane %v2218, 1
      %v2220 = vadd.f32 %v2218, %v2219
      %v2221 = vsel %vm1506, %v1273, 0.0
      %v2222 = vrot.slane %v2221, 4
      %v2223 = vadd.f32 %v2221, %v2222
      %v2224 = vrot.slane %v2223, 2
      %v2225 = vadd.f32 %v2223, %v2224
      %v2226 = vrot.slane %v2225, 1
      %v2227 = vadd.f32 %v2225, %v2226
      %v2228 = vsel %vm1506, %v1275, 0.0
      %v2229 = vrot.slane %v2228, 4
      %v2230 = vadd.f32 %v2228, %v2229
      %v2231 = vrot.slane %v2230, 2
      %v2232 = vadd.f32 %v2230, %v2231
      %v2233 = vrot.slane %v2232, 1
      %v2234 = vadd.f32 %v2232, %v2233
      %v2235 = vsel %vm1506, %v1283, 0.0
      %v2236 = vrot.slane %v2235, 4
      %v2237 = vadd.f32 %v2235, %v2236
      %v2238 = vrot.slane %v2237, 2
      %v2239 = vadd.f32 %v2237, %v2238
      %v2240 = vrot.slane %v2239, 1
      %v2241 = vadd.f32 %v2239, %v2240
      %v2242 = vsel %vm1506, %v1291, 0.0
      %v2243 = vrot.slane %v2242, 4
      %v2244 = vadd.f32 %v2242, %v2243
      %v2245 = vrot.slane %v2244, 2
      %v2246 = vadd.f32 %v2244, %v2245
      %v2247 = vrot.slane %v2246, 1
      %v2248 = vadd.f32 %v2246, %v2247
      %v2249 = vsel %vm1506, %v1290, 0.0
      %v2250 = vrot.slane %v2249, 4
      %v2251 = vadd.f32 %v2249, %v2250
      %v2252 = vrot.slane %v2251, 2
      %v2253 = vadd.f32 %v2251, %v2252
      %v2254 = vrot.slane %v2253, 1
      %v2255 = vadd.f32 %v2253, %v2254
      %v2256 = vsel %vm1506, %v1292, 0.0
      %v2257 = vrot.slane %v2256, 4
      %v2258 = vadd.f32 %v2256, %v2257
      %v2259 = vrot.slane %v2258, 2
      %v2260 = vadd.f32 %v2258, %v2259
      %v2261 = vrot.slane %v2260, 1
      %v2262 = vadd.f32 %v2260, %v2261
      %v2263 = vsel %vm1506, %v1300, 0.0
      %v2264 = vrot.slane %v2263, 4
      %v2265 = vadd.f32 %v2263, %v2264
      %v2266 = vrot.slane %v2265, 2
      %v2267 = vadd.f32 %v2265, %v2266
      %v2268 = vrot.slane %v2267, 1
      %v2269 = vadd.f32 %v2267, %v2268
      %v2270 = vsel %vm1506, %v1308, 0.0
      %v2271 = vrot.slane %v2270, 4
      %v2272 = vadd.f32 %v2270, %v2271
      %v2273 = vrot.slane %v2272, 2
      %v2274 = vadd.f32 %v2272, %v2273
      %v2275 = vrot.slane %v2274, 1
      %v2276 = vadd.f32 %v2274, %v2275
      %v2277 = vsel %vm1506, %v1307, 0.0
      %v2278 = vrot.slane %v2277, 4
      %v2279 = vadd.f32 %v2277, %v2278
      %v2280 = vrot.slane %v2279, 2
      %v2281 = vadd.f32 %v2279, %v2280
      %v2282 = vrot.slane %v2281, 1
      %v2283 = vadd.f32 %v2281, %v2282
      %v2284 = vsel %vm1506, %v1309, 0.0
      %v2285 = vrot.slane %v2284, 4
      %v2286 = vadd.f32 %v2284, %v2285
      %v2287 = vrot.slane %v2286, 2
      %v2288 = vadd.f32 %v2286, %v2287
      %v2289 = vrot.slane %v2288, 1
      %v2290 = vadd.f32 %v2288, %v2289
      %v2291 = vsel %vm1506, %v1317, 0.0
      %v2292 = vrot.slane %v2291, 4
      %v2293 = vadd.f32 %v2291, %v2292
      %v2294 = vrot.slane %v2293, 2
      %v2295 = vadd.f32 %v2293, %v2294
      %v2296 = vrot.slane %v2295, 1
      %v2297 = vadd.f32 %v2295, %v2296
      %v2298 = vsel %vm1506, %v1325, 0.0
      %v2299 = vrot.slane %v2298, 4
      %v2300 = vadd.f32 %v2298, %v2299
      %v2301 = vrot.slane %v2300, 2
      %v2302 = vadd.f32 %v2300, %v2301
      %v2303 = vrot.slane %v2302, 1
      %v2304 = vadd.f32 %v2302, %v2303
      %v2305 = vsel %vm1506, %v1324, 0.0
      %v2306 = vrot.slane %v2305, 4
      %v2307 = vadd.f32 %v2305, %v2306
      %v2308 = vrot.slane %v2307, 2
      %v2309 = vadd.f32 %v2307, %v2308
      %v2310 = vrot.slane %v2309, 1
      %v2311 = vadd.f32 %v2309, %v2310
      %v2312 = vsel %vm1506, %v1326, 0.0
      %v2313 = vrot.slane %v2312, 4
      %v2314 = vadd.f32 %v2312, %v2313
      %v2315 = vrot.slane %v2314, 2
      %v2316 = vadd.f32 %v2314, %v2315
      %v2317 = vrot.slane %v2316, 1
      %v2318 = vadd.f32 %v2316, %v2317
      %v2319 = vsel %vm1506, %v1334, 0.0
      %v2320 = vrot.slane %v2319, 4
      %v2321 = vadd.f32 %v2319, %v2320
      %v2322 = vrot.slane %v2321, 2
      %v2323 = vadd.f32 %v2321, %v2322
      %v2324 = vrot.slane %v2323, 1
      %v2325 = vadd.f32 %v2323, %v2324
      %v2326 = vsel %vm1506, %v1342, 0.0
      %v2327 = vrot.slane %v2326, 4
      %v2328 = vadd.f32 %v2326, %v2327
      %v2329 = vrot.slane %v2328, 2
      %v2330 = vadd.f32 %v2328, %v2329
      %v2331 = vrot.slane %v2330, 1
      %v2332 = vadd.f32 %v2330, %v2331
      %v2333 = vsel %vm1506, %v1341, 0.0
      %v2334 = vrot.slane %v2333, 4
      %v2335 = vadd.f32 %v2333, %v2334
      %v2336 = vrot.slane %v2335, 2
      %v2337 = vadd.f32 %v2335, %v2336
      %v2338 = vrot.slane %v2337, 1
      %v2339 = vadd.f32 %v2337, %v2338
      %v2340 = vsel %vm1506, %v1343, 0.0
      %v2341 = vrot.slane %v2340, 4
      %v2342 = vadd.f32 %v2340, %v2341
      %v2343 = vrot.slane %v2342, 2
      %v2344 = vadd.f32 %v2342, %v2343
      %v2345 = vrot.slane %v2344, 1
      %v2346 = vadd.f32 %v2344, %v2345
      %v2347 = vsel %vm1506, %v1351, 0.0
      %v2348 = vrot.slane %v2347, 4
      %v2349 = vadd.f32 %v2347, %v2348
      %v2350 = vrot.slane %v2349, 2
      %v2351 = vadd.f32 %v2349, %v2350
      %v2352 = vrot.slane %v2351, 1
      %v2353 = vadd.f32 %v2351, %v2352
      %v2354 = vsel %vm1506, %v1359, 0.0
      %v2355 = vrot.slane %v2354, 4
      %v2356 = vadd.f32 %v2354, %v2355
      %v2357 = vrot.slane %v2356, 2
      %v2358 = vadd.f32 %v2356, %v2357
      %v2359 = vrot.slane %v2358, 1
      %v2360 = vadd.f32 %v2358, %v2359
      %v2361 = vsel %vm1506, %v1358, 0.0
      %v2362 = vrot.slane %v2361, 4
      %v2363 = vadd.f32 %v2361, %v2362
      %v2364 = vrot.slane %v2363, 2
      %v2365 = vadd.f32 %v2363, %v2364
      %v2366 = vrot.slane %v2365, 1
      %v2367 = vadd.f32 %v2365, %v2366
      %v2368 = vsel %vm1506, %v1360, 0.0
      %v2369 = vrot.slane %v2368, 4
      %v2370 = vadd.f32 %v2368, %v2369
      %v2371 = vrot.slane %v2370, 2
      %v2372 = vadd.f32 %v2370, %v2371
      %v2373 = vrot.slane %v2372, 1
      %v2374 = vadd.f32 %v2372, %v2373
      %v2375 = vsel %vm1506, %v1368, 0.0
      %v2376 = vrot.slane %v2375, 4
      %v2377 = vadd.f32 %v2375, %v2376
      %v2378 = vrot.slane %v2377, 2
      %v2379 = vadd.f32 %v2377, %v2378
      %v2380 = vrot.slane %v2379, 1
      %v2381 = vadd.f32 %v2379, %v2380
      %v2382 = vsel %vm1506, %v1376, 0.0
      %v2383 = vrot.slane %v2382, 4
      %v2384 = vadd.f32 %v2382, %v2383
      %v2385 = vrot.slane %v2384, 2
      %v2386 = vadd.f32 %v2384, %v2385
      %v2387 = vrot.slane %v2386, 1
      %v2388 = vadd.f32 %v2386, %v2387
      %v2389 = vsel %vm1506, %v1375, 0.0
      %v2390 = vrot.slane %v2389, 4
      %v2391 = vadd.f32 %v2389, %v2390
      %v2392 = vrot.slane %v2391, 2
      %v2393 = vadd.f32 %v2391, %v2392
      %v2394 = vrot.slane %v2393, 1
      %v2395 = vadd.f32 %v2393, %v2394
      %v2396 = vsel %vm1506, %v1377, 0.0
      %v2397 = vrot.slane %v2396, 4
      %v2398 = vadd.f32 %v2396, %v2397
      %v2399 = vrot.slane %v2398, 2
      %v2400 = vadd.f32 %v2398, %v2399
      %v2401 = vrot.slane %v2400, 1
      %v2402 = vadd.f32 %v2400, %v2401
      %v2403 = vadd.f32 %v1513, %v1569
      %v2404 = vadd.f32 %v1520, %v1576
      %v2405 = vadd.f32 %v1527, %v1583
      %v2406 = vadd.f32 %v1534, %v1590
      %v2407 = vadd.f32 %v1541, %v1597
      %v2408 = vadd.f32 %v1548, %v1604
      %v2409 = vadd.f32 %v1555, %v1611
      %v2410 = vadd.f32 %v1562, %v1618
      %v2411 = vadd.f32 %v1625, %v1681
      %v2412 = vadd.f32 %v1632, %v1688
      %v2413 = vadd.f32 %v1639, %v1695
      %v2414 = vadd.f32 %v1646, %v1702
      %v2415 = vadd.f32 %v1653, %v1709
      %v2416 = vadd.f32 %v1660, %v1716
      %v2417 = vadd.f32 %v1667, %v1723
      %v2418 = vadd.f32 %v1674, %v1730
      %v2419 = vadd.f32 %v1737, %v1793
      %v2420 = vadd.f32 %v1744, %v1800
      %v2421 = vadd.f32 %v1751, %v1807
      %v2422 = vadd.f32 %v1758, %v1814
      %v2423 = vadd.f32 %v1765, %v1821
      %v2424 = vadd.f32 %v1772, %v1828
      %v2425 = vadd.f32 %v1779, %v1835
      %v2426 = vadd.f32 %v1786, %v1842
      %v2427 = vadd.f32 %v1849, %v1905
      %v2428 = vadd.f32 %v1856, %v1912
      %v2429 = vadd.f32 %v1863, %v1919
      %v2430 = vadd.f32 %v1870, %v1926
      %v2431 = vadd.f32 %v1877, %v1933
      %v2432 = vadd.f32 %v1884, %v1940
      %v2433 = vadd.f32 %v1891, %v1947
      %v2434 = vadd.f32 %v1898, %v1954
      %v2435 = vadd.f32 %v1961, %v2017
      %v2436 = vadd.f32 %v1968, %v2024
      %v2437 = vadd.f32 %v1975, %v2031
      %v2438 = vadd.f32 %v1982, %v2038
      %v2439 = vadd.f32 %v1989, %v2045
      %v2440 = vadd.f32 %v1996, %v2052
      %v2441 = vadd.f32 %v2003, %v2059
      %v2442 = vadd.f32 %v2010, %v2066
      %v2443 = vadd.f32 %v2073, %v2129
      %v2444 = vadd.f32 %v2080, %v2136
      %v2445 = vadd.f32 %v2087, %v2143
      %v2446 = vadd.f32 %v2094, %v2150
      %v2447 = vadd.f32 %v2101, %v2157
      %v2448 = vadd.f32 %v2108, %v2164
      %v2449 = vadd.f32 %v2115, %v2171
      %v2450 = vadd.f32 %v2122, %v2178
      %v2451 = vadd.f32 %v2185, %v2241
      %v2452 = vadd.f32 %v2192, %v2248
      %v2453 = vadd.f32 %v2199, %v2255
      %v2454 = vadd.f32 %v2206, %v2262
      %v2455 = vadd.f32 %v2213, %v2269
      %v2456 = vadd.f32 %v2220, %v2276
      %v2457 = vadd.f32 %v2227, %v2283
      %v2458 = vadd.f32 %v2234, %v2290
      %v2459 = vadd.f32 %v2297, %v2353
      %v2460 = vadd.f32 %v2304, %v2360
      %v2461 = vadd.f32 %v2311, %v2367
      %v2462 = vadd.f32 %v2318, %v2374
      %v2463 = vadd.f32 %v2325, %v2381
      %v2464 = vadd.f32 %v2332, %v2388
      %v2465 = vadd.f32 %v2339, %v2395
      %v2466 = vadd.f32 %v2346, %v2402
      %v2467 = vmul.f32 %v2403, 0.25
      %v2468 = vmul.f32 %v2404, 0.25
      %v2469 = vmul.f32 %v2405, 0.25
      %v2470 = vmul.f32 %v2406, 0.25
      %v2471 = vmul.f32 %v2407, 0.25
      %v2472 = vmul.f32 %v2408, 0.25
      %v2473 = vmul.f32 %v2409, 0.25
      %v2474 = vmul.f32 %v2410, 0.25
      %v2475 = vmul.f32 %v2411, 0.25
      %v2476 = vmul.f32 %v2412, 0.25
      %v2477 = vmul.f32 %v2413, 0.25
      %v2478 = vmul.f32 %v2414, 0.25
      %v2479 = vmul.f32 %v2415, 0.25
      %v2480 = vmul.f32 %v2416, 0.25
      %v2481 = vmul.f32 %v2417, 0.25
      %v2482 = vmul.f32 %v2418, 0.25
      %v2483 = vmul.f32 %v2419, 0.25
      %v2484 = vmul.f32 %v2420, 0.25
      %v2485 = vmul.f32 %v2421, 0.25
      %v2486 = vmul.f32 %v2422, 0.25
      %v2487 = vmul.f32 %v2423, 0.25
      %v2488 = vmul.f32 %v2424, 0.25
      %v2489 = vmul.f32 %v2425, 0.25
      %v2490 = vmul.f32 %v2426, 0.25
      %v2491 = vmul.f32 %v2427, 0.25
      %v2492 = vmul.f32 %v2428, 0.25
      %v2493 = vmul.f32 %v2429, 0.25
      %v2494 = vmul.f32 %v2430, 0.25
      %v2495 = vmul.f32 %v2431, 0.25
      %v2496 = vmul.f32 %v2432, 0.25
      %v2497 = vmul.f32 %v2433, 0.25
      %v2498 = vmul.f32 %v2434, 0.25
      %v2499 = vmul.f32 %v2435, 0.25
      %v2500 = vmul.f32 %v2436, 0.25
      %v2501 = vmul.f32 %v2437, 0.25
      %v2502 = vmul.f32 %v2438, 0.25
      %v2503 = vmul.f32 %v2439, 0.25
      %v2504 = vmul.f32 %v2440, 0.25
      %v2505 = vmul.f32 %v2441, 0.25
      %v2506 = vmul.f32 %v2442, 0.25
      %v2507 = vmul.f32 %v2443, 0.25
      %v2508 = vmul.f32 %v2444, 0.25
      %v2509 = vmul.f32 %v2445, 0.25
      %v2510 = vmul.f32 %v2446, 0.25
      %v2511 = vmul.f32 %v2447, 0.25
      %v2512 = vmul.f32 %v2448, 0.25
      %v2513 = vmul.f32 %v2449, 0.25
      %v2514 = vmul.f32 %v2450, 0.25
      %v2515 = vmul.f32 %v2451, 0.25
      %v2516 = vmul.f32 %v2452, 0.25
      %v2517 = vmul.f32 %v2453, 0.25
      %v2518 = vmul.f32 %v2454, 0.25
      %v2519 = vmul.f32 %v2455, 0.25
      %v2520 = vmul.f32 %v2456, 0.25
      %v2521 = vmul.f32 %v2457, 0.25
      %v2522 = vmul.f32 %v2458, 0.25
      %v2523 = vmul.f32 %v2459, 0.25
      %v2524 = vmul.f32 %v2460, 0.25
      %v2525 = vmul.f32 %v2461, 0.25
      %v2526 = vmul.f32 %v2462, 0.25
      %v2527 = vmul.f32 %v2463, 0.25
      %v2528 = vmul.f32 %v2464, 0.25
      %v2529 = vmul.f32 %v2465, 0.25
      %v2530 = vmul.f32 %v2466, 0.25
      %vm2531 = vcmask 130048
      %2532 = vst.msk [vmem:[#allocation2] sm:$0xff] %vm2531, 0.0
      %2533 = vst.msk [vmem:[#allocation2 + $0x8] sm:$0x3] %vm1506, 0.0
      %2534 = vst.msk [vmem:[#allocation2 + $0x10] sm:$0xff] %vm2531, 0.0
      %2535 = vst.msk [vmem:[#allocation2 + $0x18] sm:$0x3] %vm1506, 0.0
      %2536 = vst.msk [vmem:[#allocation2 + $0x20] sm:$0xff] %vm2531, 0.0
      %2537 = vst.msk [vmem:[#allocation2 + $0x28] sm:$0x3] %vm1506, 0.0
      %2538 = vst.msk [vmem:[#allocation2 + $0x30] sm:$0xff] %vm2531, 0.0
      %2539 = vst.msk [vmem:[#allocation2 + $0x38] sm:$0x3] %vm1506, 0.0
      %2540 = vst.msk [vmem:[#allocation2 + $0x40] sm:$0xff] %vm2531, 0.0
      %2541 = vst.msk [vmem:[#allocation2 + $0x48] sm:$0x3] %vm1506, 0.0
      %2542 = vst.msk [vmem:[#allocation2 + $0x50] sm:$0xff] %vm2531, 0.0
      %2543 = vst.msk [vmem:[#allocation2 + $0x58] sm:$0x3] %vm1506, 0.0
      %2544 = vst.msk [vmem:[#allocation2 + $0x60] sm:$0xff] %vm2531, 0.0
      %2545 = vst.msk [vmem:[#allocation2 + $0x68] sm:$0x3] %vm1506, 0.0
      %2546 = vst.msk [vmem:[#allocation2 + $0x70] sm:$0xff] %vm2531, 0.0
      %2547 = vst.msk [vmem:[#allocation2 + $0x78] sm:$0x3] %vm1506, 0.0
      %2548 = vst.msk [vmem:[#allocation2 + $0x80] sm:$0xff] %vm2531, 0.0
      %2549 = vst.msk [vmem:[#allocation2 + $0x88] sm:$0x3] %vm1506, 0.0
      %2550 = vst.msk [vmem:[#allocation2 + $0x90] sm:$0xff] %vm2531, 0.0
      %2551 = vst.msk [vmem:[#allocation2 + $0x98] sm:$0x3] %vm1506, 0.0
      %vm2616 = vcmask 1041409
      %v2617 = vsel %vm2616, %v2468, %v2467
      %vm2618 = vcmask 1042434
      %v2619 = vsel %vm2618, %v2469, %v2617
      %vm2620 = vcmask 1043459
      %v2621 = vsel %vm2620, %v2470, %v2619
      %vm2622 = vcmask 1044484
      %v2623 = vsel %vm2622, %v2471, %v2621
      %vm2624 = vcmask 1045509
      %v2625 = vsel %vm2624, %v2472, %v2623
      %vm2626 = vcmask 1046534
      %v2627 = vsel %vm2626, %v2473, %v2625
      %vm2628 = vcmask 1047559
      %v2629 = vsel %vm2628, %v2474, %v2627
      %v2630 = vsel %vm2616, %v2476, %v2475
      %v2631 = vsel %vm2618, %v2477, %v2630
      %v2632 = vsel %vm2620, %v2478, %v2631
      %v2633 = vsel %vm2622, %v2479, %v2632
      %v2634 = vsel %vm2624, %v2480, %v2633
      %v2635 = vsel %vm2626, %v2481, %v2634
      %v2636 = vsel %vm2628, %v2482, %v2635
      %v2637 = vsel %vm2616, %v2484, %v2483
      %v2638 = vsel %vm2618, %v2485, %v2637
      %v2639 = vsel %vm2620, %v2486, %v2638
      %v2640 = vsel %vm2622, %v2487, %v2639
      %v2641 = vsel %vm2624, %v2488, %v2640
      %v2642 = vsel %vm2626, %v2489, %v2641
      %v2643 = vsel %vm2628, %v2490, %v2642
      %v2644 = vsel %vm2616, %v2492, %v2491
      %v2645 = vsel %vm2618, %v2493, %v2644
      %v2646 = vsel %vm2620, %v2494, %v2645
      %v2647 = vsel %vm2622, %v2495, %v2646
      %v2648 = vsel %vm2624, %v2496, %v2647
      %v2649 = vsel %vm2626, %v2497, %v2648
      %v2650 = vsel %vm2628, %v2498, %v2649
      %v2651 = vsel %vm2616, %v2500, %v2499
      %v2652 = vsel %vm2618, %v2501, %v2651
      %v2653 = vsel %vm2620, %v2502, %v2652
      %v2654 = vsel %vm2622, %v2503, %v2653
      %v2655 = vsel %vm2624, %v2504, %v2654
      %v2656 = vsel %vm2626, %v2505, %v2655
      %v2657 = vsel %vm2628, %v2506, %v2656
      %v2658 = vsel %vm2616, %v2508, %v2507
      %v2659 = vsel %vm2618, %v2509, %v2658
      %v2660 = vsel %vm2620, %v2510, %v2659
      %v2661 = vsel %vm2622, %v2511, %v2660
      %v2662 = vsel %vm2624, %v2512, %v2661
      %v2663 = vsel %vm2626, %v2513, %v2662
      %v2664 = vsel %vm2628, %v2514, %v2663
      %v2665 = vsel %vm2616, %v2516, %v2515
      %v2666 = vsel %vm2618, %v2517, %v2665
      %v2667 = vsel %vm2620, %v2518, %v2666
      %v2668 = vsel %vm2622, %v2519, %v2667
      %v2669 = vsel %vm2624, %v2520, %v2668
      %v2670 = vsel %vm2626, %v2521, %v2669
      %v2671 = vsel %vm2628, %v2522, %v2670
      %v2672 = vsel %vm2616, %v2524, %v2523
      %v2673 = vsel %vm2618, %v2525, %v2672
      %v2674 = vsel %vm2620, %v2526, %v2673
      %v2675 = vsel %vm2622, %v2527, %v2674
      %v2676 = vsel %vm2624, %v2528, %v2675
      %v2677 = vsel %vm2626, %v2529, %v2676
      %v2678 = vsel %vm2628, %v2530, %v2677
      %s2687 = scalar_lea.vmem [#allocation2], 16
      %2688 = vst.msk [vmem:[%s2687 + $0x1] sm:$0xff] %vm2531, %v2629
      %2689 = vst.msk [vmem:[%s2687 + $0x11] sm:$0xff] %vm2531, %v2636
      %2690 = vst.msk [vmem:[%s2687 + $0x21] sm:$0xff] %vm2531, %v2643
      %2691 = vst.msk [vmem:[%s2687 + $0x31] sm:$0xff] %vm2531, %v2650
      %2692 = vst.msk [vmem:[%s2687 + $0x41] sm:$0xff] %vm2531, %v2657
      %2693 = vst.msk [vmem:[%s2687 + $0x51] sm:$0xff] %vm2531, %v2664
      %2694 = vst.msk [vmem:[%s2687 + $0x61] sm:$0xff] %vm2531, %v2671
      %2695 = vst.msk [vmem:[%s2687 + $0x71] sm:$0xff] %vm2531, %v2678
      %v2696 = vcombine.low %v2629, %v2643
      %v2697 = vcombine.high %v2629, %v2643
      %v2699 = vunpack.c.l.s4 1983009808
      %v2700 = vunpack.c.0.s8 %v2699
      %v2701 = vlaneseq
      %v2702 = vshrl.u32 %v2701, 7
      %v2703 = vsub.s32 %v2700, %v2702
      %v2704 = vrot.slane %v2696, %v2703
      %v2706 = vunpack.c.l.s4 1983009808
      %v2707 = vunpack.c.0.s8 %v2706
      %v2708 = vlaneseq
      %v2709 = vshrl.u32 %v2708, 7
      %v2710 = vsub.s32 %v2707, %v2709
      %v2711 = vrot.slane %v2697, %v2710
      %v2712 = vcombine.low %v2636, %v2650
      %v2713 = vcombine.high %v2636, %v2650
      %v2715 = vunpack.c.l.s4 1983009808
      %v2716 = vunpack.c.0.s8 %v2715
      %v2717 = vlaneseq
      %v2718 = vshrl.u32 %v2717, 7
      %v2719 = vsub.s32 %v2716, %v2718
      %v2720 = vrot.slane %v2712, %v2719
      %v2722 = vunpack.c.l.s4 1983009808
      %v2723 = vunpack.c.0.s8 %v2722
      %v2724 = vlaneseq
      %v2725 = vshrl.u32 %v2724, 7
      %v2726 = vsub.s32 %v2723, %v2725
      %v2727 = vrot.slane %v2713, %v2726
      %v2728 = vcombine.low %v2657, %v2671
      %v2729 = vcombine.high %v2657, %v2671
      %v2731 = vunpack.c.l.s4 1983009808
      %v2732 = vunpack.c.0.s8 %v2731
      %v2733 = vlaneseq
      %v2734 = vshrl.u32 %v2733, 7
      %v2735 = vsub.s32 %v2732, %v2734
      %v2736 = vrot.slane %v2728, %v2735
      %v2738 = vunpack.c.l.s4 1983009808
      %v2739 = vunpack.c.0.s8 %v2738
      %v2740 = vlaneseq
      %v2741 = vshrl.u32 %v2740, 7
      %v2742 = vsub.s32 %v2739, %v2741
      %v2743 = vrot.slane %v2729, %v2742
      %v2744 = vcombine.low %v2664, %v2678
      %v2745 = vcombine.high %v2664, %v2678
      %v2747 = vunpack.c.l.s4 1983009808
      %v2748 = vunpack.c.0.s8 %v2747
      %v2749 = vlaneseq
      %v2750 = vshrl.u32 %v2749, 7
      %v2751 = vsub.s32 %v2748, %v2750
      %v2752 = vrot.slane %v2744, %v2751
      %v2754 = vunpack.c.l.s4 1983009808
      %v2755 = vunpack.c.0.s8 %v2754
      %v2756 = vlaneseq
      %v2757 = vshrl.u32 %v2756, 7
      %v2758 = vsub.s32 %v2755, %v2757
      %v2759 = vrot.slane %v2745, %v2758
      %v2760 = vcombine.low %v2704, %v2720
      %v2761 = vcombine.high %v2704, %v2720
      %v2763 = vunpack.c.l.s4 1934713408
      %v2764 = vunpack.c.0.s8 %v2763
      %v2765 = vlaneseq
      %v2766 = vshrl.u32 %v2765, 7
      %v2767 = vsub.s32 %v2764, %v2766
      %v2768 = vrot.slane %v2760, %v2767
      %v2770 = vunpack.c.l.s4 1934713408
      %v2771 = vunpack.c.0.s8 %v2770
      %v2772 = vlaneseq
      %v2773 = vshrl.u32 %v2772, 7
      %v2774 = vsub.s32 %v2771, %v2773
      %v2775 = vrot.slane %v2761, %v2774
      %v2776 = vcombine.low %v2711, %v2727
      %v2777 = vcombine.high %v2711, %v2727
      %v2779 = vunpack.c.l.s4 1934713408
      %v2780 = vunpack.c.0.s8 %v2779
      %v2781 = vlaneseq
      %v2782 = vshrl.u32 %v2781, 7
      %v2783 = vsub.s32 %v2780, %v2782
      %v2784 = vrot.slane %v2776, %v2783
      %v2786 = vunpack.c.l.s4 1934713408
      %v2787 = vunpack.c.0.s8 %v2786
      %v2788 = vlaneseq
      %v2789 = vshrl.u32 %v2788, 7
      %v2790 = vsub.s32 %v2787, %v2789
      %v2791 = vrot.slane %v2777, %v2790
      %v2792 = vcombine.low %v2736, %v2752
      %v2793 = vcombine.high %v2736, %v2752
      %v2795 = vunpack.c.l.s4 1934713408
      %v2796 = vunpack.c.0.s8 %v2795
      %v2797 = vlaneseq
      %v2798 = vshrl.u32 %v2797, 7
      %v2799 = vsub.s32 %v2796, %v2798
      %v2800 = vrot.slane %v2792, %v2799
      %v2802 = vunpack.c.l.s4 1934713408
      %v2803 = vunpack.c.0.s8 %v2802
      %v2804 = vlaneseq
      %v2805 = vshrl.u32 %v2804, 7
      %v2806 = vsub.s32 %v2803, %v2805
      %v2807 = vrot.slane %v2793, %v2806
      %v2808 = vcombine.low %v2743, %v2759
      %v2809 = vcombine.high %v2743, %v2759
      %v2811 = vunpack.c.l.s4 1934713408
      %v2812 = vunpack.c.0.s8 %v2811
      %v2813 = vlaneseq
      %v2814 = vshrl.u32 %v2813, 7
      %v2815 = vsub.s32 %v2812, %v2814
      %v2816 = vrot.slane %v2808, %v2815
      %v2818 = vunpack.c.l.s4 1934713408
      %v2819 = vunpack.c.0.s8 %v2818
      %v2820 = vlaneseq
      %v2821 = vshrl.u32 %v2820, 7
      %v2822 = vsub.s32 %v2819, %v2821
      %v2823 = vrot.slane %v2809, %v2822
      %v2824 = vcombine.low %v2768, %v2800
      %v2825 = vcombine.high %v2768, %v2800
      %v2826 = vcombine.low %v2775, %v2807
      %v2827 = vcombine.high %v2775, %v2807
      %v2828 = vcombine.low %v2784, %v2816
      %v2829 = vcombine.high %v2784, %v2816
      %v2830 = vcombine.low %v2791, %v2823
      %v2831 = vcombine.high %v2791, %v2823
      %2833 = vrot.lane.b32.xlu0 %v2825, 16
      %v2834 = vpop.permute.xlu0 %2833
      %2837 = vrot.lane.b32.xlu0 %v2826, 32
      %v2838 = vpop.permute.xlu0 %2837
      %2841 = vrot.lane.b32.xlu0 %v2827, 48
      %v2842 = vpop.permute.xlu0 %2841
      %2845 = vrot.lane.b32.xlu0 %v2828, 64
      %v2846 = vpop.permute.xlu0 %2845
      %2849 = vrot.lane.b32.xlu0 %v2829, 80
      %v2850 = vpop.permute.xlu0 %2849
      %2853 = vrot.lane.b32.xlu0 %v2830, 96
      %v2854 = vpop.permute.xlu0 %2853
      %2857 = vrot.lane.b32.xlu0 %v2831, 112
      %v2858 = vpop.permute.xlu0 %2857
      %v2860 = vsel %vm2531, %v2824, %v2834
      %vm2861 = vcmask 261120
      %v2862 = vsel %vm2861, %v2860, %v2838
      %vm2863 = vcmask 392192
      %v2864 = vsel %vm2863, %v2862, %v2842
      %vm2865 = vcmask 523264
      %v2866 = vsel %vm2865, %v2864, %v2846
      %vm2867 = vcmask 654336
      %v2868 = vsel %vm2867, %v2866, %v2850
      %vm2869 = vcmask 785408
      %v2870 = vsel %vm2869, %v2868, %v2854
      %vm2871 = vcmask 916480
      %v2872 = vsel %vm2871, %v2870, %v2858
      %v2873 = vld [vmem:[%s3] sm:$0xff]
      %v2874 = vld [vmem:[%s3 + $0x8] sm:$0xff]
      %v2875 = vld [vmem:[%s3 + $0x10] sm:$0xff]
      %v2876 = vld [vmem:[%s3 + $0x18] sm:$0xff]
      %v2877 = vld [vmem:[%s3 + $0x20] sm:$0xff]
      %v2878 = vld [vmem:[%s3 + $0x28] sm:$0xff]
      %v2879 = vld [vmem:[%s3 + $0x30] sm:$0xff]
      %v2880 = vld [vmem:[%s3 + $0x38] sm:$0xff]
      %v2881 = vld [vmem:[%s3 + $0x40] sm:$0xff]
      %v2882 = vld [vmem:[%s3 + $0x48] sm:$0xff]
      %v2883 = vld [vmem:[%s3 + $0x50] sm:$0xff]
      %v2884 = vld [vmem:[%s3 + $0x58] sm:$0xff]
      %v2885 = vld [vmem:[%s3 + $0x60] sm:$0xff]
      %v2886 = vld [vmem:[%s3 + $0x68] sm:$0xff]
      %v2887 = vld [vmem:[%s3 + $0x70] sm:$0xff]
      %v2888 = vld [vmem:[%s3 + $0x78] sm:$0xff]
      %2889 = vmatprep.subr.mxu0 0.0
      %2890 = vmatpush1.msra.mxu0 %v2888
      %2891 = vmatprep.subr.mxu0 0.0
      %2892 = vmatpush1.msra.mxu0 %v2887
      %2893 = vmatprep.subr.mxu0 0.0
      %2894 = vmatpush1.msra.mxu0 %v2886
      %2895 = vmatprep.subr.mxu0 0.0
      %2896 = vmatpush1.msra.mxu0 %v2885
      %2897 = vmatprep.subr.mxu0 0.0
      %2898 = vmatpush1.msra.mxu0 %v2884
      %2899 = vmatprep.subr.mxu0 0.0
      %2900 = vmatpush1.msra.mxu0 %v2883
      %2901 = vmatprep.subr.mxu0 0.0
      %2902 = vmatpush1.msra.mxu0 %v2882
      %2903 = vmatprep.subr.mxu0 0.0
      %2904 = vmatpush1.msra.mxu0 %v2881
      %2905 = vmatprep.subr.mxu0 0.0
      %2906 = vmatpush1.msra.mxu0 %v2880
      %2907 = vmatprep.subr.mxu0 0.0
      %2908 = vmatpush1.msra.mxu0 %v2879
      %2909 = vmatprep.subr.mxu0 0.0
      %2910 = vmatpush1.msra.mxu0 %v2878
      %2911 = vmatprep.subr.mxu0 0.0
      %2912 = vmatpush1.msra.mxu0 %v2877
      %2913 = vmatprep.subr.mxu0 0.0
      %2914 = vmatpush1.msra.mxu0 %v2876
      %2915 = vmatprep.subr.mxu0 0.0
      %2916 = vmatpush1.msra.mxu0 %v2875
      %2917 = vmatprep.subr.mxu0 0.0
      %2918 = vmatpush1.msra.mxu0 %v2874
      %2919 = vmatprep.subr.mxu0 0.0
      %2920 = vmatpush1.msra.mxu0 %v2873
      %2921 = vmatprep.subr.mxu0 0.0
      %2922 = vmatpush2.msra.mxu0 0.0
      %2923 = vmatprep.subr.mxu0 0.0
      %2924 = vmatpush2.msra.mxu0 0.0
      %2925 = vmatprep.subr.mxu0 0.0
      %2926 = vmatpush2.msra.mxu0 0.0
      %2927 = vmatprep.subr.mxu0 0.0
      %2928 = vmatpush2.msra.mxu0 0.0
      %2929 = vmatprep.subr.mxu0 0.0
      %2930 = vmatpush2.msra.mxu0 0.0
      %2931 = vmatprep.subr.mxu0 0.0
      %2932 = vmatpush2.msra.mxu0 0.0
      %2933 = vmatprep.subr.mxu0 0.0
      %2934 = vmatpush2.msra.mxu0 0.0
      %2935 = vmatprep.subr.mxu0 0.0
      %2936 = vmatpush2.msra.mxu0 0.0
      %2937 = vmatprep.subr.mxu0 0.0
      %2938 = vmatpush2.msra.mxu0 0.0
      %2939 = vmatprep.subr.mxu0 0.0
      %2940 = vmatpush2.msra.mxu0 0.0
      %2941 = vmatprep.subr.mxu0 0.0
      %2942 = vmatpush2.msra.mxu0 0.0
      %2943 = vmatprep.subr.mxu0 0.0
      %2944 = vmatpush2.msra.mxu0 0.0
      %2945 = vmatprep.subr.mxu0 0.0
      %2946 = vmatpush2.msra.mxu0 0.0
      %2947 = vmatprep.subr.mxu0 0.0
      %2948 = vmatpush2.msra.mxu0 0.0
      %2949 = vmatprep.subr.mxu0 0.0
      %2950 = vmatpush2.msra.mxu0 0.0
      %2951 = vmatprep.subr.mxu0 0.0
      %2952 = vmatpush2.msra.mxu0 0.0
      %2953 = vmatprep.mubr.f32.mxu0 0.0
      %2954 = vmatmul.mubr.f32.gmra.mxu0 %v2872
      %v2955 = vpop.f32.mrf.mxu0
      %v2956 = vadd.f32 0.0, %v2955
      %v2957 = vpop.f32.mrf.mxu0
      %2958 = vdwg.mxu0
      %v2959 = vld [vmem:[%s4] sm:$0xff]
      %v2960 = vld [vmem:[%s4 + $0x8] sm:$0xff]
      %vm2961 = vcmask 64512
      %v2963 = vsel %vm2961, %v2959, 0
      %v2966 = vsel %vm2961, %v2960, 0
      %2968 = vmatprep.subr.mxu0 0.0
      %2969 = vmatpush1.msra.mxu0 0.0
      %2970 = vmatprep.subr.mxu0 0.0
      %2971 = vmatpush1.msra.mxu0 0.0
      %2972 = vmatprep.subr.mxu0 0.0
      %2973 = vmatpush1.msra.mxu0 0.0
      %2974 = vmatprep.subr.mxu0 0.0
      %2975 = vmatpush1.msra.mxu0 0.0
      %2976 = vmatprep.subr.mxu0 0.0
      %2977 = vmatpush1.msra.mxu0 0.0
      %2978 = vmatprep.subr.mxu0 0.0
      %2979 = vmatpush1.msra.mxu0 0.0
      %2980 = vmatprep.subr.mxu0 0.0
      %2981 = vmatpush1.msra.mxu0 0.0
      %2982 = vmatprep.subr.mxu0 0.0
      %2983 = vmatpush1.msra.mxu0 0.0
      %2984 = vmatprep.subr.mxu0 0.0
      %2985 = vmatpush1.msra.mxu0 0.0
      %2986 = vmatprep.subr.mxu0 0.0
      %2987 = vmatpush1.msra.mxu0 0.0
      %2988 = vmatprep.subr.mxu0 0.0
      %2989 = vmatpush1.msra.mxu0 0.0
      %2990 = vmatprep.subr.mxu0 0.0
      %2991 = vmatpush1.msra.mxu0 0.0
      %2992 = vmatprep.subr.mxu0 0.0
      %2993 = vmatpush1.msra.mxu0 0.0
      %2994 = vmatprep.subr.mxu0 0.0
      %2995 = vmatpush1.msra.mxu0 0.0
      %2996 = vmatprep.subr.mxu0 0.0
      %2997 = vmatpush1.msra.mxu0 0.0
      %2998 = vmatprep.subr.mxu0 0.0
      %2999 = vmatpush1.msra.mxu0 %v2956
      %3000 = vmatprep.subr.mxu0 0.0
      %3001 = vmatpush2.msra.mxu0 0.0
      %3002 = vmatprep.subr.mxu0 0.0
      %3003 = vmatpush2.msra.mxu0 0.0
      %3004 = vmatprep.subr.mxu0 0.0
      %3005 = vmatpush2.msra.mxu0 0.0
      %3006 = vmatprep.subr.mxu0 0.0
      %3007 = vmatpush2.msra.mxu0 0.0
      %3008 = vmatprep.subr.mxu0 0.0
      %3009 = vmatpush2.msra.mxu0 0.0
      %3010 = vmatprep.subr.mxu0 0.0
      %3011 = vmatpush2.msra.mxu0 0.0
      %3012 = vmatprep.subr.mxu0 0.0
      %3013 = vmatpush2.msra.mxu0 0.0
      %3014 = vmatprep.subr.mxu0 0.0
      %3015 = vmatpush2.msra.mxu0 0.0
      %3016 = vmatprep.subr.mxu0 0.0
      %3017 = vmatpush2.msra.mxu0 0.0
      %3018 = vmatprep.subr.mxu0 0.0
      %3019 = vmatpush2.msra.mxu0 0.0
      %3020 = vmatprep.subr.mxu0 0.0
      %3021 = vmatpush2.msra.mxu0 0.0
      %3022 = vmatprep.subr.mxu0 0.0
      %3023 = vmatpush2.msra.mxu0 0.0
      %3024 = vmatprep.subr.mxu0 0.0
      %3025 = vmatpush2.msra.mxu0 0.0
      %3026 = vmatprep.subr.mxu0 0.0
      %3027 = vmatpush2.msra.mxu0 0.0
      %3028 = vmatprep.subr.mxu0 0.0
      %3029 = vmatpush2.msra.mxu0 0.0
      %3030 = vmatprep.subr.mxu0 0.0
      %3031 = vmatpush2.msra.mxu0 0.0
      %3032 = vmatprep.mubr.f32.mxu0 0.0
      %3033 = vmatmul.mubr.f32.gmra.mxu0 %v2963
      %v3034 = vpop.f32.mrf.mxu0
      %v3035 = vadd.f32 0.0, %v3034
      %v3036 = vpop.f32.mrf.mxu0
      %3037 = vmatprep.mubr.f32.mxu0 0.0
      %3038 = vmatmul.mubr.f32.gmra.mxu0 %v2966
      %v3039 = vpop.f32.mrf.mxu0
      %v3040 = vadd.f32 0.0, %v3039
      %v3041 = vpop.f32.mrf.mxu0
      %3042 = vdwg.mxu0
      %3043 = vst [vmem:[%s394] sm:$0xff] %v3035
      %3044 = vst [vmem:[%s394 + $0x8] sm:$0xff] %v3040
      %v3045 = vld [vmem:[#allocation2] sm:$0xff]
      %v3046 = vld [vmem:[#allocation2 + $0x10] sm:$0xff]
      %v3047 = vld [vmem:[#allocation2 + $0x20] sm:$0xff]
      %v3048 = vld [vmem:[#allocation2 + $0x30] sm:$0xff]
      %v3049 = vld [vmem:[#allocation2 + $0x40] sm:$0xff]
      %v3050 = vld [vmem:[#allocation2 + $0x50] sm:$0xff]
      %v3051 = vld [vmem:[#allocation2 + $0x60] sm:$0xff]
      %v3052 = vld [vmem:[#allocation2 + $0x70] sm:$0xff]
      %v3053 = vld [vmem:[%s5] sm:$0xff]
      %v3054 = vld [vmem:[%s5 + $0x8] sm:$0xff]
      %v3055 = vld [vmem:[#allocation2 + $0x1] sm:$0xff]
      %v3056 = vld [vmem:[#allocation2 + $0x11] sm:$0xff]
      %v3057 = vld [vmem:[#allocation2 + $0x21] sm:$0xff]
      %v3058 = vld [vmem:[#allocation2 + $0x31] sm:$0xff]
      %v3059 = vld [vmem:[#allocation2 + $0x41] sm:$0xff]
      %v3060 = vld [vmem:[#allocation2 + $0x51] sm:$0xff]
      %v3061 = vld [vmem:[#allocation2 + $0x61] sm:$0xff]
      %v3062 = vld [vmem:[#allocation2 + $0x71] sm:$0xff]
      %s3063 = scalar_lea.vmem %s5, 16
      %v3064 = vld [vmem:[%s3063] sm:$0xff]
      %v3065 = vld [vmem:[%s3063 + $0x8] sm:$0xff]
      %v3067 = vsel %vm2531, %v3055, 0
      %v3070 = vsel %vm2531, %v3056, 0
      %v3073 = vsel %vm2531, %v3057, 0
      %v3076 = vsel %vm2531, %v3058, 0
      %v3079 = vsel %vm2531, %v3059, 0
      %v3082 = vsel %vm2531, %v3060, 0
      %v3085 = vsel %vm2531, %v3061, 0
      %v3088 = vsel %vm2531, %v3062, 0
      %3090 = vmatprep.subr.mxu0 0.0
      %3091 = vmatpush1.msra.mxu0 0.0
      %3092 = vmatprep.subr.mxu0 0.0
      %3093 = vmatpush1.msra.mxu0 0.0
      %3094 = vmatprep.subr.mxu0 0.0
      %3095 = vmatpush1.msra.mxu0 0.0
      %3096 = vmatprep.subr.mxu0 0.0
      %3097 = vmatpush1.msra.mxu0 0.0
      %3098 = vmatprep.subr.mxu0 0.0
      %3099 = vmatpush1.msra.mxu0 0.0
      %3100 = vmatprep.subr.mxu0 0.0
      %3101 = vmatpush1.msra.mxu0 0.0
      %3102 = vmatprep.subr.mxu0 0.0
      %3103 = vmatpush1.msra.mxu0 0.0
      %3104 = vmatprep.subr.mxu0 0.0
      %3105 = vmatpush1.msra.mxu0 0.0
      %3106 = vmatprep.subr.mxu0 0.0
      %3107 = vmatpush1.msra.mxu0 0.0
      %3108 = vmatprep.subr.mxu0 0.0
      %3109 = vmatpush1.msra.mxu0 0.0
      %3110 = vmatprep.subr.mxu0 0.0
      %3111 = vmatpush1.msra.mxu0 0.0
      %3112 = vmatprep.subr.mxu0 0.0
      %3113 = vmatpush1.msra.mxu0 0.0
      %3114 = vmatprep.subr.mxu0 0.0
      %3115 = vmatpush1.msra.mxu0 0.0
      %3116 = vmatprep.subr.mxu0 0.0
      %3117 = vmatpush1.msra.mxu0 0.0
      %3118 = vmatprep.subr.mxu0 0.0
      %3119 = vmatpush1.msra.mxu0 %v3065
      %3120 = vmatprep.subr.mxu0 0.0
      %3121 = vmatpush1.msra.mxu0 %v3064
      %3122 = vmatprep.subr.mxu0 0.0
      %3123 = vmatpush2.msra.mxu0 0.0
      %3124 = vmatprep.subr.mxu0 0.0
      %3125 = vmatpush2.msra.mxu0 0.0
      %3126 = vmatprep.subr.mxu0 0.0
      %3127 = vmatpush2.msra.mxu0 0.0
      %3128 = vmatprep.subr.mxu0 0.0
      %3129 = vmatpush2.msra.mxu0 0.0
      %3130 = vmatprep.subr.mxu0 0.0
      %3131 = vmatpush2.msra.mxu0 0.0
      %3132 = vmatprep.subr.mxu0 0.0
      %3133 = vmatpush2.msra.mxu0 0.0
      %3134 = vmatprep.subr.mxu0 0.0
      %3135 = vmatpush2.msra.mxu0 0.0
      %3136 = vmatprep.subr.mxu0 0.0
      %3137 = vmatpush2.msra.mxu0 0.0
      %3138 = vmatprep.subr.mxu0 0.0
      %3139 = vmatpush2.msra.mxu0 0.0
      %3140 = vmatprep.subr.mxu0 0.0
      %3141 = vmatpush2.msra.mxu0 0.0
      %3142 = vmatprep.subr.mxu0 0.0
      %3143 = vmatpush2.msra.mxu0 0.0
      %3144 = vmatprep.subr.mxu0 0.0
      %3145 = vmatpush2.msra.mxu0 0.0
      %3146 = vmatprep.subr.mxu0 0.0
      %3147 = vmatpush2.msra.mxu0 0.0
      %3148 = vmatprep.subr.mxu0 0.0
      %3149 = vmatpush2.msra.mxu0 0.0
      %3150 = vmatprep.subr.mxu0 0.0
      %3151 = vmatpush2.msra.mxu0 0.0
      %3152 = vmatprep.subr.mxu0 0.0
      %3153 = vmatpush2.msra.mxu0 0.0
      %3154 = vmatprep.mubr.f32.mxu0 0.0
      %3155 = vmatmul.mubr.f32.gmra.mxu0 %v3067
      %v3156 = vpop.f32.mrf.mxu0
      %v3157 = vadd.f32 0.0, %v3156
      %v3158 = vpop.f32.mrf.mxu0
      %3159 = vmatprep.mubr.f32.mxu0 0.0
      %3160 = vmatmul.mubr.f32.gmra.mxu0 %v3070
      %v3161 = vpop.f32.mrf.mxu0
      %v3162 = vadd.f32 0.0, %v3161
      %v3163 = vpop.f32.mrf.mxu0
      %3164 = vmatprep.mubr.f32.mxu0 0.0
      %3165 = vmatmul.mubr.f32.gmra.mxu0 %v3073
      %v3166 = vpop.f32.mrf.mxu0
      %v3167 = vadd.f32 0.0, %v3166
      %v3168 = vpop.f32.mrf.mxu0
      %3169 = vmatprep.mubr.f32.mxu0 0.0
      %3170 = vmatmul.mubr.f32.gmra.mxu0 %v3076
      %v3171 = vpop.f32.mrf.mxu0
      %v3172 = vadd.f32 0.0, %v3171
      %v3173 = vpop.f32.mrf.mxu0
      %3174 = vmatprep.mubr.f32.mxu0 0.0
      %3175 = vmatmul.mubr.f32.gmra.mxu0 %v3079
      %v3176 = vpop.f32.mrf.mxu0
      %v3177 = vadd.f32 0.0, %v3176
      %v3178 = vpop.f32.mrf.mxu0
      %3179 = vmatprep.mubr.f32.mxu0 0.0
      %3180 = vmatmul.mubr.f32.gmra.mxu0 %v3082
      %v3181 = vpop.f32.mrf.mxu0
      %v3182 = vadd.f32 0.0, %v3181
      %v3183 = vpop.f32.mrf.mxu0
      %3184 = vmatprep.mubr.f32.mxu0 0.0
      %3185 = vmatmul.mubr.f32.gmra.mxu0 %v3085
      %v3186 = vpop.f32.mrf.mxu0
      %v3187 = vadd.f32 0.0, %v3186
      %v3188 = vpop.f32.mrf.mxu0
      %3189 = vmatprep.mubr.f32.mxu0 0.0
      %3190 = vmatmul.mubr.f32.gmra.mxu0 %v3088
      %v3191 = vpop.f32.mrf.mxu0
      %v3192 = vadd.f32 0.0, %v3191
      %v3193 = vpop.f32.mrf.mxu0
      %3194 = vdwg.mxu0
      %v3196 = vsel %vm2531, %v3045, 0
      %v3199 = vsel %vm2531, %v3046, 0
      %v3202 = vsel %vm2531, %v3047, 0
      %v3205 = vsel %vm2531, %v3048, 0
      %v3208 = vsel %vm2531, %v3049, 0
      %v3211 = vsel %vm2531, %v3050, 0
      %v3214 = vsel %vm2531, %v3051, 0
      %v3217 = vsel %vm2531, %v3052, 0
      %3219 = vmatprep.subr.mxu0 0.0
      %3220 = vmatpush1.msra.mxu0 0.0
      %3221 = vmatprep.subr.mxu0 0.0
      %3222 = vmatpush1.msra.mxu0 0.0
      %3223 = vmatprep.subr.mxu0 0.0
      %3224 = vmatpush1.msra.mxu0 0.0
      %3225 = vmatprep.subr.mxu0 0.0
      %3226 = vmatpush1.msra.mxu0 0.0
      %3227 = vmatprep.subr.mxu0 0.0
      %3228 = vmatpush1.msra.mxu0 0.0
      %3229 = vmatprep.subr.mxu0 0.0
      %3230 = vmatpush1.msra.mxu0 0.0
      %3231 = vmatprep.subr.mxu0 0.0
      %3232 = vmatpush1.msra.mxu0 0.0
      %3233 = vmatprep.subr.mxu0 0.0
      %3234 = vmatpush1.msra.mxu0 0.0
      %3235 = vmatprep.subr.mxu0 0.0
      %3236 = vmatpush1.msra.mxu0 0.0
      %3237 = vmatprep.subr.mxu0 0.0
      %3238 = vmatpush1.msra.mxu0 0.0
      %3239 = vmatprep.subr.mxu0 0.0
      %3240 = vmatpush1.msra.mxu0 0.0
      %3241 = vmatprep.subr.mxu0 0.0
      %3242 = vmatpush1.msra.mxu0 0.0
      %3243 = vmatprep.subr.mxu0 0.0
      %3244 = vmatpush1.msra.mxu0 0.0
      %3245 = vmatprep.subr.mxu0 0.0
      %3246 = vmatpush1.msra.mxu0 0.0
      %3247 = vmatprep.subr.mxu0 0.0
      %3248 = vmatpush1.msra.mxu0 %v3054
      %3249 = vmatprep.subr.mxu0 0.0
      %3250 = vmatpush1.msra.mxu0 %v3053
      %3251 = vmatprep.subr.mxu0 0.0
      %3252 = vmatpush2.msra.mxu0 0.0
      %3253 = vmatprep.subr.mxu0 0.0
      %3254 = vmatpush2.msra.mxu0 0.0
      %3255 = vmatprep.subr.mxu0 0.0
      %3256 = vmatpush2.msra.mxu0 0.0
      %3257 = vmatprep.subr.mxu0 0.0
      %3258 = vmatpush2.msra.mxu0 0.0
      %3259 = vmatprep.subr.mxu0 0.0
      %3260 = vmatpush2.msra.mxu0 0.0
      %3261 = vmatprep.subr.mxu0 0.0
      %3262 = vmatpush2.msra.mxu0 0.0
      %3263 = vmatprep.subr.mxu0 0.0
      %3264 = vmatpush2.msra.mxu0 0.0
      %3265 = vmatprep.subr.mxu0 0.0
      %3266 = vmatpush2.msra.mxu0 0.0
      %3267 = vmatprep.subr.mxu0 0.0
      %3268 = vmatpush2.msra.mxu0 0.0
      %3269 = vmatprep.subr.mxu0 0.0
      %3270 = vmatpush2.msra.mxu0 0.0
      %3271 = vmatprep.subr.mxu0 0.0
      %3272 = vmatpush2.msra.mxu0 0.0
      %3273 = vmatprep.subr.mxu0 0.0
      %3274 = vmatpush2.msra.mxu0 0.0
      %3275 = vmatprep.subr.mxu0 0.0
      %3276 = vmatpush2.msra.mxu0 0.0
      %3277 = vmatprep.subr.mxu0 0.0
      %3278 = vmatpush2.msra.mxu0 0.0
      %3279 = vmatprep.subr.mxu0 0.0
      %3280 = vmatpush2.msra.mxu0 0.0
      %3281 = vmatprep.subr.mxu0 0.0
      %3282 = vmatpush2.msra.mxu0 0.0
      %3283 = vmatprep.mubr.f32.mxu0 0.0
      %3284 = vmatmul.mubr.f32.gmra.mxu0 %v3196
      %v3285 = vpop.f32.mrf.mxu0
      %v3286 = vadd.f32 %v3157, %v3285
      %v3287 = vpop.f32.mrf.mxu0
      %3288 = vmatprep.mubr.f32.mxu0 0.0
      %3289 = vmatmul.mubr.f32.gmra.mxu0 %v3199
      %v3290 = vpop.f32.mrf.mxu0
      %v3291 = vadd.f32 %v3162, %v3290
      %v3292 = vpop.f32.mrf.mxu0
      %3293 = vmatprep.mubr.f32.mxu0 0.0
      %3294 = vmatmul.mubr.f32.gmra.mxu0 %v3202
      %v3295 = vpop.f32.mrf.mxu0
      %v3296 = vadd.f32 %v3167, %v3295
      %v3297 = vpop.f32.mrf.mxu0
      %3298 = vmatprep.mubr.f32.mxu0 0.0
      %3299 = vmatmul.mubr.f32.gmra.mxu0 %v3205
      %v3300 = vpop.f32.mrf.mxu0
      %v3301 = vadd.f32 %v3172, %v3300
      %v3302 = vpop.f32.mrf.mxu0
      %3303 = vmatprep.mubr.f32.mxu0 0.0
      %3304 = vmatmul.mubr.f32.gmra.mxu0 %v3208
      %v3305 = vpop.f32.mrf.mxu0
      %v3306 = vadd.f32 %v3177, %v3305
      %v3307 = vpop.f32.mrf.mxu0
      %3308 = vmatprep.mubr.f32.mxu0 0.0
      %3309 = vmatmul.mubr.f32.gmra.mxu0 %v3211
      %v3310 = vpop.f32.mrf.mxu0
      %v3311 = vadd.f32 %v3182, %v3310
      %v3312 = vpop.f32.mrf.mxu0
      %3313 = vmatprep.mubr.f32.mxu0 0.0
      %3314 = vmatmul.mubr.f32.gmra.mxu0 %v3214
      %v3315 = vpop.f32.mrf.mxu0
      %v3316 = vadd.f32 %v3187, %v3315
      %v3317 = vpop.f32.mrf.mxu0
      %3318 = vmatprep.mubr.f32.mxu0 0.0
      %3319 = vmatmul.mubr.f32.gmra.mxu0 %v3217
      %v3320 = vpop.f32.mrf.mxu0
      %v3321 = vadd.f32 %v3192, %v3320
      %v3322 = vpop.f32.mrf.mxu0
      %3323 = vdwg.mxu0
      %v3324 = vld [vmem:[#allocation2 + $0x2] sm:$0xff]
      %v3325 = vld [vmem:[#allocation2 + $0x12] sm:$0xff]
      %v3326 = vld [vmem:[#allocation2 + $0x22] sm:$0xff]
      %v3327 = vld [vmem:[#allocation2 + $0x32] sm:$0xff]
      %v3328 = vld [vmem:[#allocation2 + $0x42] sm:$0xff]
      %v3329 = vld [vmem:[#allocation2 + $0x52] sm:$0xff]
      %v3330 = vld [vmem:[#allocation2 + $0x62] sm:$0xff]
      %v3331 = vld [vmem:[#allocation2 + $0x72] sm:$0xff]
      %s3332 = scalar_lea.vmem %s5, 32
      %v3333 = vld [vmem:[%s3332] sm:$0xff]
      %v3334 = vld [vmem:[%s3332 + $0x8] sm:$0xff]
      %v3336 = vsel %vm2531, %v3324, 0
      %v3339 = vsel %vm2531, %v3325, 0
      %v3342 = vsel %vm2531, %v3326, 0
      %v3345 = vsel %vm2531, %v3327, 0
      %v3348 = vsel %vm2531, %v3328, 0
      %v3351 = vsel %vm2531, %v3329, 0
      %v3354 = vsel %vm2531, %v3330, 0
      %v3357 = vsel %vm2531, %v3331, 0
      %3359 = vmatprep.subr.mxu0 0.0
      %3360 = vmatpush1.msra.mxu0 0.0
      %3361 = vmatprep.subr.mxu0 0.0
      %3362 = vmatpush1.msra.mxu0 0.0
      %3363 = vmatprep.subr.mxu0 0.0
      %3364 = vmatpush1.msra.mxu0 0.0
      %3365 = vmatprep.subr.mxu0 0.0
      %3366 = vmatpush1.msra.mxu0 0.0
      %3367 = vmatprep.subr.mxu0 0.0
      %3368 = vmatpush1.msra.mxu0 0.0
      %3369 = vmatprep.subr.mxu0 0.0
      %3370 = vmatpush1.msra.mxu0 0.0
      %3371 = vmatprep.subr.mxu0 0.0
      %3372 = vmatpush1.msra.mxu0 0.0
      %3373 = vmatprep.subr.mxu0 0.0
      %3374 = vmatpush1.msra.mxu0 0.0
      %3375 = vmatprep.subr.mxu0 0.0
      %3376 = vmatpush1.msra.mxu0 0.0
      %3377 = vmatprep.subr.mxu0 0.0
      %3378 = vmatpush1.msra.mxu0 0.0
      %3379 = vmatprep.subr.mxu0 0.0
      %3380 = vmatpush1.msra.mxu0 0.0
      %3381 = vmatprep.subr.mxu0 0.0
      %3382 = vmatpush1.msra.mxu0 0.0
      %3383 = vmatprep.subr.mxu0 0.0
      %3384 = vmatpush1.msra.mxu0 0.0
      %3385 = vmatprep.subr.mxu0 0.0
      %3386 = vmatpush1.msra.mxu0 0.0
      %3387 = vmatprep.subr.mxu0 0.0
      %3388 = vmatpush1.msra.mxu0 %v3334
      %3389 = vmatprep.subr.mxu0 0.0
      %3390 = vmatpush1.msra.mxu0 %v3333
      %3391 = vmatprep.subr.mxu0 0.0
      %3392 = vmatpush2.msra.mxu0 0.0
      %3393 = vmatprep.subr.mxu0 0.0
      %3394 = vmatpush2.msra.mxu0 0.0
      %3395 = vmatprep.subr.mxu0 0.0
      %3396 = vmatpush2.msra.mxu0 0.0
      %3397 = vmatprep.subr.mxu0 0.0
      %3398 = vmatpush2.msra.mxu0 0.0
      %3399 = vmatprep.subr.mxu0 0.0
      %3400 = vmatpush2.msra.mxu0 0.0
      %3401 = vmatprep.subr.mxu0 0.0
      %3402 = vmatpush2.msra.mxu0 0.0
      %3403 = vmatprep.subr.mxu0 0.0
      %3404 = vmatpush2.msra.mxu0 0.0
      %3405 = vmatprep.subr.mxu0 0.0
      %3406 = vmatpush2.msra.mxu0 0.0
      %3407 = vmatprep.subr.mxu0 0.0
      %3408 = vmatpush2.msra.mxu0 0.0
      %3409 = vmatprep.subr.mxu0 0.0
      %3410 = vmatpush2.msra.mxu0 0.0
      %3411 = vmatprep.subr.mxu0 0.0
      %3412 = vmatpush2.msra.mxu0 0.0
      %3413 = vmatprep.subr.mxu0 0.0
      %3414 = vmatpush2.msra.mxu0 0.0
      %3415 = vmatprep.subr.mxu0 0.0
      %3416 = vmatpush2.msra.mxu0 0.0
      %3417 = vmatprep.subr.mxu0 0.0
      %3418 = vmatpush2.msra.mxu0 0.0
      %3419 = vmatprep.subr.mxu0 0.0
      %3420 = vmatpush2.msra.mxu0 0.0
      %3421 = vmatprep.subr.mxu0 0.0
      %3422 = vmatpush2.msra.mxu0 0.0
      %3423 = vmatprep.mubr.f32.mxu0 0.0
      %3424 = vmatmul.mubr.f32.gmra.mxu0 %v3336
      %v3425 = vpop.f32.mrf.mxu0
      %v3426 = vadd.f32 0.0, %v3425
      %v3427 = vpop.f32.mrf.mxu0
      %3428 = vmatprep.mubr.f32.mxu0 0.0
      %3429 = vmatmul.mubr.f32.gmra.mxu0 %v3339
      %v3430 = vpop.f32.mrf.mxu0
      %v3431 = vadd.f32 0.0, %v3430
      %v3432 = vpop.f32.mrf.mxu0
      %3433 = vmatprep.mubr.f32.mxu0 0.0
      %3434 = vmatmul.mubr.f32.gmra.mxu0 %v3342
      %v3435 = vpop.f32.mrf.mxu0
      %v3436 = vadd.f32 0.0, %v3435
      %v3437 = vpop.f32.mrf.mxu0
      %3438 = vmatprep.mubr.f32.mxu0 0.0
      %3439 = vmatmul.mubr.f32.gmra.mxu0 %v3345
      %v3440 = vpop.f32.mrf.mxu0
      %v3441 = vadd.f32 0.0, %v3440
      %v3442 = vpop.f32.mrf.mxu0
      %3443 = vmatprep.mubr.f32.mxu0 0.0
      %3444 = vmatmul.mubr.f32.gmra.mxu0 %v3348
      %v3445 = vpop.f32.mrf.mxu0
      %v3446 = vadd.f32 0.0, %v3445
      %v3447 = vpop.f32.mrf.mxu0
      %3448 = vmatprep.mubr.f32.mxu0 0.0
      %3449 = vmatmul.mubr.f32.gmra.mxu0 %v3351
      %v3450 = vpop.f32.mrf.mxu0
      %v3451 = vadd.f32 0.0, %v3450
      %v3452 = vpop.f32.mrf.mxu0
      %3453 = vmatprep.mubr.f32.mxu0 0.0
      %3454 = vmatmul.mubr.f32.gmra.mxu0 %v3354
      %v3455 = vpop.f32.mrf.mxu0
      %v3456 = vadd.f32 0.0, %v3455
      %v3457 = vpop.f32.mrf.mxu0
      %3458 = vmatprep.mubr.f32.mxu0 0.0
      %3459 = vmatmul.mubr.f32.gmra.mxu0 %v3357
      %v3460 = vpop.f32.mrf.mxu0
      %v3461 = vadd.f32 0.0, %v3460
      %v3462 = vpop.f32.mrf.mxu0
      %3463 = vdwg.mxu0
      %v3464 = vadd.f32 %v3286, %v3426
      %v3465 = vadd.f32 %v3291, %v3431
      %v3466 = vadd.f32 %v3296, %v3436
      %v3467 = vadd.f32 %v3301, %v3441
      %v3468 = vadd.f32 %v3306, %v3446
      %v3469 = vadd.f32 %v3311, %v3451
      %v3470 = vadd.f32 %v3316, %v3456
      %v3471 = vadd.f32 %v3321, %v3461
      %v3472 = vld [vmem:[%s2687] sm:$0xff]
      %v3473 = vld [vmem:[%s2687 + $0x10] sm:$0xff]
      %v3474 = vld [vmem:[%s2687 + $0x20] sm:$0xff]
      %v3475 = vld [vmem:[%s2687 + $0x30] sm:$0xff]
      %v3476 = vld [vmem:[%s2687 + $0x40] sm:$0xff]
      %v3477 = vld [vmem:[%s2687 + $0x50] sm:$0xff]
      %v3478 = vld [vmem:[%s2687 + $0x60] sm:$0xff]
      %v3479 = vld [vmem:[%s2687 + $0x70] sm:$0xff]
      %s3480 = scalar_lea.vmem %s5, 48
      %v3481 = vld [vmem:[%s3480] sm:$0xff]
      %v3482 = vld [vmem:[%s3480 + $0x8] sm:$0xff]
      %v3484 = vsel %vm2531, %v3472, 0
      %v3487 = vsel %vm2531, %v3473, 0
      %v3490 = vsel %vm2531, %v3474, 0
      %v3493 = vsel %vm2531, %v3475, 0
      %v3496 = vsel %vm2531, %v3476, 0
      %v3499 = vsel %vm2531, %v3477, 0
      %v3502 = vsel %vm2531, %v3478, 0
      %v3505 = vsel %vm2531, %v3479, 0
      %3507 = vmatprep.subr.mxu0 0.0
      %3508 = vmatpush1.msra.mxu0 0.0
      %3509 = vmatprep.subr.mxu0 0.0
      %3510 = vmatpush1.msra.mxu0 0.0
      %3511 = vmatprep.subr.mxu0 0.0
      %3512 = vmatpush1.msra.mxu0 0.0
      %3513 = vmatprep.subr.mxu0 0.0
      %3514 = vmatpush1.msra.mxu0 0.0
      %3515 = vmatprep.subr.mxu0 0.0
      %3516 = vmatpush1.msra.mxu0 0.0
      %3517 = vmatprep.subr.mxu0 0.0
      %3518 = vmatpush1.msra.mxu0 0.0
      %3519 = vmatprep.subr.mxu0 0.0
      %3520 = vmatpush1.msra.mxu0 0.0
      %3521 = vmatprep.subr.mxu0 0.0
      %3522 = vmatpush1.msra.mxu0 0.0
      %3523 = vmatprep.subr.mxu0 0.0
      %3524 = vmatpush1.msra.mxu0 0.0
      %3525 = vmatprep.subr.mxu0 0.0
      %3526 = vmatpush1.msra.mxu0 0.0
      %3527 = vmatprep.subr.mxu0 0.0
      %3528 = vmatpush1.msra.mxu0 0.0
      %3529 = vmatprep.subr.mxu0 0.0
      %3530 = vmatpush1.msra.mxu0 0.0
      %3531 = vmatprep.subr.mxu0 0.0
      %3532 = vmatpush1.msra.mxu0 0.0
      %3533 = vmatprep.subr.mxu0 0.0
      %3534 = vmatpush1.msra.mxu0 0.0
      %3535 = vmatprep.subr.mxu0 0.0
      %3536 = vmatpush1.msra.mxu0 %v3482
      %3537 = vmatprep.subr.mxu0 0.0
      %3538 = vmatpush1.msra.mxu0 %v3481
      %3539 = vmatprep.subr.mxu0 0.0
      %3540 = vmatpush2.msra.mxu0 0.0
      %3541 = vmatprep.subr.mxu0 0.0
      %3542 = vmatpush2.msra.mxu0 0.0
      %3543 = vmatprep.subr.mxu0 0.0
      %3544 = vmatpush2.msra.mxu0 0.0
      %3545 = vmatprep.subr.mxu0 0.0
      %3546 = vmatpush2.msra.mxu0 0.0
      %3547 = vmatprep.subr.mxu0 0.0
      %3548 = vmatpush2.msra.mxu0 0.0
      %3549 = vmatprep.subr.mxu0 0.0
      %3550 = vmatpush2.msra.mxu0 0.0
      %3551 = vmatprep.subr.mxu0 0.0
      %3552 = vmatpush2.msra.mxu0 0.0
      %3553 = vmatprep.subr.mxu0 0.0
      %3554 = vmatpush2.msra.mxu0 0.0
      %3555 = vmatprep.subr.mxu0 0.0
      %3556 = vmatpush2.msra.mxu0 0.0
      %3557 = vmatprep.subr.mxu0 0.0
      %3558 = vmatpush2.msra.mxu0 0.0
      %3559 = vmatprep.subr.mxu0 0.0
      %3560 = vmatpush2.msra.mxu0 0.0
      %3561 = vmatprep.subr.mxu0 0.0
      %3562 = vmatpush2.msra.mxu0 0.0
      %3563 = vmatprep.subr.mxu0 0.0
      %3564 = vmatpush2.msra.mxu0 0.0
      %3565 = vmatprep.subr.mxu0 0.0
      %3566 = vmatpush2.msra.mxu0 0.0
      %3567 = vmatprep.subr.mxu0 0.0
      %3568 = vmatpush2.msra.mxu0 0.0
      %3569 = vmatprep.subr.mxu0 0.0
      %3570 = vmatpush2.msra.mxu0 0.0
      %3571 = vmatprep.mubr.f32.mxu0 0.0
      %3572 = vmatmul.mubr.f32.gmra.mxu0 %v3484
      %v3573 = vpop.f32.mrf.mxu0
      %v3574 = vadd.f32 0.0, %v3573
      %v3575 = vpop.f32.mrf.mxu0
      %3576 = vmatprep.mubr.f32.mxu0 0.0
      %3577 = vmatmul.mubr.f32.gmra.mxu0 %v3487
      %v3578 = vpop.f32.mrf.mxu0
      %v3579 = vadd.f32 0.0, %v3578
      %v3580 = vpop.f32.mrf.mxu0
      %3581 = vmatprep.mubr.f32.mxu0 0.0
      %3582 = vmatmul.mubr.f32.gmra.mxu0 %v3490
      %v3583 = vpop.f32.mrf.mxu0
      %v3584 = vadd.f32 0.0, %v3583
      %v3585 = vpop.f32.mrf.mxu0
      %3586 = vmatprep.mubr.f32.mxu0 0.0
      %3587 = vmatmul.mubr.f32.gmra.mxu0 %v3493
      %v3588 = vpop.f32.mrf.mxu0
      %v3589 = vadd.f32 0.0, %v3588
      %v3590 = vpop.f32.mrf.mxu0
      %3591 = vmatprep.mubr.f32.mxu0 0.0
      %3592 = vmatmul.mubr.f32.gmra.mxu0 %v3496
      %v3593 = vpop.f32.mrf.mxu0
      %v3594 = vadd.f32 0.0, %v3593
      %v3595 = vpop.f32.mrf.mxu0
      %3596 = vmatprep.mubr.f32.mxu0 0.0
      %3597 = vmatmul.mubr.f32.gmra.mxu0 %v3499
      %v3598 = vpop.f32.mrf.mxu0
      %v3599 = vadd.f32 0.0, %v3598
      %v3600 = vpop.f32.mrf.mxu0
      %3601 = vmatprep.mubr.f32.mxu0 0.0
      %3602 = vmatmul.mubr.f32.gmra.mxu0 %v3502
      %v3603 = vpop.f32.mrf.mxu0
      %v3604 = vadd.f32 0.0, %v3603
      %v3605 = vpop.f32.mrf.mxu0
      %3606 = vmatprep.mubr.f32.mxu0 0.0
      %3607 = vmatmul.mubr.f32.gmra.mxu0 %v3505
      %v3608 = vpop.f32.mrf.mxu0
      %v3609 = vadd.f32 0.0, %v3608
      %v3610 = vpop.f32.mrf.mxu0
      %3611 = vdwg.mxu0
      %v3612 = vadd.f32 %v3464, %v3574
      %v3613 = vadd.f32 %v3465, %v3579
      %v3614 = vadd.f32 %v3466, %v3584
      %v3615 = vadd.f32 %v3467, %v3589
      %v3616 = vadd.f32 %v3468, %v3594
      %v3617 = vadd.f32 %v3469, %v3599
      %v3618 = vadd.f32 %v3470, %v3604
      %v3619 = vadd.f32 %v3471, %v3609
      %v3620 = vld [vmem:[%s2687 + $0x1] sm:$0xff]
      %v3621 = vld [vmem:[%s2687 + $0x11] sm:$0xff]
      %v3622 = vld [vmem:[%s2687 + $0x21] sm:$0xff]
      %v3623 = vld [vmem:[%s2687 + $0x31] sm:$0xff]
      %v3624 = vld [vmem:[%s2687 + $0x41] sm:$0xff]
      %v3625 = vld [vmem:[%s2687 + $0x51] sm:$0xff]
      %v3626 = vld [vmem:[%s2687 + $0x61] sm:$0xff]
      %v3627 = vld [vmem:[%s2687 + $0x71] sm:$0xff]
      %s3628 = scalar_lea.vmem %s5, 64
      %v3629 = vld [vmem:[%s3628] sm:$0xff]
      %v3630 = vld [vmem:[%s3628 + $0x8] sm:$0xff]
      %v3632 = vsel %vm2531, %v3620, 0
      %v3635 = vsel %vm2531, %v3621, 0
      %v3638 = vsel %vm2531, %v3622, 0
      %v3641 = vsel %vm2531, %v3623, 0
      %v3644 = vsel %vm2531, %v3624, 0
      %v3647 = vsel %vm2531, %v3625, 0
      %v3650 = vsel %vm2531, %v3626, 0
      %v3653 = vsel %vm2531, %v3627, 0
      %3655 = vmatprep.subr.mxu0 0.0
      %3656 = vmatpush1.msra.mxu0 0.0
      %3657 = vmatprep.subr.mxu0 0.0
      %3658 = vmatpush1.msra.mxu0 0.0
      %3659 = vmatprep.subr.mxu0 0.0
      %3660 = vmatpush1.msra.mxu0 0.0
      %3661 = vmatprep.subr.mxu0 0.0
      %3662 = vmatpush1.msra.mxu0 0.0
      %3663 = vmatprep.subr.mxu0 0.0
      %3664 = vmatpush1.msra.mxu0 0.0
      %3665 = vmatprep.subr.mxu0 0.0
      %3666 = vmatpush1.msra.mxu0 0.0
      %3667 = vmatprep.subr.mxu0 0.0
      %3668 = vmatpush1.msra.mxu0 0.0
      %3669 = vmatprep.subr.mxu0 0.0
      %3670 = vmatpush1.msra.mxu0 0.0
      %3671 = vmatprep.subr.mxu0 0.0
      %3672 = vmatpush1.msra.mxu0 0.0
      %3673 = vmatprep.subr.mxu0 0.0
      %3674 = vmatpush1.msra.mxu0 0.0
      %3675 = vmatprep.subr.mxu0 0.0
      %3676 = vmatpush1.msra.mxu0 0.0
      %3677 = vmatprep.subr.mxu0 0.0
      %3678 = vmatpush1.msra.mxu0 0.0
      %3679 = vmatprep.subr.mxu0 0.0
      %3680 = vmatpush1.msra.mxu0 0.0
      %3681 = vmatprep.subr.mxu0 0.0
      %3682 = vmatpush1.msra.mxu0 0.0
      %3683 = vmatprep.subr.mxu0 0.0
      %3684 = vmatpush1.msra.mxu0 %v3630
      %3685 = vmatprep.subr.mxu0 0.0
      %3686 = vmatpush1.msra.mxu0 %v3629
      %3687 = vmatprep.subr.mxu0 0.0
      %3688 = vmatpush2.msra.mxu0 0.0
      %3689 = vmatprep.subr.mxu0 0.0
      %3690 = vmatpush2.msra.mxu0 0.0
      %3691 = vmatprep.subr.mxu0 0.0
      %3692 = vmatpush2.msra.mxu0 0.0
      %3693 = vmatprep.subr.mxu0 0.0
      %3694 = vmatpush2.msra.mxu0 0.0
      %3695 = vmatprep.subr.mxu0 0.0
      %3696 = vmatpush2.msra.mxu0 0.0
      %3697 = vmatprep.subr.mxu0 0.0
      %3698 = vmatpush2.msra.mxu0 0.0
      %3699 = vmatprep.subr.mxu0 0.0
      %3700 = vmatpush2.msra.mxu0 0.0
      %3701 = vmatprep.subr.mxu0 0.0
      %3702 = vmatpush2.msra.mxu0 0.0
      %3703 = vmatprep.subr.mxu0 0.0
      %3704 = vmatpush2.msra.mxu0 0.0
      %3705 = vmatprep.subr.mxu0 0.0
      %3706 = vmatpush2.msra.mxu0 0.0
      %3707 = vmatprep.subr.mxu0 0.0
      %3708 = vmatpush2.msra.mxu0 0.0
      %3709 = vmatprep.subr.mxu0 0.0
      %3710 = vmatpush2.msra.mxu0 0.0
      %3711 = vmatprep.subr.mxu0 0.0
      %3712 = vmatpush2.msra.mxu0 0.0
      %3713 = vmatprep.subr.mxu0 0.0
      %3714 = vmatpush2.msra.mxu0 0.0
      %3715 = vmatprep.subr.mxu0 0.0
      %3716 = vmatpush2.msra.mxu0 0.0
      %3717 = vmatprep.subr.mxu0 0.0
      %3718 = vmatpush2.msra.mxu0 0.0
      %3719 = vmatprep.mubr.f32.mxu0 0.0
      %3720 = vmatmul.mubr.f32.gmra.mxu0 %v3632
      %v3721 = vpop.f32.mrf.mxu0
      %v3722 = vadd.f32 0.0, %v3721
      %v3723 = vpop.f32.mrf.mxu0
      %3724 = vmatprep.mubr.f32.mxu0 0.0
      %3725 = vmatmul.mubr.f32.gmra.mxu0 %v3635
      %v3726 = vpop.f32.mrf.mxu0
      %v3727 = vadd.f32 0.0, %v3726
      %v3728 = vpop.f32.mrf.mxu0
      %3729 = vmatprep.mubr.f32.mxu0 0.0
      %3730 = vmatmul.mubr.f32.gmra.mxu0 %v3638
      %v3731 = vpop.f32.mrf.mxu0
      %v3732 = vadd.f32 0.0, %v3731
      %v3733 = vpop.f32.mrf.mxu0
      %3734 = vmatprep.mubr.f32.mxu0 0.0
      %3735 = vmatmul.mubr.f32.gmra.mxu0 %v3641
      %v3736 = vpop.f32.mrf.mxu0
      %v3737 = vadd.f32 0.0, %v3736
      %v3738 = vpop.f32.mrf.mxu0
      %3739 = vmatprep.mubr.f32.mxu0 0.0
      %3740 = vmatmul.mubr.f32.gmra.mxu0 %v3644
      %v3741 = vpop.f32.mrf.mxu0
      %v3742 = vadd.f32 0.0, %v3741
      %v3743 = vpop.f32.mrf.mxu0
      %3744 = vmatprep.mubr.f32.mxu0 0.0
      %3745 = vmatmul.mubr.f32.gmra.mxu0 %v3647
      %v3746 = vpop.f32.mrf.mxu0
      %v3747 = vadd.f32 0.0, %v3746
      %v3748 = vpop.f32.mrf.mxu0
      %3749 = vmatprep.mubr.f32.mxu0 0.0
      %3750 = vmatmul.mubr.f32.gmra.mxu0 %v3650
      %v3751 = vpop.f32.mrf.mxu0
      %v3752 = vadd.f32 0.0, %v3751
      %v3753 = vpop.f32.mrf.mxu0
      %3754 = vmatprep.mubr.f32.mxu0 0.0
      %3755 = vmatmul.mubr.f32.gmra.mxu0 %v3653
      %v3756 = vpop.f32.mrf.mxu0
      %v3757 = vadd.f32 0.0, %v3756
      %v3758 = vpop.f32.mrf.mxu0
      %3759 = vdwg.mxu0
      %v3760 = vadd.f32 %v3612, %v3722
      %v3761 = vadd.f32 %v3613, %v3727
      %v3762 = vadd.f32 %v3614, %v3732
      %v3763 = vadd.f32 %v3615, %v3737
      %v3764 = vadd.f32 %v3616, %v3742
      %v3765 = vadd.f32 %v3617, %v3747
      %v3766 = vadd.f32 %v3618, %v3752
      %v3767 = vadd.f32 %v3619, %v3757
      %v3768 = vld [vmem:[%s2687 + $0x2] sm:$0xff]
      %v3769 = vld [vmem:[%s2687 + $0x12] sm:$0xff]
      %v3770 = vld [vmem:[%s2687 + $0x22] sm:$0xff]
      %v3771 = vld [vmem:[%s2687 + $0x32] sm:$0xff]
      %v3772 = vld [vmem:[%s2687 + $0x42] sm:$0xff]
      %v3773 = vld [vmem:[%s2687 + $0x52] sm:$0xff]
      %v3774 = vld [vmem:[%s2687 + $0x62] sm:$0xff]
      %v3775 = vld [vmem:[%s2687 + $0x72] sm:$0xff]
      %s3776 = scalar_lea.vmem %s5, 80
      %v3777 = vld [vmem:[%s3776] sm:$0xff]
      %v3778 = vld [vmem:[%s3776 + $0x8] sm:$0xff]
      %v3780 = vsel %vm2531, %v3768, 0
      %v3783 = vsel %vm2531, %v3769, 0
      %v3786 = vsel %vm2531, %v3770, 0
      %v3789 = vsel %vm2531, %v3771, 0
      %v3792 = vsel %vm2531, %v3772, 0
      %v3795 = vsel %vm2531, %v3773, 0
      %v3798 = vsel %vm2531, %v3774, 0
      %v3801 = vsel %vm2531, %v3775, 0
      %3803 = vmatprep.subr.mxu0 0.0
      %3804 = vmatpush1.msra.mxu0 0.0
      %3805 = vmatprep.subr.mxu0 0.0
      %3806 = vmatpush1.msra.mxu0 0.0
      %3807 = vmatprep.subr.mxu0 0.0
      %3808 = vmatpush1.msra.mxu0 0.0
      %3809 = vmatprep.subr.mxu0 0.0
      %3810 = vmatpush1.msra.mxu0 0.0
      %3811 = vmatprep.subr.mxu0 0.0
      %3812 = vmatpush1.msra.mxu0 0.0
      %3813 = vmatprep.subr.mxu0 0.0
      %3814 = vmatpush1.msra.mxu0 0.0
      %3815 = vmatprep.subr.mxu0 0.0
      %3816 = vmatpush1.msra.mxu0 0.0
      %3817 = vmatprep.subr.mxu0 0.0
      %3818 = vmatpush1.msra.mxu0 0.0
      %3819 = vmatprep.subr.mxu0 0.0
      %3820 = vmatpush1.msra.mxu0 0.0
      %3821 = vmatprep.subr.mxu0 0.0
      %3822 = vmatpush1.msra.mxu0 0.0
      %3823 = vmatprep.subr.mxu0 0.0
      %3824 = vmatpush1.msra.mxu0 0.0
      %3825 = vmatprep.subr.mxu0 0.0
      %3826 = vmatpush1.msra.mxu0 0.0
      %3827 = vmatprep.subr.mxu0 0.0
      %3828 = vmatpush1.msra.mxu0 0.0
      %3829 = vmatprep.subr.mxu0 0.0
      %3830 = vmatpush1.msra.mxu0 0.0
      %3831 = vmatprep.subr.mxu0 0.0
      %3832 = vmatpush1.msra.mxu0 %v3778
      %3833 = vmatprep.subr.mxu0 0.0
      %3834 = vmatpush1.msra.mxu0 %v3777
      %3835 = vmatprep.subr.mxu0 0.0
      %3836 = vmatpush2.msra.mxu0 0.0
      %3837 = vmatprep.subr.mxu0 0.0
      %3838 = vmatpush2.msra.mxu0 0.0
      %3839 = vmatprep.subr.mxu0 0.0
      %3840 = vmatpush2.msra.mxu0 0.0
      %3841 = vmatprep.subr.mxu0 0.0
      %3842 = vmatpush2.msra.mxu0 0.0
      %3843 = vmatprep.subr.mxu0 0.0
      %3844 = vmatpush2.msra.mxu0 0.0
      %3845 = vmatprep.subr.mxu0 0.0
      %3846 = vmatpush2.msra.mxu0 0.0
      %3847 = vmatprep.subr.mxu0 0.0
      %3848 = vmatpush2.msra.mxu0 0.0
      %3849 = vmatprep.subr.mxu0 0.0
      %3850 = vmatpush2.msra.mxu0 0.0
      %3851 = vmatprep.subr.mxu0 0.0
      %3852 = vmatpush2.msra.mxu0 0.0
      %3853 = vmatprep.subr.mxu0 0.0
      %3854 = vmatpush2.msra.mxu0 0.0
      %3855 = vmatprep.subr.mxu0 0.0
      %3856 = vmatpush2.msra.mxu0 0.0
      %3857 = vmatprep.subr.mxu0 0.0
      %3858 = vmatpush2.msra.mxu0 0.0
      %3859 = vmatprep.subr.mxu0 0.0
      %3860 = vmatpush2.msra.mxu0 0.0
      %3861 = vmatprep.subr.mxu0 0.0
      %3862 = vmatpush2.msra.mxu0 0.0
      %3863 = vmatprep.subr.mxu0 0.0
      %3864 = vmatpush2.msra.mxu0 0.0
      %3865 = vmatprep.subr.mxu0 0.0
      %3866 = vmatpush2.msra.mxu0 0.0
      %3867 = vmatprep.mubr.f32.mxu0 0.0
      %3868 = vmatmul.mubr.f32.gmra.mxu0 %v3780
      %v3869 = vpop.f32.mrf.mxu0
      %v3870 = vadd.f32 0.0, %v3869
      %v3871 = vpop.f32.mrf.mxu0
      %3872 = vmatprep.mubr.f32.mxu0 0.0
      %3873 = vmatmul.mubr.f32.gmra.mxu0 %v3783
      %v3874 = vpop.f32.mrf.mxu0
      %v3875 = vadd.f32 0.0, %v3874
      %v3876 = vpop.f32.mrf.mxu0
      %3877 = vmatprep.mubr.f32.mxu0 0.0
      %3878 = vmatmul.mubr.f32.gmra.mxu0 %v3786
      %v3879 = vpop.f32.mrf.mxu0
      %v3880 = vadd.f32 0.0, %v3879
      %v3881 = vpop.f32.mrf.mxu0
      %3882 = vmatprep.mubr.f32.mxu0 0.0
      %3883 = vmatmul.mubr.f32.gmra.mxu0 %v3789
      %v3884 = vpop.f32.mrf.mxu0
      %v3885 = vadd.f32 0.0, %v3884
      %v3886 = vpop.f32.mrf.mxu0
      %3887 = vmatprep.mubr.f32.mxu0 0.0
      %3888 = vmatmul.mubr.f32.gmra.mxu0 %v3792
      %v3889 = vpop.f32.mrf.mxu0
      %v3890 = vadd.f32 0.0, %v3889
      %v3891 = vpop.f32.mrf.mxu0
      %3892 = vmatprep.mubr.f32.mxu0 0.0
      %3893 = vmatmul.mubr.f32.gmra.mxu0 %v3795
      %v3894 = vpop.f32.mrf.mxu0
      %v3895 = vadd.f32 0.0, %v3894
      %v3896 = vpop.f32.mrf.mxu0
      %3897 = vmatprep.mubr.f32.mxu0 0.0
      %3898 = vmatmul.mubr.f32.gmra.mxu0 %v3798
      %v3899 = vpop.f32.mrf.mxu0
      %v3900 = vadd.f32 0.0, %v3899
      %v3901 = vpop.f32.mrf.mxu0
      %3902 = vmatprep.mubr.f32.mxu0 0.0
      %3903 = vmatmul.mubr.f32.gmra.mxu0 %v3801
      %v3904 = vpop.f32.mrf.mxu0
      %v3905 = vadd.f32 0.0, %v3904
      %v3906 = vpop.f32.mrf.mxu0
      %3907 = vdwg.mxu0
      %v3908 = vadd.f32 %v3760, %v3870
      %v3909 = vadd.f32 %v3761, %v3875
      %v3910 = vadd.f32 %v3762, %v3880
      %v3911 = vadd.f32 %v3763, %v3885
      %v3912 = vadd.f32 %v3764, %v3890
      %v3913 = vadd.f32 %v3765, %v3895
      %v3914 = vadd.f32 %v3766, %v3900
      %v3915 = vadd.f32 %v3767, %v3905
      %s3916 = scalar_lea.vmem [#allocation2], 32
      %v3917 = vld [vmem:[%s3916] sm:$0xff]
      %v3918 = vld [vmem:[%s3916 + $0x10] sm:$0xff]
      %v3919 = vld [vmem:[%s3916 + $0x20] sm:$0xff]
      %v3920 = vld [vmem:[%s3916 + $0x30] sm:$0xff]
      %v3921 = vld [vmem:[%s3916 + $0x40] sm:$0xff]
      %v3922 = vld [vmem:[%s3916 + $0x50] sm:$0xff]
      %v3923 = vld [vmem:[%s3916 + $0x60] sm:$0xff]
      %v3924 = vld [vmem:[%s3916 + $0x70] sm:$0xff]
      %s3925 = scalar_lea.vmem %s5, 96
      %v3926 = vld [vmem:[%s3925] sm:$0xff]
      %v3927 = vld [vmem:[%s3925 + $0x8] sm:$0xff]
      %v3929 = vsel %vm2531, %v3917, 0
      %v3932 = vsel %vm2531, %v3918, 0
      %v3935 = vsel %vm2531, %v3919, 0
      %v3938 = vsel %vm2531, %v3920, 0
      %v3941 = vsel %vm2531, %v3921, 0
      %v3944 = vsel %vm2531, %v3922, 0
      %v3947 = vsel %vm2531, %v3923, 0
      %v3950 = vsel %vm2531, %v3924, 0
      %3952 = vmatprep.subr.mxu0 0.0
      %3953 = vmatpush1.msra.mxu0 0.0
      %3954 = vmatprep.subr.mxu0 0.0
      %3955 = vmatpush1.msra.mxu0 0.0
      %3956 = vmatprep.subr.mxu0 0.0
      %3957 = vmatpush1.msra.mxu0 0.0
      %3958 = vmatprep.subr.mxu0 0.0
      %3959 = vmatpush1.msra.mxu0 0.0
      %3960 = vmatprep.subr.mxu0 0.0
      %3961 = vmatpush1.msra.mxu0 0.0
      %3962 = vmatprep.subr.mxu0 0.0
      %3963 = vmatpush1.msra.mxu0 0.0
      %3964 = vmatprep.subr.mxu0 0.0
      %3965 = vmatpush1.msra.mxu0 0.0
      %3966 = vmatprep.subr.mxu0 0.0
      %3967 = vmatpush1.msra.mxu0 0.0
      %3968 = vmatprep.subr.mxu0 0.0
      %3969 = vmatpush1.msra.mxu0 0.0
      %3970 = vmatprep.subr.mxu0 0.0
      %3971 = vmatpush1.msra.mxu0 0.0
      %3972 = vmatprep.subr.mxu0 0.0
      %3973 = vmatpush1.msra.mxu0 0.0
      %3974 = vmatprep.subr.mxu0 0.0
      %3975 = vmatpush1.msra.mxu0 0.0
      %3976 = vmatprep.subr.mxu0 0.0
      %3977 = vmatpush1.msra.mxu0 0.0
      %3978 = vmatprep.subr.mxu0 0.0
      %3979 = vmatpush1.msra.mxu0 0.0
      %3980 = vmatprep.subr.mxu0 0.0
      %3981 = vmatpush1.msra.mxu0 %v3927
      %3982 = vmatprep.subr.mxu0 0.0
      %3983 = vmatpush1.msra.mxu0 %v3926
      %3984 = vmatprep.subr.mxu0 0.0
      %3985 = vmatpush2.msra.mxu0 0.0
      %3986 = vmatprep.subr.mxu0 0.0
      %3987 = vmatpush2.msra.mxu0 0.0
      %3988 = vmatprep.subr.mxu0 0.0
      %3989 = vmatpush2.msra.mxu0 0.0
      %3990 = vmatprep.subr.mxu0 0.0
      %3991 = vmatpush2.msra.mxu0 0.0
      %3992 = vmatprep.subr.mxu0 0.0
      %3993 = vmatpush2.msra.mxu0 0.0
      %3994 = vmatprep.subr.mxu0 0.0
      %3995 = vmatpush2.msra.mxu0 0.0
      %3996 = vmatprep.subr.mxu0 0.0
      %3997 = vmatpush2.msra.mxu0 0.0
      %3998 = vmatprep.subr.mxu0 0.0
      %3999 = vmatpush2.msra.mxu0 0.0
      %4000 = vmatprep.subr.mxu0 0.0
      %4001 = vmatpush2.msra.mxu0 0.0
      %4002 = vmatprep.subr.mxu0 0.0
      %4003 = vmatpush2.msra.mxu0 0.0
      %4004 = vmatprep.subr.mxu0 0.0
      %4005 = vmatpush2.msra.mxu0 0.0
      %4006 = vmatprep.subr.mxu0 0.0
      %4007 = vmatpush2.msra.mxu0 0.0
      %4008 = vmatprep.subr.mxu0 0.0
      %4009 = vmatpush2.msra.mxu0 0.0
      %4010 = vmatprep.subr.mxu0 0.0
      %4011 = vmatpush2.msra.mxu0 0.0
      %4012 = vmatprep.subr.mxu0 0.0
      %4013 = vmatpush2.msra.mxu0 0.0
      %4014 = vmatprep.subr.mxu0 0.0
      %4015 = vmatpush2.msra.mxu0 0.0
      %4016 = vmatprep.mubr.f32.mxu0 0.0
      %4017 = vmatmul.mubr.f32.gmra.mxu0 %v3929
      %v4018 = vpop.f32.mrf.mxu0
      %v4019 = vadd.f32 0.0, %v4018
      %v4020 = vpop.f32.mrf.mxu0
      %4021 = vmatprep.mubr.f32.mxu0 0.0
      %4022 = vmatmul.mubr.f32.gmra.mxu0 %v3932
      %v4023 = vpop.f32.mrf.mxu0
      %v4024 = vadd.f32 0.0, %v4023
      %v4025 = vpop.f32.mrf.mxu0
      %4026 = vmatprep.mubr.f32.mxu0 0.0
      %4027 = vmatmul.mubr.f32.gmra.mxu0 %v3935
      %v4028 = vpop.f32.mrf.mxu0
      %v4029 = vadd.f32 0.0, %v4028
      %v4030 = vpop.f32.mrf.mxu0
      %4031 = vmatprep.mubr.f32.mxu0 0.0
      %4032 = vmatmul.mubr.f32.gmra.mxu0 %v3938
      %v4033 = vpop.f32.mrf.mxu0
      %v4034 = vadd.f32 0.0, %v4033
      %v4035 = vpop.f32.mrf.mxu0
      %4036 = vmatprep.mubr.f32.mxu0 0.0
      %4037 = vmatmul.mubr.f32.gmra.mxu0 %v3941
      %v4038 = vpop.f32.mrf.mxu0
      %v4039 = vadd.f32 0.0, %v4038
      %v4040 = vpop.f32.mrf.mxu0
      %4041 = vmatprep.mubr.f32.mxu0 0.0
      %4042 = vmatmul.mubr.f32.gmra.mxu0 %v3944
      %v4043 = vpop.f32.mrf.mxu0
      %v4044 = vadd.f32 0.0, %v4043
      %v4045 = vpop.f32.mrf.mxu0
      %4046 = vmatprep.mubr.f32.mxu0 0.0
      %4047 = vmatmul.mubr.f32.gmra.mxu0 %v3947
      %v4048 = vpop.f32.mrf.mxu0
      %v4049 = vadd.f32 0.0, %v4048
      %v4050 = vpop.f32.mrf.mxu0
      %4051 = vmatprep.mubr.f32.mxu0 0.0
      %4052 = vmatmul.mubr.f32.gmra.mxu0 %v3950
      %v4053 = vpop.f32.mrf.mxu0
      %v4054 = vadd.f32 0.0, %v4053
      %v4055 = vpop.f32.mrf.mxu0
      %4056 = vdwg.mxu0
      %v4057 = vadd.f32 %v3908, %v4019
      %v4058 = vadd.f32 %v3909, %v4024
      %v4059 = vadd.f32 %v3910, %v4029
      %v4060 = vadd.f32 %v3911, %v4034
      %v4061 = vadd.f32 %v3912, %v4039
      %v4062 = vadd.f32 %v3913, %v4044
      %v4063 = vadd.f32 %v3914, %v4049
      %v4064 = vadd.f32 %v3915, %v4054
      %v4065 = vld [vmem:[%s3916 + $0x1] sm:$0xff]
      %v4066 = vld [vmem:[%s3916 + $0x11] sm:$0xff]
      %v4067 = vld [vmem:[%s3916 + $0x21] sm:$0xff]
      %v4068 = vld [vmem:[%s3916 + $0x31] sm:$0xff]
      %v4069 = vld [vmem:[%s3916 + $0x41] sm:$0xff]
      %v4070 = vld [vmem:[%s3916 + $0x51] sm:$0xff]
      %v4071 = vld [vmem:[%s3916 + $0x61] sm:$0xff]
      %v4072 = vld [vmem:[%s3916 + $0x71] sm:$0xff]
      %s4073 = scalar_lea.vmem %s5, 112
      %v4074 = vld [vmem:[%s4073] sm:$0xff]
      %v4075 = vld [vmem:[%s4073 + $0x8] sm:$0xff]
      %v4077 = vsel %vm2531, %v4065, 0
      %v4080 = vsel %vm2531, %v4066, 0
      %v4083 = vsel %vm2531, %v4067, 0
      %v4086 = vsel %vm2531, %v4068, 0
      %v4089 = vsel %vm2531, %v4069, 0
      %v4092 = vsel %vm2531, %v4070, 0
      %v4095 = vsel %vm2531, %v4071, 0
      %v4098 = vsel %vm2531, %v4072, 0
      %4100 = vmatprep.subr.mxu0 0.0
      %4101 = vmatpush1.msra.mxu0 0.0
      %4102 = vmatprep.subr.mxu0 0.0
      %4103 = vmatpush1.msra.mxu0 0.0
      %4104 = vmatprep.subr.mxu0 0.0
      %4105 = vmatpush1.msra.mxu0 0.0
      %4106 = vmatprep.subr.mxu0 0.0
      %4107 = vmatpush1.msra.mxu0 0.0
      %4108 = vmatprep.subr.mxu0 0.0
      %4109 = vmatpush1.msra.mxu0 0.0
      %4110 = vmatprep.subr.mxu0 0.0
      %4111 = vmatpush1.msra.mxu0 0.0
      %4112 = vmatprep.subr.mxu0 0.0
      %4113 = vmatpush1.msra.mxu0 0.0
      %4114 = vmatprep.subr.mxu0 0.0
      %4115 = vmatpush1.msra.mxu0 0.0
      %4116 = vmatprep.subr.mxu0 0.0
      %4117 = vmatpush1.msra.mxu0 0.0
      %4118 = vmatprep.subr.mxu0 0.0
      %4119 = vmatpush1.msra.mxu0 0.0
      %4120 = vmatprep.subr.mxu0 0.0
      %4121 = vmatpush1.msra.mxu0 0.0
      %4122 = vmatprep.subr.mxu0 0.0
      %4123 = vmatpush1.msra.mxu0 0.0
      %4124 = vmatprep.subr.mxu0 0.0
      %4125 = vmatpush1.msra.mxu0 0.0
      %4126 = vmatprep.subr.mxu0 0.0
      %4127 = vmatpush1.msra.mxu0 0.0
      %4128 = vmatprep.subr.mxu0 0.0
      %4129 = vmatpush1.msra.mxu0 %v4075
      %4130 = vmatprep.subr.mxu0 0.0
      %4131 = vmatpush1.msra.mxu0 %v4074
      %4132 = vmatprep.subr.mxu0 0.0
      %4133 = vmatpush2.msra.mxu0 0.0
      %4134 = vmatprep.subr.mxu0 0.0
      %4135 = vmatpush2.msra.mxu0 0.0
      %4136 = vmatprep.subr.mxu0 0.0
      %4137 = vmatpush2.msra.mxu0 0.0
      %4138 = vmatprep.subr.mxu0 0.0
      %4139 = vmatpush2.msra.mxu0 0.0
      %4140 = vmatprep.subr.mxu0 0.0
      %4141 = vmatpush2.msra.mxu0 0.0
      %4142 = vmatprep.subr.mxu0 0.0
      %4143 = vmatpush2.msra.mxu0 0.0
      %4144 = vmatprep.subr.mxu0 0.0
      %4145 = vmatpush2.msra.mxu0 0.0
      %4146 = vmatprep.subr.mxu0 0.0
      %4147 = vmatpush2.msra.mxu0 0.0
      %4148 = vmatprep.subr.mxu0 0.0
      %4149 = vmatpush2.msra.mxu0 0.0
      %4150 = vmatprep.subr.mxu0 0.0
      %4151 = vmatpush2.msra.mxu0 0.0
      %4152 = vmatprep.subr.mxu0 0.0
      %4153 = vmatpush2.msra.mxu0 0.0
      %4154 = vmatprep.subr.mxu0 0.0
      %4155 = vmatpush2.msra.mxu0 0.0
      %4156 = vmatprep.subr.mxu0 0.0
      %4157 = vmatpush2.msra.mxu0 0.0
      %4158 = vmatprep.subr.mxu0 0.0
      %4159 = vmatpush2.msra.mxu0 0.0
      %4160 = vmatprep.subr.mxu0 0.0
      %4161 = vmatpush2.msra.mxu0 0.0
      %4162 = vmatprep.subr.mxu0 0.0
      %4163 = vmatpush2.msra.mxu0 0.0
      %4164 = vmatprep.mubr.f32.mxu0 0.0
      %4165 = vmatmul.mubr.f32.gmra.mxu0 %v4077
      %v4166 = vpop.f32.mrf.mxu0
      %v4167 = vadd.f32 0.0, %v4166
      %v4168 = vpop.f32.mrf.mxu0
      %4169 = vmatprep.mubr.f32.mxu0 0.0
      %4170 = vmatmul.mubr.f32.gmra.mxu0 %v4080
      %v4171 = vpop.f32.mrf.mxu0
      %v4172 = vadd.f32 0.0, %v4171
      %v4173 = vpop.f32.mrf.mxu0
      %4174 = vmatprep.mubr.f32.mxu0 0.0
      %4175 = vmatmul.mubr.f32.gmra.mxu0 %v4083
      %v4176 = vpop.f32.mrf.mxu0
      %v4177 = vadd.f32 0.0, %v4176
      %v4178 = vpop.f32.mrf.mxu0
      %4179 = vmatprep.mubr.f32.mxu0 0.0
      %4180 = vmatmul.mubr.f32.gmra.mxu0 %v4086
      %v4181 = vpop.f32.mrf.mxu0
      %v4182 = vadd.f32 0.0, %v4181
      %v4183 = vpop.f32.mrf.mxu0
      %4184 = vmatprep.mubr.f32.mxu0 0.0
      %4185 = vmatmul.mubr.f32.gmra.mxu0 %v4089
      %v4186 = vpop.f32.mrf.mxu0
      %v4187 = vadd.f32 0.0, %v4186
      %v4188 = vpop.f32.mrf.mxu0
      %4189 = vmatprep.mubr.f32.mxu0 0.0
      %4190 = vmatmul.mubr.f32.gmra.mxu0 %v4092
      %v4191 = vpop.f32.mrf.mxu0
      %v4192 = vadd.f32 0.0, %v4191
      %v4193 = vpop.f32.mrf.mxu0
      %4194 = vmatprep.mubr.f32.mxu0 0.0
      %4195 = vmatmul.mubr.f32.gmra.mxu0 %v4095
      %v4196 = vpop.f32.mrf.mxu0
      %v4197 = vadd.f32 0.0, %v4196
      %v4198 = vpop.f32.mrf.mxu0
      %4199 = vmatprep.mubr.f32.mxu0 0.0
      %4200 = vmatmul.mubr.f32.gmra.mxu0 %v4098
      %v4201 = vpop.f32.mrf.mxu0
      %v4202 = vadd.f32 0.0, %v4201
      %v4203 = vpop.f32.mrf.mxu0
      %4204 = vdwg.mxu0
      %v4205 = vadd.f32 %v4057, %v4167
      %v4206 = vadd.f32 %v4058, %v4172
      %v4207 = vadd.f32 %v4059, %v4177
      %v4208 = vadd.f32 %v4060, %v4182
      %v4209 = vadd.f32 %v4061, %v4187
      %v4210 = vadd.f32 %v4062, %v4192
      %v4211 = vadd.f32 %v4063, %v4197
      %v4212 = vadd.f32 %v4064, %v4202
      %v4213 = vld [vmem:[%s3916 + $0x2] sm:$0xff]
      %v4214 = vld [vmem:[%s3916 + $0x12] sm:$0xff]
      %v4215 = vld [vmem:[%s3916 + $0x22] sm:$0xff]
      %v4216 = vld [vmem:[%s3916 + $0x32] sm:$0xff]
      %v4217 = vld [vmem:[%s3916 + $0x42] sm:$0xff]
      %v4218 = vld [vmem:[%s3916 + $0x52] sm:$0xff]
      %v4219 = vld [vmem:[%s3916 + $0x62] sm:$0xff]
      %v4220 = vld [vmem:[%s3916 + $0x72] sm:$0xff]
      %s4221 = scalar_lea.vmem %s5, 128
      %v4222 = vld [vmem:[%s4221] sm:$0xff]
      %v4223 = vld [vmem:[%s4221 + $0x8] sm:$0xff]
      %v4225 = vsel %vm2531, %v4213, 0
      %v4228 = vsel %vm2531, %v4214, 0
      %v4231 = vsel %vm2531, %v4215, 0
      %v4234 = vsel %vm2531, %v4216, 0
      %v4237 = vsel %vm2531, %v4217, 0
      %v4240 = vsel %vm2531, %v4218, 0
      %v4243 = vsel %vm2531, %v4219, 0
      %v4246 = vsel %vm2531, %v4220, 0
      %4248 = vmatprep.subr.mxu0 0.0
      %4249 = vmatpush1.msra.mxu0 0.0
      %4250 = vmatprep.subr.mxu0 0.0
      %4251 = vmatpush1.msra.mxu0 0.0
      %4252 = vmatprep.subr.mxu0 0.0
      %4253 = vmatpush1.msra.mxu0 0.0
      %4254 = vmatprep.subr.mxu0 0.0
      %4255 = vmatpush1.msra.mxu0 0.0
      %4256 = vmatprep.subr.mxu0 0.0
      %4257 = vmatpush1.msra.mxu0 0.0
      %4258 = vmatprep.subr.mxu0 0.0
      %4259 = vmatpush1.msra.mxu0 0.0
      %4260 = vmatprep.subr.mxu0 0.0
      %4261 = vmatpush1.msra.mxu0 0.0
      %4262 = vmatprep.subr.mxu0 0.0
      %4263 = vmatpush1.msra.mxu0 0.0
      %4264 = vmatprep.subr.mxu0 0.0
      %4265 = vmatpush1.msra.mxu0 0.0
      %4266 = vmatprep.subr.mxu0 0.0
      %4267 = vmatpush1.msra.mxu0 0.0
      %4268 = vmatprep.subr.mxu0 0.0
      %4269 = vmatpush1.msra.mxu0 0.0
      %4270 = vmatprep.subr.mxu0 0.0
      %4271 = vmatpush1.msra.mxu0 0.0
      %4272 = vmatprep.subr.mxu0 0.0
      %4273 = vmatpush1.msra.mxu0 0.0
      %4274 = vmatprep.subr.mxu0 0.0
      %4275 = vmatpush1.msra.mxu0 0.0
      %4276 = vmatprep.subr.mxu0 0.0
      %4277 = vmatpush1.msra.mxu0 %v4223
      %4278 = vmatprep.subr.mxu0 0.0
      %4279 = vmatpush1.msra.mxu0 %v4222
      %4280 = vmatprep.subr.mxu0 0.0
      %4281 = vmatpush2.msra.mxu0 0.0
      %4282 = vmatprep.subr.mxu0 0.0
      %4283 = vmatpush2.msra.mxu0 0.0
      %4284 = vmatprep.subr.mxu0 0.0
      %4285 = vmatpush2.msra.mxu0 0.0
      %4286 = vmatprep.subr.mxu0 0.0
      %4287 = vmatpush2.msra.mxu0 0.0
      %4288 = vmatprep.subr.mxu0 0.0
      %4289 = vmatpush2.msra.mxu0 0.0
      %4290 = vmatprep.subr.mxu0 0.0
      %4291 = vmatpush2.msra.mxu0 0.0
      %4292 = vmatprep.subr.mxu0 0.0
      %4293 = vmatpush2.msra.mxu0 0.0
      %4294 = vmatprep.subr.mxu0 0.0
      %4295 = vmatpush2.msra.mxu0 0.0
      %4296 = vmatprep.subr.mxu0 0.0
      %4297 = vmatpush2.msra.mxu0 0.0
      %4298 = vmatprep.subr.mxu0 0.0
      %4299 = vmatpush2.msra.mxu0 0.0
      %4300 = vmatprep.subr.mxu0 0.0
      %4301 = vmatpush2.msra.mxu0 0.0
      %4302 = vmatprep.subr.mxu0 0.0
      %4303 = vmatpush2.msra.mxu0 0.0
      %4304 = vmatprep.subr.mxu0 0.0
      %4305 = vmatpush2.msra.mxu0 0.0
      %4306 = vmatprep.subr.mxu0 0.0
      %4307 = vmatpush2.msra.mxu0 0.0
      %4308 = vmatprep.subr.mxu0 0.0
      %4309 = vmatpush2.msra.mxu0 0.0
      %4310 = vmatprep.subr.mxu0 0.0
      %4311 = vmatpush2.msra.mxu0 0.0
      %4312 = vmatprep.mubr.f32.mxu0 0.0
      %4313 = vmatmul.mubr.f32.gmra.mxu0 %v4225
      %v4314 = vpop.f32.mrf.mxu0
      %v4315 = vadd.f32 0.0, %v4314
      %v4316 = vpop.f32.mrf.mxu0
      %4317 = vmatprep.mubr.f32.mxu0 0.0
      %4318 = vmatmul.mubr.f32.gmra.mxu0 %v4228
      %v4319 = vpop.f32.mrf.mxu0
      %v4320 = vadd.f32 0.0, %v4319
      %v4321 = vpop.f32.mrf.mxu0
      %4322 = vmatprep.mubr.f32.mxu0 0.0
      %4323 = vmatmul.mubr.f32.gmra.mxu0 %v4231
      %v4324 = vpop.f32.mrf.mxu0
      %v4325 = vadd.f32 0.0, %v4324
      %v4326 = vpop.f32.mrf.mxu0
      %4327 = vmatprep.mubr.f32.mxu0 0.0
      %4328 = vmatmul.mubr.f32.gmra.mxu0 %v4234
      %v4329 = vpop.f32.mrf.mxu0
      %v4330 = vadd.f32 0.0, %v4329
      %v4331 = vpop.f32.mrf.mxu0
      %4332 = vmatprep.mubr.f32.mxu0 0.0
      %4333 = vmatmul.mubr.f32.gmra.mxu0 %v4237
      %v4334 = vpop.f32.mrf.mxu0
      %v4335 = vadd.f32 0.0, %v4334
      %v4336 = vpop.f32.mrf.mxu0
      %4337 = vmatprep.mubr.f32.mxu0 0.0
      %4338 = vmatmul.mubr.f32.gmra.mxu0 %v4240
      %v4339 = vpop.f32.mrf.mxu0
      %v4340 = vadd.f32 0.0, %v4339
      %v4341 = vpop.f32.mrf.mxu0
      %4342 = vmatprep.mubr.f32.mxu0 0.0
      %4343 = vmatmul.mubr.f32.gmra.mxu0 %v4243
      %v4344 = vpop.f32.mrf.mxu0
      %v4345 = vadd.f32 0.0, %v4344
      %v4346 = vpop.f32.mrf.mxu0
      %4347 = vmatprep.mubr.f32.mxu0 0.0
      %4348 = vmatmul.mubr.f32.gmra.mxu0 %v4246
      %v4349 = vpop.f32.mrf.mxu0
      %v4350 = vadd.f32 0.0, %v4349
      %v4351 = vpop.f32.mrf.mxu0
      %4352 = vdwg.mxu0
      %v4353 = vadd.f32 %v4205, %v4315
      %v4354 = vadd.f32 %v4206, %v4320
      %v4355 = vadd.f32 %v4207, %v4325
      %v4356 = vadd.f32 %v4208, %v4330
      %v4357 = vadd.f32 %v4209, %v4335
      %v4358 = vadd.f32 %v4210, %v4340
      %v4359 = vadd.f32 %v4211, %v4345
      %v4360 = vadd.f32 %v4212, %v4350
      %v4361 = vld [vmem:[%s6] sm:$0x1]
      %v4363 = vlaneseq
      %v4364 = vshrl.u32 %v4363, 7
      %v4365 = vsub.s32 0, %v4364
      %v4366 = vrot.slane %v4361, %v4365
      %v4368 = vadd.f32 %v4353, %v4366
      %v4369 = vadd.f32 %v4354, %v4366
      %v4370 = vadd.f32 %v4355, %v4366
      %v4371 = vadd.f32 %v4356, %v4366
      %v4372 = vadd.f32 %v4357, %v4366
      %v4373 = vadd.f32 %v4358, %v4366
      %v4374 = vadd.f32 %v4359, %v4366
      %v4375 = vadd.f32 %v4360, %v4366
      %v4376 = vmax.f32 %v4368, 0.0
      %v4377 = vmax.f32 %v4369, 0.0
      %v4378 = vmax.f32 %v4370, 0.0
      %v4379 = vmax.f32 %v4371, 0.0
      %v4380 = vmax.f32 %v4372, 0.0
      %v4381 = vmax.f32 %v4373, 0.0
      %v4382 = vmax.f32 %v4374, 0.0
      %v4383 = vmax.f32 %v4375, 0.0
      %v4384 = vld [vmem:[%s7] sm:$0xff]
      %v4385 = vld [vmem:[%s7 + $0x8] sm:$0xff]
      %v4386 = vld [vmem:[%s7 + $0x10] sm:$0xff]
      %v4387 = vld [vmem:[%s7 + $0x18] sm:$0xff]
      %v4388 = vld [vmem:[%s7 + $0x20] sm:$0xff]
      %v4389 = vld [vmem:[%s7 + $0x28] sm:$0xff]
      %v4390 = vld [vmem:[%s8] sm:$0x1]
      %v4392 = vlaneseq
      %v4393 = vshrl.u32 %v4392, 7
      %v4394 = vsub.s32 0, %v4393
      %v4395 = vrot.slane %v4390, %v4394
      %v4398 = vsel %vm2863, %v4376, 0
      %v4401 = vsel %vm2863, %v4377, 0
      %v4404 = vsel %vm2863, %v4378, 0
      %v4407 = vsel %vm2863, %v4379, 0
      %v4410 = vsel %vm2863, %v4380, 0
      %v4413 = vsel %vm2863, %v4381, 0
      %v4416 = vsel %vm2863, %v4382, 0
      %v4419 = vsel %vm2863, %v4383, 0
      %4421 = vmatprep.subr.mxu0 0.0
      %4422 = vmatpush1.msra.mxu0 0.0
      %4423 = vmatprep.subr.mxu0 0.0
      %4424 = vmatpush1.msra.mxu0 0.0
      %4425 = vmatprep.subr.mxu0 0.0
      %4426 = vmatpush1.msra.mxu0 0.0
      %4427 = vmatprep.subr.mxu0 0.0
      %4428 = vmatpush1.msra.mxu0 0.0
      %4429 = vmatprep.subr.mxu0 0.0
      %4430 = vmatpush1.msra.mxu0 0.0
      %4431 = vmatprep.subr.mxu0 0.0
      %4432 = vmatpush1.msra.mxu0 0.0
      %4433 = vmatprep.subr.mxu0 0.0
      %4434 = vmatpush1.msra.mxu0 0.0
      %4435 = vmatprep.subr.mxu0 0.0
      %4436 = vmatpush1.msra.mxu0 0.0
      %4437 = vmatprep.subr.mxu0 0.0
      %4438 = vmatpush1.msra.mxu0 0.0
      %4439 = vmatprep.subr.mxu0 0.0
      %4440 = vmatpush1.msra.mxu0 0.0
      %4441 = vmatprep.subr.mxu0 0.0
      %4442 = vmatpush1.msra.mxu0 %v4389
      %4443 = vmatprep.subr.mxu0 0.0
      %4444 = vmatpush1.msra.mxu0 %v4388
      %4445 = vmatprep.subr.mxu0 0.0
      %4446 = vmatpush1.msra.mxu0 %v4387
      %4447 = vmatprep.subr.mxu0 0.0
      %4448 = vmatpush1.msra.mxu0 %v4386
      %4449 = vmatprep.subr.mxu0 0.0
      %4450 = vmatpush1.msra.mxu0 %v4385
      %4451 = vmatprep.subr.mxu0 0.0
      %4452 = vmatpush1.msra.mxu0 %v4384
      %4453 = vmatprep.subr.mxu0 0.0
      %4454 = vmatpush2.msra.mxu0 0.0
      %4455 = vmatprep.subr.mxu0 0.0
      %4456 = vmatpush2.msra.mxu0 0.0
      %4457 = vmatprep.subr.mxu0 0.0
      %4458 = vmatpush2.msra.mxu0 0.0
      %4459 = vmatprep.subr.mxu0 0.0
      %4460 = vmatpush2.msra.mxu0 0.0
      %4461 = vmatprep.subr.mxu0 0.0
      %4462 = vmatpush2.msra.mxu0 0.0
      %4463 = vmatprep.subr.mxu0 0.0
      %4464 = vmatpush2.msra.mxu0 0.0
      %4465 = vmatprep.subr.mxu0 0.0
      %4466 = vmatpush2.msra.mxu0 0.0
      %4467 = vmatprep.subr.mxu0 0.0
      %4468 = vmatpush2.msra.mxu0 0.0
      %4469 = vmatprep.subr.mxu0 0.0
      %4470 = vmatpush2.msra.mxu0 0.0
      %4471 = vmatprep.subr.mxu0 0.0
      %4472 = vmatpush2.msra.mxu0 0.0
      %4473 = vmatprep.subr.mxu0 0.0
      %4474 = vmatpush2.msra.mxu0 0.0
      %4475 = vmatprep.subr.mxu0 0.0
      %4476 = vmatpush2.msra.mxu0 0.0
      %4477 = vmatprep.subr.mxu0 0.0
      %4478 = vmatpush2.msra.mxu0 0.0
      %4479 = vmatprep.subr.mxu0 0.0
      %4480 = vmatpush2.msra.mxu0 0.0
      %4481 = vmatprep.subr.mxu0 0.0
      %4482 = vmatpush2.msra.mxu0 0.0
      %4483 = vmatprep.subr.mxu0 0.0
      %4484 = vmatpush2.msra.mxu0 0.0
      %4485 = vmatprep.mubr.f32.mxu0 0.0
      %4486 = vmatmul.mubr.f32.gmra.mxu0 %v4398
      %v4487 = vpop.f32.mrf.mxu0
      %v4488 = vadd.f32 %v4395, %v4487
      %v4489 = vpop.f32.mrf.mxu0
      %4490 = vmatprep.mubr.f32.mxu0 0.0
      %4491 = vmatmul.mubr.f32.gmra.mxu0 %v4401
      %v4492 = vpop.f32.mrf.mxu0
      %v4493 = vadd.f32 %v4395, %v4492
      %v4494 = vpop.f32.mrf.mxu0
      %4495 = vmatprep.mubr.f32.mxu0 0.0
      %4496 = vmatmul.mubr.f32.gmra.mxu0 %v4404
      %v4497 = vpop.f32.mrf.mxu0
      %v4498 = vadd.f32 %v4395, %v4497
      %v4499 = vpop.f32.mrf.mxu0
      %4500 = vmatprep.mubr.f32.mxu0 0.0
      %4501 = vmatmul.mubr.f32.gmra.mxu0 %v4407
      %v4502 = vpop.f32.mrf.mxu0
      %v4503 = vadd.f32 %v4395, %v4502
      %v4504 = vpop.f32.mrf.mxu0
      %4505 = vmatprep.mubr.f32.mxu0 0.0
      %4506 = vmatmul.mubr.f32.gmra.mxu0 %v4410
      %v4507 = vpop.f32.mrf.mxu0
      %v4508 = vadd.f32 %v4395, %v4507
      %v4509 = vpop.f32.mrf.mxu0
      %4510 = vmatprep.mubr.f32.mxu0 0.0
      %4511 = vmatmul.mubr.f32.gmra.mxu0 %v4413
      %v4512 = vpop.f32.mrf.mxu0
      %v4513 = vadd.f32 %v4395, %v4512
      %v4514 = vpop.f32.mrf.mxu0
      %4515 = vmatprep.mubr.f32.mxu0 0.0
      %4516 = vmatmul.mubr.f32.gmra.mxu0 %v4416
      %v4517 = vpop.f32.mrf.mxu0
      %v4518 = vadd.f32 %v4395, %v4517
      %v4519 = vpop.f32.mrf.mxu0
      %4520 = vmatprep.mubr.f32.mxu0 0.0
      %4521 = vmatmul.mubr.f32.gmra.mxu0 %v4419
      %v4522 = vpop.f32.mrf.mxu0
      %v4523 = vadd.f32 %v4395, %v4522
      %v4524 = vpop.f32.mrf.mxu0
      %4525 = vdwg.mxu0
      %v4526 = vmax.f32 %v4488, 0.0
      %v4527 = vmax.f32 %v4493, 0.0
      %v4528 = vmax.f32 %v4498, 0.0
      %v4529 = vmax.f32 %v4503, 0.0
      %v4530 = vmax.f32 %v4508, 0.0
      %v4531 = vmax.f32 %v4513, 0.0
      %v4532 = vmax.f32 %v4518, 0.0
      %v4533 = vmax.f32 %v4523, 0.0
      %v4534 = vmul.f32 %v4526, %v4526
      %v4535 = vmul.f32 %v4527, %v4527
      %v4536 = vmul.f32 %v4528, %v4528
      %v4537 = vmul.f32 %v4529, %v4529
      %v4538 = vmul.f32 %v4530, %v4530
      %v4539 = vmul.f32 %v4531, %v4531
      %v4540 = vmul.f32 %v4532, %v4532
      %v4541 = vmul.f32 %v4533, %v4533
      %v4542 = vld [vmem:[%s9] sm:$0xff]
      %v4543 = vld [vmem:[%s9 + $0x8] sm:$0xff]
      %v4544 = vld [vmem:[%s9 + $0x10] sm:$0xff]
      %v4545 = vld [vmem:[%s9 + $0x18] sm:$0xff]
      %v4546 = vld [vmem:[%s9 + $0x20] sm:$0xff]
      %v4547 = vld [vmem:[%s9 + $0x28] sm:$0xff]
      %v4548 = vld [vmem:[%s9 + $0x30] sm:$0xff]
      %v4549 = vld [vmem:[%s9 + $0x38] sm:$0xff]
      %v4550 = vld [vmem:[%s9 + $0x40] sm:$0xff]
      %v4551 = vld [vmem:[%s9 + $0x48] sm:$0xff]
      %v4552 = vld [vmem:[%s9 + $0x50] sm:$0xff]
      %v4553 = vld [vmem:[%s9 + $0x58] sm:$0xff]
      %v4554 = vld [vmem:[%s9 + $0x60] sm:$0xff]
      %v4555 = vld [vmem:[%s9 + $0x68] sm:$0xff]
      %v4556 = vld [vmem:[%s9 + $0x70] sm:$0xff]
      %v4557 = vld [vmem:[%s9 + $0x78] sm:$0xff]
      %4558 = vmatprep.subr.mxu0 0.0
      %4559 = vmatpush1.msra.mxu0 %v4557
      %4560 = vmatprep.subr.mxu0 0.0
      %4561 = vmatpush1.msra.mxu0 %v4556
      %4562 = vmatprep.subr.mxu0 0.0
      %4563 = vmatpush1.msra.mxu0 %v4555
      %4564 = vmatprep.subr.mxu0 0.0
      %4565 = vmatpush1.msra.mxu0 %v4554
      %4566 = vmatprep.subr.mxu0 0.0
      %4567 = vmatpush1.msra.mxu0 %v4553
      %4568 = vmatprep.subr.mxu0 0.0
      %4569 = vmatpush1.msra.mxu0 %v4552
      %4570 = vmatprep.subr.mxu0 0.0
      %4571 = vmatpush1.msra.mxu0 %v4551
      %4572 = vmatprep.subr.mxu0 0.0
      %4573 = vmatpush1.msra.mxu0 %v4550
      %4574 = vmatprep.subr.mxu0 0.0
      %4575 = vmatpush1.msra.mxu0 %v4549
      %4576 = vmatprep.subr.mxu0 0.0
      %4577 = vmatpush1.msra.mxu0 %v4548
      %4578 = vmatprep.subr.mxu0 0.0
      %4579 = vmatpush1.msra.mxu0 %v4547
      %4580 = vmatprep.subr.mxu0 0.0
      %4581 = vmatpush1.msra.mxu0 %v4546
      %4582 = vmatprep.subr.mxu0 0.0
      %4583 = vmatpush1.msra.mxu0 %v4545
      %4584 = vmatprep.subr.mxu0 0.0
      %4585 = vmatpush1.msra.mxu0 %v4544
      %4586 = vmatprep.subr.mxu0 0.0
      %4587 = vmatpush1.msra.mxu0 %v4543
      %4588 = vmatprep.subr.mxu0 0.0
      %4589 = vmatpush1.msra.mxu0 %v4542
      %4590 = vmatprep.subr.mxu0 0.0
      %4591 = vmatpush2.msra.mxu0 0.0
      %4592 = vmatprep.subr.mxu0 0.0
      %4593 = vmatpush2.msra.mxu0 0.0
      %4594 = vmatprep.subr.mxu0 0.0
      %4595 = vmatpush2.msra.mxu0 0.0
      %4596 = vmatprep.subr.mxu0 0.0
      %4597 = vmatpush2.msra.mxu0 0.0
      %4598 = vmatprep.subr.mxu0 0.0
      %4599 = vmatpush2.msra.mxu0 0.0
      %4600 = vmatprep.subr.mxu0 0.0
      %4601 = vmatpush2.msra.mxu0 0.0
      %4602 = vmatprep.subr.mxu0 0.0
      %4603 = vmatpush2.msra.mxu0 0.0
      %4604 = vmatprep.subr.mxu0 0.0
      %4605 = vmatpush2.msra.mxu0 0.0
      %4606 = vmatprep.subr.mxu0 0.0
      %4607 = vmatpush2.msra.mxu0 0.0
      %4608 = vmatprep.subr.mxu0 0.0
      %4609 = vmatpush2.msra.mxu0 0.0
      %4610 = vmatprep.subr.mxu0 0.0
      %4611 = vmatpush2.msra.mxu0 0.0
      %4612 = vmatprep.subr.mxu0 0.0
      %4613 = vmatpush2.msra.mxu0 0.0
      %4614 = vmatprep.subr.mxu0 0.0
      %4615 = vmatpush2.msra.mxu0 0.0
      %4616 = vmatprep.subr.mxu0 0.0
      %4617 = vmatpush2.msra.mxu0 0.0
      %4618 = vmatprep.subr.mxu0 0.0
      %4619 = vmatpush2.msra.mxu0 0.0
      %4620 = vmatprep.subr.mxu0 0.0
      %4621 = vmatpush2.msra.mxu0 0.0
      %4622 = vmatprep.mubr.f32.mxu0 0.0
      %4623 = vmatmul.mubr.f32.gmra.mxu0 %v4534
      %v4624 = vpop.f32.mrf.mxu0
      %v4625 = vadd.f32 0.0, %v4624
      %v4626 = vpop.f32.mrf.mxu0
      %4627 = vmatprep.mubr.f32.mxu0 0.0
      %4628 = vmatmul.mubr.f32.gmra.mxu0 %v4535
      %v4629 = vpop.f32.mrf.mxu0
      %v4630 = vadd.f32 0.0, %v4629
      %v4631 = vpop.f32.mrf.mxu0
      %4632 = vmatprep.mubr.f32.mxu0 0.0
      %4633 = vmatmul.mubr.f32.gmra.mxu0 %v4536
      %v4634 = vpop.f32.mrf.mxu0
      %v4635 = vadd.f32 0.0, %v4634
      %v4636 = vpop.f32.mrf.mxu0
      %4637 = vmatprep.mubr.f32.mxu0 0.0
      %4638 = vmatmul.mubr.f32.gmra.mxu0 %v4537
      %v4639 = vpop.f32.mrf.mxu0
      %v4640 = vadd.f32 0.0, %v4639
      %v4641 = vpop.f32.mrf.mxu0
      %4642 = vmatprep.mubr.f32.mxu0 0.0
      %4643 = vmatmul.mubr.f32.gmra.mxu0 %v4538
      %v4644 = vpop.f32.mrf.mxu0
      %v4645 = vadd.f32 0.0, %v4644
      %v4646 = vpop.f32.mrf.mxu0
      %4647 = vmatprep.mubr.f32.mxu0 0.0
      %4648 = vmatmul.mubr.f32.gmra.mxu0 %v4539
      %v4649 = vpop.f32.mrf.mxu0
      %v4650 = vadd.f32 0.0, %v4649
      %v4651 = vpop.f32.mrf.mxu0
      %4652 = vmatprep.mubr.f32.mxu0 0.0
      %4653 = vmatmul.mubr.f32.gmra.mxu0 %v4540
      %v4654 = vpop.f32.mrf.mxu0
      %v4655 = vadd.f32 0.0, %v4654
      %v4656 = vpop.f32.mrf.mxu0
      %4657 = vmatprep.mubr.f32.mxu0 0.0
      %4658 = vmatmul.mubr.f32.gmra.mxu0 %v4541
      %v4659 = vpop.f32.mrf.mxu0
      %v4660 = vadd.f32 0.0, %v4659
      %v4661 = vpop.f32.mrf.mxu0
      %4662 = vdwg.mxu0
      %v4663 = vmax.f32 %v4625, 1e-24
      %v4664 = vmax.f32 %v4630, 1e-24
      %v4665 = vmax.f32 %v4635, 1e-24
      %v4666 = vmax.f32 %v4640, 1e-24
      %v4667 = vmax.f32 %v4645, 1e-24
      %v4668 = vmax.f32 %v4650, 1e-24
      %v4669 = vmax.f32 %v4655, 1e-24
      %v4670 = vmax.f32 %v4660, 1e-24
      %v4671 = vrsqrt.pop %v4663
      %v4672 = vrsqrt.pop %v4664
      %v4673 = vrsqrt.pop %v4665
      %v4674 = vrsqrt.pop %v4666
      %v4675 = vrsqrt.pop %v4667
      %v4676 = vrsqrt.pop %v4668
      %v4677 = vrsqrt.pop %v4669
      %v4678 = vrsqrt.pop %v4670
      %v4679 = vmul.f32 %v4526, %v4671
      %v4680 = vmul.f32 %v4527, %v4672
      %v4681 = vmul.f32 %v4528, %v4673
      %v4682 = vmul.f32 %v4529, %v4674
      %v4683 = vmul.f32 %v4530, %v4675
      %v4684 = vmul.f32 %v4531, %v4676
      %v4685 = vmul.f32 %v4532, %v4677
      %v4686 = vmul.f32 %v4533, %v4678
      %4687 = vst [vmem:[%s399] sm:$0xff] %v4679
      %4688 = vst [vmem:[%s399 + $0x8] sm:$0xff] %v4680
      %4689 = vst [vmem:[%s399 + $0x10] sm:$0xff] %v4681
      %4690 = vst [vmem:[%s399 + $0x18] sm:$0xff] %v4682
      %4691 = vst [vmem:[%s399 + $0x20] sm:$0xff] %v4683
      %4692 = vst [vmem:[%s399 + $0x28] sm:$0xff] %v4684
      %4693 = vst [vmem:[%s399 + $0x30] sm:$0xff] %v4685
      %4694 = vst [vmem:[%s399 + $0x38] sm:$0xff] %v4686
      %p4695 = scmp.lt.s32.totalorder %s23, 1
      %s4696 = scalar_select %p4695, %s23, 1
      %s4697 = smul.addr %s4696, 2
      %s4698 = smul.addr %s4697, 8
      %s4699 = scalar_lea.vmem %s10, %s4698
      %p4700 = scmp.lt.s32.totalorder %s23, 1
      %s4701 = scalar_select %p4700, %s23, 1
      %s4702 = smul.addr %s4701, 8
      %s4703 = smul.addr %s4702, 8
      %s4704 = scalar_lea.vmem %s11, %s4703
      // Predicated region
      $region61: #{fcn_forward.1} parent=59 // pred_check
        %p4705 = pneg %p256
      $region62: #{fcn_forward.1} parent=59 // pred_check_branch
        %4707 = sbr.rel (%p4705) target = $region64
      $region63: #{fcn_forward.1} parent=59 // pred_region
        _
      $region64: #{fcn_forward.1} parent=59 // pred_fallthru
        _
      // Predicated region
      $region65: #{fcn_forward.1} parent=59 // pred_check
        %p4708 = pneg %p282
      $region66: #{fcn_forward.1} parent=59 // pred_check_branch
        %4710 = sbr.rel (%p4708) target = $region68
      $region67: #{fcn_forward.1} parent=59 // pred_region
        _
      $region68: #{fcn_forward.1} parent=59 // pred_fallthru
        _
    $region60: #{fcn_forward.1} parent=5 // pred_fallthru
      _
    %p4711 = scmp.le.s32.totalorder 2, %s18
    // Predicated region
    $region69: #{fcn_forward.1} parent=5 // pred_check
      %p4712 = pneg %p4711
    $region70: #{fcn_forward.1} parent=5 // pred_check_branch
      %4714 = sbr.rel (%p4712) target = $region72
    $region71: #{fcn_forward.1} parent=5 // pred_region
      %s4715 = ssub.s32 %s18, 2
      // Predicated region
      $region73: #{fcn_forward.1} parent=71 // pred_check
        %p4716 = pneg %p262
      $region74: #{fcn_forward.1} parent=71 // pred_check_branch
        %4718 = sbr.rel (%p4716) target = $region76
      $region75: #{fcn_forward.1} parent=71 // pred_region
        %p4719 = scmp.lt.s32.totalorder %s24, 1
        %s4720 = scalar_select %p4719, %s24, 1
        %s4721 = smul.addr %s4720, 2
        %s4722 = smul.addr %s4721, 8
        %s4723 = scalar_lea.vmem %s10, %s4722
      $region76: #{fcn_forward.1} parent=71 // pred_fallthru
        _
      // Predicated region
      $region77: #{fcn_forward.1} parent=71 // pred_check
        %p4724 = pneg %p288
      $region78: #{fcn_forward.1} parent=71 // pred_check_branch
        %4726 = sbr.rel (%p4724) target = $region80
      $region79: #{fcn_forward.1} parent=71 // pred_region
        %p4727 = scmp.lt.s32.totalorder %s24, 1
        %s4728 = scalar_select %p4727, %s24, 1
        %s4729 = smul.addr %s4728, 8
        %s4730 = smul.addr %s4729, 8
        %s4731 = scalar_lea.vmem %s11, %s4730
      $region80: #{fcn_forward.1} parent=71 // pred_fallthru
        _
    $region72: #{fcn_forward.1} parent=5 // pred_fallthru
      _
  $region6: #{fcn_forward.1} parent=0 // loop_footer
    %s22 = sadd.s32 1, %s18
  $region7: #{fcn_forward.1} parent=0 // loop_footer_branch
    %17 = sbr.rel target = $region3
  $region8: #{fcn_forward.1} parent=0 // loop_exit
    _

</llo_original>
